<compile_context>
chip_gen: v6e
topology: v6e:2x2x1
jax: 0.10.0
libtpu: 0.0.40
codegen_flags: <defaults>
</compile_context>

<pallas_src>
import math
import functools

import jax
import jax.numpy as jnp
from jax.experimental import pallas as pl
from jax.experimental.pallas import tpu as pltpu


NEG_INF = -1e30


def _round_up(x, m):
    return ((x + m - 1) // m) * m


# ---------------------------------------------------------------------------
# Reference-side LayerNorm (unpadded)
# ---------------------------------------------------------------------------
def _layer_norm(x, gamma, beta, eps=1e-5):
    mu = jnp.mean(x, axis=-1, keepdims=True)
    var = jnp.mean((x - mu) ** 2, axis=-1, keepdims=True)
    return (x - mu) * jax.lax.rsqrt(var + eps) * gamma + beta


# ---------------------------------------------------------------------------
# Pallas kernel: cross-attn -> add+LN -> self-attn -> add+LN -> FFN -> add+LN
# for one block of the batch.
# ---------------------------------------------------------------------------
def decoder_layer_kernel(
    tgt_ref, pos_q_ref, vis_ref, vis_pos_ref, vmask_ref, qmask_ref,
    # cross attention (multihead_attn_v) + norm_v
    w_qkv_v_ref, b_qkv_v_ref, w_out_v_ref, b_out_v_ref, g_v_ref, beta_v_ref,
    # self attention + norm1
    w_qkv_s_ref, b_qkv_s_ref, w_out_s_ref, b_out_s_ref, g1_ref, beta1_ref,
    # feed-forward + norm3
    w1_ref, b1_ref, w2_ref, b2_ref, g3_ref, beta3_ref,
    out_ref,
    proj_scr, ctx_scr,
    *, nhead, d_model, d_head):
    Bb, Lq, Dp = tgt_ref.shape            # Dp = padded model dim (multiple of 128)
    Lk = vis_ref.shape[1]
    rows_q = Bb * Lq
    rows_k = Bb * Lk
    scale = 1.0 / math.sqrt(d_head)
    blk = pl.program_id(0)

    # Lane mask so LayerNorm statistics only cover the original d_model lanes.
    lane_idx = jax.lax.broadcasted_iota(jnp.int32, (1, Dp), 1)
    ln_mask = (lane_idx < d_model).astype(jnp.float32)
    inv_d = 1.0 / d_model

    def layer_norm(x2, g_ref, b_ref, eps=1e-5):
        mu = jnp.sum(x2 * ln_mask, axis=-1, keepdims=True) * inv_d
        xc = (x2 - mu) * ln_mask
        var = jnp.sum(xc * xc, axis=-1, keepdims=True) * inv_d
        # gamma/beta are zero in padded lanes -> padded lanes stay exactly 0.
        return xc * jax.lax.rsqrt(var + eps) * g_ref[...] + b_ref[...]

    def mm(x2, w):
        # Full-width MXU matmul; weights may be bf16, accumulation stays f32.
        return jnp.dot(x2.astype(w.dtype), w, preferred_element_type=jnp.float32)

    # Key-padding masks -> additive score biases, built in-kernel (VPU work).
    v_bias = jnp.where(vmask_ref[pl.ds(blk * Bb, Bb), :] > 0, NEG_INF, 0.0)[:, None, :]
    q_bias = jnp.where(qmask_ref[pl.ds(blk * Bb, Bb), :] > 0, NEG_INF, 0.0)[:, None, :]

    # Padded lanes of the context scratch are never written by the head loop;
    # zero once so the (zero-padded) output projection cannot read garbage.
    ctx_scr[...] = jnp.zeros_like(ctx_scr)

    def attention(xq2, xk2, xv2, lk, bias, w_ref, b_ref, wo_ref, bo_ref, fused):
        # xq2: (Bb*Lq, Dp); xk2/xv2: (Bb*lk, Dp); bias: (Bb, 1, lk)
        # w_ref: (Dp, 3*Dp) packed [Wq | Wk | Wv]; b_ref: (1, 3*Dp)
        if fused:
            # self attention: q = k = v input -> one (rows, Dp) x (Dp, 3Dp) dot
            qkv = mm(xq2, w_ref[...]) + b_ref[...]
            proj_scr[:, 0:lk, :] = qkv.reshape(Bb, lk, 3 * Dp)
        else:
            q2 = mm(xq2, w_ref[:, 0:Dp]) + b_ref[:, 0:Dp]
            k2 = mm(xk2, w_ref[:, Dp:2 * Dp]) + b_ref[:, Dp:2 * Dp]
            v2 = mm(xv2, w_ref[:, 2 * Dp:3 * Dp]) + b_ref[:, 2 * Dp:3 * Dp]
            proj_scr[:, 0:Lq, 0:Dp] = q2.reshape(Bb, Lq, Dp)
            proj_scr[:, 0:lk, Dp:2 * Dp] = k2.reshape(Bb, lk, Dp)
            proj_scr[:, 0:lk, 2 * Dp:3 * Dp] = v2.reshape(Bb, lk, Dp)

        # Per-head scores / context (inherently small matmuls); the big FLOPs
        # above already run at full MXU width.
        for h in range(nhead):                      # static unroll
            c0 = h * d_head
            qh = proj_scr[:, 0:Lq, c0:c0 + d_head] * scale          # (Bb, Lq, Dh)
            kh = proj_scr[:, 0:lk, Dp + c0:Dp + c0 + d_head]        # (Bb, lk, Dh)
            vh = proj_scr[:, 0:lk, 2 * Dp + c0:2 * Dp + c0 + d_head]
            s = jnp.einsum('bqd,bkd->bqk', qh, kh,
                           preferred_element_type=jnp.float32) + bias
            s = s - jnp.max(s, axis=-1, keepdims=True)
            p = jnp.exp(s)
            p = p * pl.reciprocal(jnp.sum(p, axis=-1, keepdims=True), approx=True)
            ctx_scr[:, :, c0:c0 + d_head] = jnp.einsum(
                'bqk,bkd->bqd', p, vh, preferred_element_type=jnp.float32)

        # concat(heads) @ Wo as ONE full-width (rows, Dp) x (Dp, Dp) dot.
        return mm(ctx_scr[...].reshape(rows_q, Dp), wo_ref[...]) + bo_ref[...]

    tgt = tgt_ref[...].reshape(rows_q, Dp)
    pos = pos_q_ref[...].reshape(rows_q, Dp)
    vis = vis_ref[...].reshape(rows_k, Dp)
    visp = vis_pos_ref[...].reshape(rows_k, Dp)

    # ---- cross attention over visual features (multihead_attn_v) ----
    t2 = attention(tgt + pos, vis + visp, vis, Lk, v_bias,
                   w_qkv_v_ref, b_qkv_v_ref, w_out_v_ref, b_out_v_ref, fused=False)
    x = layer_norm(tgt + t2, g_v_ref, beta_v_ref)      # dropout_v: identity (eval)

    # ---- self attention (q = k = v = x + pos) ----
    qkv_in = x + pos
    t2 = attention(qkv_in, qkv_in, qkv_in, Lq, q_bias,
                   w_qkv_s_ref, b_qkv_s_ref, w_out_s_ref, b_out_s_ref, fused=True)
    x = layer_norm(x + t2, g1_ref, beta1_ref)           # dropout1: identity (eval)

    # ---- feed-forward (activation = relu) ----
    h1 = jnp.maximum(mm(x, w1_ref[...]) + b1_ref[...], 0.0)
    t2 = mm(h1, w2_ref[...]) + b2_ref[...]
    x = layer_norm(x + t2, g3_ref, beta3_ref)            # dropout3: identity (eval)

    out_ref[...] = x.reshape(Bb, Lq, Dp).astype(out_ref.dtype)


# ---------------------------------------------------------------------------
# Wrapper: pad to lane-dense shapes, pack weights, launch the kernel.
# ---------------------------------------------------------------------------
def transformer_decoder_layer(dec_query_dict, dec_vis_dict, params, nhead,
                              batch_blocks=None, matmul_dtype=jnp.bfloat16):
    tgt = dec_query_dict["feat_action"].astype(jnp.float32)
    pos_q = dec_query_dict["pos_enc"].astype(jnp.float32)
    qmask = dec_query_dict["mask"]
    vis = dec_vis_dict["feat"].astype(jnp.float32)
    vis_pos = dec_vis_dict["pos_enc"].astype(jnp.float32)
    vmask = dec_vis_dict["mask"]

    B, Lq, D = tgt.shape
    Lk = vis.shape[1]
    assert D % nhead == 0, "d_model must be divisible by nhead"
    Dh = D // nhead
    FF = params["w1"].shape[1]

    # Lane-dense padding (128-lane feature dims, 8-sublane sequence dims).
    Dp = _round_up(D, 128)
    FFp = _round_up(FF, 128)
    Lqp = _round_up(Lq, 8)
    Lkp = _round_up(Lk, 8)

    if batch_blocks is None:
        batch_blocks = 2 if B % 2 == 0 else 1   # shard across the 2 TCs on v7x
    assert B % batch_blocks == 0
    Bb = B // batch_blocks
    Lmax = max(Lqp, Lkp)

    def pad2(a, r, c):
        return jnp.pad(a, ((0, r - a.shape[0]), (0, c - a.shape[1])))

    def pad_seq_feat(a, l, d):
        return jnp.pad(a, ((0, 0), (0, l - a.shape[1]), (0, d - a.shape[2])))

    tgt_p = pad_seq_feat(tgt, Lqp, Dp)
    pos_p = pad_seq_feat(pos_q, Lqp, Dp)
    vis_p = pad_seq_feat(vis, Lkp, Dp)
    visp_p = pad_seq_feat(vis_pos, Lkp, Dp)
    # Padded key positions are marked masked (1) so they are ignored.
    qmask_i = jnp.pad(qmask.astype(jnp.int32), ((0, 0), (0, Lqp - Lq)),
                      constant_values=1)
    vmask_i = jnp.pad(vmask.astype(jnp.int32), ((0, 0), (0, Lkp - Lk)),
                      constant_values=1)

    def pack_qkv(pfx):
        # (Dp, 3*Dp) packed [Wq | Wk | Wv]; equals in_proj_weight.T with the
        # same per-head column grouping as nn.MultiheadAttention.
        w = jnp.concatenate([pad2(params[pfx + "wq"], Dp, Dp),
                             pad2(params[pfx + "wk"], Dp, Dp),
                             pad2(params[pfx + "wv"], Dp, Dp)],
                            axis=1).astype(matmul_dtype)
        b = jnp.concatenate([pad2(params[pfx + "bq"], 1, Dp),
                             pad2(params[pfx + "bk"], 1, Dp),
                             pad2(params[pfx + "bv"], 1, Dp)], axis=1)
        return w, b

    w_qkv_v, b_qkv_v = pack_qkv("v_")
    w_qkv_s, b_qkv_s = pack_qkv("s_")
    plist = [
        w_qkv_v, b_qkv_v,
        pad2(params["v_wo"], Dp, Dp).astype(matmul_dtype), pad2(params["v_bo"], 1, Dp),
        pad2(params["v_ln_g"], 1, Dp), pad2(params["v_ln_b"], 1, Dp),
        w_qkv_s, b_qkv_s,
        pad2(params["s_wo"], Dp, Dp).astype(matmul_dtype), pad2(params["s_bo"], 1, Dp),
        pad2(params["s_ln_g"], 1, Dp), pad2(params["s_ln_b"], 1, Dp),
        pad2(params["w1"], Dp, FFp).astype(matmul_dtype), pad2(params["b1"], 1, FFp),
        pad2(params["w2"], FFp, Dp).astype(matmul_dtype), pad2(params["b2"], 1, Dp),
        pad2(params["ffn_ln_g"], 1, Dp), pad2(params["ffn_ln_b"], 1, Dp),
    ]

    batched = [tgt_p, pos_p, vis_p, visp_p]

    def batched_spec(a):
        return pl.BlockSpec((Bb,) + a.shape[1:], lambda i: (i, 0, 0))

    def full_spec(a):
        nd = a.ndim
        return pl.BlockSpec(a.shape, lambda i, _nd=nd: (0,) * _nd)

    in_specs = ([batched_spec(a) for a in batched]
                + [full_spec(vmask_i), full_spec(qmask_i)]
                + [full_spec(a) for a in plist])

    # VMEM budget sized from the actual padded footprint (weights + activations
    # + scratch), capped at the smallest physical VMEM across generations.
    param_bytes = sum(int(a.size) * a.dtype.itemsize for a in plist)
    act_bytes = 4 * Bb * (Lqp * Dp * 10 + Lkp * Dp * 6 + Lmax * 3 * Dp + Lqp * FFp)
    vmem_limit = int(min(64 * 1024 * 1024,
                         max(32 * 1024 * 1024,
                             2 * param_bytes + 2 * act_bytes + (8 << 20))))

    kernel = functools.partial(decoder_layer_kernel, nhead=nhead, d_model=D,
                               d_head=Dh)
    out = pl.pallas_call(
        kernel,
        out_shape=jax.ShapeDtypeStruct((B, Lqp, Dp), jnp.float32),
        grid=(batch_blocks,),
        in_specs=in_specs,
        out_specs=pl.BlockSpec((Bb, Lqp, Dp), lambda i: (i, 0, 0)),
        scratch_shapes=[
            pltpu.VMEM((Bb, Lmax, 3 * Dp), jnp.float32),   # packed q|k|v projections
            pltpu.VMEM((Bb, Lqp, Dp), jnp.float32),        # concat(heads) context
        ],
        compiler_params=pltpu.CompilerParams(
            dimension_semantics=("parallel",),
            vmem_limit_bytes=vmem_limit),
    )(tgt_p, pos_p, vis_p, visp_p, vmask_i, qmask_i, *plist)
    return out[:, :Lq, :D]


# ---------------------------------------------------------------------------
# Deterministic parameter init.  Weights stored as (D, D) "x @ W" matrices
# (i.e. transposed nn.MultiheadAttention / nn.Linear weights); per-head blocks
# are contiguous Dh-wide column groups, matching PyTorch's head split.
# ---------------------------------------------------------------------------
def init_params(key, d_model, dim_feedforward, nhead):
    keys = jax.random.split(key, 24)
    ki = iter(keys)

    def w(shape, s=0.1):
        return jax.random.normal(next(ki), shape, jnp.float32) * s

    p = {}
    for pfx in ("v_", "s_"):                 # v_: multihead_attn_v, s_: self_attn
        p[pfx + "wq"] = w((d_model, d_model))
        p[pfx + "wk"] = w((d_model, d_model))
        p[pfx + "wv"] = w((d_model, d_model))
        p[pfx + "bq"] = w((1, d_model), 0.01)
        p[pfx + "bk"] = w((1, d_model), 0.01)
        p[pfx + "bv"] = w((1, d_model), 0.01)
        p[pfx + "wo"] = w((d_model, d_model))
        p[pfx + "bo"] = w((1, d_model), 0.01)
        p[pfx + "ln_g"] = jnp.ones((1, d_model), jnp.float32)
        p[pfx + "ln_b"] = jnp.zeros((1, d_model), jnp.float32)
    p["w1"] = w((d_model, dim_feedforward))
    p["b1"] = w((1, dim_feedforward), 0.01)
    p["w2"] = w((dim_feedforward, d_model))
    p["b2"] = w((1, d_model), 0.01)
    p["ffn_ln_g"] = jnp.ones((1, d_model), jnp.float32)
    p["ffn_ln_b"] = jnp.zeros((1, d_model), jnp.float32)
    return p


# ---------------------------------------------------------------------------
# Pure-JAX reference (standard full-width MHA formulation) for correctness.
# ---------------------------------------------------------------------------
def ref_forward(dec_query_dict, dec_vis_dict, params, nhead):
    p = params
    tgt = dec_query_dict["feat_action"].astype(jnp.float32)
    pos_q = dec_query_dict["pos_enc"].astype(jnp.float32)
    qmask = dec_query_dict["mask"]
    vis = dec_vis_dict["feat"].astype(jnp.float32)
    vis_pos = dec_vis_dict["pos_enc"].astype(jnp.float32)
    vmask = dec_vis_dict["mask"]

    def mha(xq, xk, xv, key_mask, pfx):
        B, Lq, D = xq.shape
        Lk = xk.shape[1]
        H = nhead
        Dh = D // H
        q = (xq @ p[pfx + "wq"] + p[pfx + "bq"]) / math.sqrt(Dh)
        k = xk @ p[pfx + "wk"] + p[pfx + "bk"]
        v = xv @ p[pfx + "wv"] + p[pfx + "bv"]
        q = q.reshape(B, Lq, H, Dh)
        k = k.reshape(B, Lk, H, Dh)
        v = v.reshape(B, Lk, H, Dh)
        s = jnp.einsum('bqhd,bkhd->bhqk', q, k)
        s = s + jnp.where(key_mask, NEG_INF, 0.0)[:, None, None, :]
        a = jax.nn.softmax(s, axis=-1)
        ctx = jnp.einsum('bhqk,bkhd->bqhd', a, v).reshape(B, Lq, D)
        return ctx @ p[pfx + "wo"] + p[pfx + "bo"]

    t = tgt
    t2 = mha(t + pos_q, vis + vis_pos, vis, vmask, "v_")
    t = _layer_norm(t + t2, p["v_ln_g"], p["v_ln_b"])
    qkv = t + pos_q
    t2 = mha(qkv, qkv, qkv, qmask, "s_")
    t = _layer_norm(t + t2, p["s_ln_g"], p["s_ln_b"])
    h = jnp.maximum(t @ p["w1"] + p["b1"], 0.0)
    t2 = h @ p["w2"] + p["b2"]
    t = _layer_norm(t + t2, p["ffn_ln_g"], p["ffn_ln_b"])
    return t


if __name__ == "__main__":
    B, Lq, Lk, D, H, FF = 2, 8, 16, 32, 4, 64

    key = jax.random.PRNGKey(0)
    k = jax.random.split(key, 5)
    tgt = jax.random.normal(k[0], (B, Lq, D), jnp.float32)
    pos_q = jax.random.normal(k[1], (B, Lq, D), jnp.float32)
    vis = jax.random.normal(k[2], (B, Lk, D), jnp.float32)
    vis_pos = jax.random.normal(k[3], (B, Lk, D), jnp.float32)

    # key_padding_mask: True = ignore
    qmask = jnp.zeros((B, Lq), dtype=bool).at[:, Lq - 2:].set(True)
    vmask = jnp.zeros((B, Lk), dtype=bool).at[1, Lk - 4:].set(True)

    params = init_params(k[4], D, FF, H)

    dec_query_dict = {"feat_action": tgt, "pos_enc": pos_q, "mask": qmask}
    dec_vis_dict = {"feat": vis, "pos_enc": vis_pos, "mask": vmask}

    ref = ref_forward(dec_query_dict, dec_vis_dict, params, H)

    # Strict check: f32 matmul path.
    out = transformer_decoder_layer(dec_query_dict, dec_vis_dict, params, H,
                                    matmul_dtype=jnp.float32)
    out = jax.block_until_ready(out)
    assert out.shape == (B, Lq, D)
    err = float(jnp.max(jnp.abs(out - ref)))
    assert jnp.allclose(out, ref, atol=5e-3, rtol=5e-3), (
        f"Pallas kernel (f32) mismatch vs JAX reference (max abs err={err})")

    # Mixed-precision path: bf16 matmul operands, f32 accumulation / LN / softmax.
    out_bf = transformer_decoder_layer(dec_query_dict, dec_vis_dict, params, H,
                                       matmul_dtype=jnp.bfloat16)
    out_bf = jax.block_until_ready(out_bf)
    err_bf = float(jnp.max(jnp.abs(out_bf - ref)))
    assert jnp.allclose(out_bf, ref, atol=5e-2, rtol=5e-2), (
        f"Pallas kernel (bf16) mismatch vs JAX reference (max abs err={err_bf})")

    print("KERNEL_OK")
</pallas_src>

<mosaic_0001>
module attributes {stable_mosaic.version = 11 : i64} {
  func.func @decoder_layer_kernel(%arg0: i32, %arg1: memref<1x8x128xf32, #tpu.memory_space<vmem>>, %arg2: memref<1x8x128xf32, #tpu.memory_space<vmem>>, %arg3: memref<1x16x128xf32, #tpu.memory_space<vmem>>, %arg4: memref<1x16x128xf32, #tpu.memory_space<vmem>>, %arg5: memref<2x16xi32, #tpu.memory_space<vmem>>, %arg6: memref<2x8xi32, #tpu.memory_space<vmem>>, %arg7: memref<128x384xf32, #tpu.memory_space<vmem>>, %arg8: memref<1x384xf32, #tpu.memory_space<vmem>>, %arg9: memref<128x128xf32, #tpu.memory_space<vmem>>, %arg10: memref<1x128xf32, #tpu.memory_space<vmem>>, %arg11: memref<1x128xf32, #tpu.memory_space<vmem>>, %arg12: memref<1x128xf32, #tpu.memory_space<vmem>>, %arg13: memref<128x384xf32, #tpu.memory_space<vmem>>, %arg14: memref<1x384xf32, #tpu.memory_space<vmem>>, %arg15: memref<128x128xf32, #tpu.memory_space<vmem>>, %arg16: memref<1x128xf32, #tpu.memory_space<vmem>>, %arg17: memref<1x128xf32, #tpu.memory_space<vmem>>, %arg18: memref<1x128xf32, #tpu.memory_space<vmem>>, %arg19: memref<128x128xf32, #tpu.memory_space<vmem>>, %arg20: memref<1x128xf32, #tpu.memory_space<vmem>>, %arg21: memref<128x128xf32, #tpu.memory_space<vmem>>, %arg22: memref<1x128xf32, #tpu.memory_space<vmem>>, %arg23: memref<1x128xf32, #tpu.memory_space<vmem>>, %arg24: memref<1x128xf32, #tpu.memory_space<vmem>>, %arg25: memref<1x8x128xf32, #tpu.memory_space<vmem>>, %arg26: memref<1x16x384xf32, #tpu.memory_space<vmem>>, %arg27: memref<1x8x128xf32, #tpu.memory_space<vmem>>) attributes {dimension_semantics = [#tpu.dimension_semantics<parallel>], iteration_bounds = array<i64: 2>, scalar_prefetch = 0 : i64, scratch_operands = 2 : i64, tpu.core_type = #tpu.core_type<tc>, window_params = [{transform_indices = @transform_0, window_bounds = array<i64: 1, 8, 128>}, {transform_indices = @transform_1, window_bounds = array<i64: 1, 8, 128>}, {transform_indices = @transform_2, window_bounds = array<i64: 1, 16, 128>}, {transform_indices = @transform_3, window_bounds = array<i64: 1, 16, 128>}, {pipeline_mode = #tpu.pipeline_mode<synchronous>, transform_indices = @transform_4, window_bounds = array<i64: 2, 16>}, {pipeline_mode = #tpu.pipeline_mode<synchronous>, transform_indices = @transform_5, window_bounds = array<i64: 2, 8>}, {pipeline_mode = #tpu.pipeline_mode<synchronous>, transform_indices = @transform_6, window_bounds = array<i64: 128, 384>}, {pipeline_mode = #tpu.pipeline_mode<synchronous>, transform_indices = @transform_7, window_bounds = array<i64: 1, 384>}, {pipeline_mode = #tpu.pipeline_mode<synchronous>, transform_indices = @transform_8, window_bounds = array<i64: 128, 128>}, {pipeline_mode = #tpu.pipeline_mode<synchronous>, transform_indices = @transform_9, window_bounds = array<i64: 1, 128>}, {pipeline_mode = #tpu.pipeline_mode<synchronous>, transform_indices = @transform_10, window_bounds = array<i64: 1, 128>}, {pipeline_mode = #tpu.pipeline_mode<synchronous>, transform_indices = @transform_11, window_bounds = array<i64: 1, 128>}, {pipeline_mode = #tpu.pipeline_mode<synchronous>, transform_indices = @transform_12, window_bounds = array<i64: 128, 384>}, {pipeline_mode = #tpu.pipeline_mode<synchronous>, transform_indices = @transform_13, window_bounds = array<i64: 1, 384>}, {pipeline_mode = #tpu.pipeline_mode<synchronous>, transform_indices = @transform_14, window_bounds = array<i64: 128, 128>}, {pipeline_mode = #tpu.pipeline_mode<synchronous>, transform_indices = @transform_15, window_bounds = array<i64: 1, 128>}, {pipeline_mode = #tpu.pipeline_mode<synchronous>, transform_indices = @transform_16, window_bounds = array<i64: 1, 128>}, {pipeline_mode = #tpu.pipeline_mode<synchronous>, transform_indices = @transform_17, window_bounds = array<i64: 1, 128>}, {pipeline_mode = #tpu.pipeline_mode<synchronous>, transform_indices = @transform_18, window_bounds = array<i64: 128, 128>}, {pipeline_mode = #tpu.pipeline_mode<synchronous>, transform_indices = @transform_19, window_bounds = array<i64: 1, 128>}, {pipeline_mode = #tpu.pipeline_mode<synchronous>, transform_indices = @transform_20, window_bounds = array<i64: 128, 128>}, {pipeline_mode = #tpu.pipeline_mode<synchronous>, transform_indices = @transform_21, window_bounds = array<i64: 1, 128>}, {pipeline_mode = #tpu.pipeline_mode<synchronous>, transform_indices = @transform_22, window_bounds = array<i64: 1, 128>}, {pipeline_mode = #tpu.pipeline_mode<synchronous>, transform_indices = @transform_23, window_bounds = array<i64: 1, 128>}, {transform_indices = @transform_24, window_bounds = array<i64: 1, 8, 128>}]} {
    %0 = tpu.iota {dimensions = array<i32: 1>} : vector<1x128xi32>
    %c32_i32 = arith.constant 32 : i32
    %1 = vector.broadcast %c32_i32 : i32 to vector<1x128xi32>
    %2 = arith.cmpi slt, %0, %1 : vector<1x128xi32>
    %3 = arith.extui %2 : vector<1x128xi1> to vector<1x128xi32>
    %4 = arith.sitofp %3 : vector<1x128xi32> to vector<1x128xf32>
    %c1_i32 = arith.constant 1 : i32
    %5 = arith.muli %arg0, %c1_i32 : i32
    %6 = arith.index_cast %5 : i32 to index
    %c0 = arith.constant 0 : index
    %7 = vector.load %arg5[%6, %c0] : memref<2x16xi32, #tpu.memory_space<vmem>>, vector<1x16xi32>
    %c0_i32 = arith.constant 0 : i32
    %8 = vector.broadcast %c0_i32 : i32 to vector<1x16xi32>
    %9 = arith.cmpi sgt, %7, %8 : vector<1x16xi32>
    %cst = arith.constant -1.000000e+30 : f32
    %cst_0 = arith.constant 0.000000e+00 : f32
    %10 = vector.broadcast %cst : f32 to vector<1x16xf32>
    %11 = vector.broadcast %cst_0 : f32 to vector<1x16xf32>
    %12 = arith.select %9, %10, %11 : vector<1x16xi1>, vector<1x16xf32>
    %13 = vector.shape_cast %12 : vector<1x16xf32> to vector<1x1x16xf32>
    %c1_i32_1 = arith.constant 1 : i32
    %14 = arith.muli %arg0, %c1_i32_1 : i32
    %15 = arith.index_cast %14 : i32 to index
    %c0_2 = arith.constant 0 : index
    %16 = vector.load %arg6[%15, %c0_2] : memref<2x8xi32, #tpu.memory_space<vmem>>, vector<1x8xi32>
    %c0_i32_3 = arith.constant 0 : i32
    %17 = vector.broadcast %c0_i32_3 : i32 to vector<1x8xi32>
    %18 = arith.cmpi sgt, %16, %17 : vector<1x8xi32>
    %cst_4 = arith.constant -1.000000e+30 : f32
    %cst_5 = arith.constant 0.000000e+00 : f32
    %19 = vector.broadcast %cst_4 : f32 to vector<1x8xf32>
    %20 = vector.broadcast %cst_5 : f32 to vector<1x8xf32>
    %21 = arith.select %18, %19, %20 : vector<1x8xi1>, vector<1x8xf32>
    %22 = vector.shape_cast %21 : vector<1x8xf32> to vector<1x1x8xf32>
    %cst_6 = arith.constant 0.000000e+00 : f32
    %23 = vector.broadcast %cst_6 : f32 to vector<1x8x128xf32>
    %c0_7 = arith.constant 0 : index
    %c0_8 = arith.constant 0 : index
    %c0_9 = arith.constant 0 : index
    %24 = vector.load %arg27[%c0_7, %c0_8, %c0_9] : memref<1x8x128xf32, #tpu.memory_space<vmem>>, vector<1x8x128xf32>
    tpu.vector_store %arg27[%c0_7, %c0_8, %c0_9], %23 {strides = array<i32>} : memref<1x8x128xf32, #tpu.memory_space<vmem>>, vector<1x8x128xf32>,
    %c0_10 = arith.constant 0 : index
    %c0_11 = arith.constant 0 : index
    %c0_12 = arith.constant 0 : index
    %25 = vector.load %arg1[%c0_10, %c0_11, %c0_12] : memref<1x8x128xf32, #tpu.memory_space<vmem>>, vector<1x8x128xf32>
    %26 = vector.shape_cast %25 : vector<1x8x128xf32> to vector<8x128xf32>
    %c0_13 = arith.constant 0 : index
    %c0_14 = arith.constant 0 : index
    %c0_15 = arith.constant 0 : index
    %27 = vector.load %arg2[%c0_13, %c0_14, %c0_15] : memref<1x8x128xf32, #tpu.memory_space<vmem>>, vector<1x8x128xf32>
    %28 = vector.shape_cast %27 : vector<1x8x128xf32> to vector<8x128xf32>
    %c0_16 = arith.constant 0 : index
    %c0_17 = arith.constant 0 : index
    %c0_18 = arith.constant 0 : index
    %29 = vector.load %arg3[%c0_16, %c0_17, %c0_18] : memref<1x16x128xf32, #tpu.memory_space<vmem>>, vector<1x16x128xf32>
    %30 = vector.shape_cast %29 : vector<1x16x128xf32> to vector<16x128xf32>
    %c0_19 = arith.constant 0 : index
    %c0_20 = arith.constant 0 : index
    %c0_21 = arith.constant 0 : index
    %31 = vector.load %arg4[%c0_19, %c0_20, %c0_21] : memref<1x16x128xf32, #tpu.memory_space<vmem>>, vector<1x16x128xf32>
    %32 = vector.shape_cast %31 : vector<1x16x128xf32> to vector<16x128xf32>
    %33 = arith.addf %26, %28 : vector<8x128xf32>
    %34 = arith.addf %30, %32 : vector<16x128xf32>
    %c0_22 = arith.constant 0 : index
    %c0_23 = arith.constant 0 : index
    %35 = vector.load %arg7[%c0_22, %c0_23] : memref<128x384xf32, #tpu.memory_space<vmem>>, vector<128x128xf32>
    %cst_24 = arith.constant dense<0.000000e+00> : vector<8x128xf32>
    %36 = tpu.matmul %33, %35, %cst_24 {dimension_numbers = #tpu.dot_dimension_numbers<[1], [0], [0], [1], [0, 0, 1, 1], [], []>} : vector<8x128xf32>, vector<128x128xf32>, vector<8x128xf32> -> vector<8x128xf32>
    %c0_25 = arith.constant 0 : index
    %c0_26 = arith.constant 0 : index
    %37 = vector.load %arg8[%c0_25, %c0_26] : memref<1x384xf32, #tpu.memory_space<vmem>>, vector<1x128xf32>
    %38 = vector.broadcast %37 : vector<1x128xf32> to vector<8x128xf32>
    %39 = arith.addf %36, %38 : vector<8x128xf32>
    %c0_27 = arith.constant 0 : index
    %c128 = arith.constant 128 : index
    %40 = vector.load %arg7[%c0_27, %c128] : memref<128x384xf32, #tpu.memory_space<vmem>>, vector<128x128xf32>
    %cst_28 = arith.constant dense<0.000000e+00> : vector<16x128xf32>
    %41 = tpu.matmul %34, %40, %cst_28 {dimension_numbers = #tpu.dot_dimension_numbers<[1], [0], [0], [1], [0, 0, 1, 1], [], []>} : vector<16x128xf32>, vector<128x128xf32>, vector<16x128xf32> -> vector<16x128xf32>
    %c0_29 = arith.constant 0 : index
    %c128_30 = arith.constant 128 : index
    %42 = vector.load %arg8[%c0_29, %c128_30] : memref<1x384xf32, #tpu.memory_space<vmem>>, vector<1x128xf32>
    %43 = vector.broadcast %42 : vector<1x128xf32> to vector<16x128xf32>
    %44 = arith.addf %41, %43 : vector<16x128xf32>
    %c0_31 = arith.constant 0 : index
    %c256 = arith.constant 256 : index
    %45 = vector.load %arg7[%c0_31, %c256] : memref<128x384xf32, #tpu.memory_space<vmem>>, vector<128x128xf32>
    %cst_32 = arith.constant dense<0.000000e+00> : vector<16x128xf32>
    %46 = tpu.matmul %30, %45, %cst_32 {dimension_numbers = #tpu.dot_dimension_numbers<[1], [0], [0], [1], [0, 0, 1, 1], [], []>} : vector<16x128xf32>, vector<128x128xf32>, vector<16x128xf32> -> vector<16x128xf32>
    %c0_33 = arith.constant 0 : index
    %c256_34 = arith.constant 256 : index
    %47 = vector.load %arg8[%c0_33, %c256_34] : memref<1x384xf32, #tpu.memory_space<vmem>>, vector<1x128xf32>
    %48 = vector.broadcast %47 : vector<1x128xf32> to vector<16x128xf32>
    %49 = arith.addf %46, %48 : vector<16x128xf32>
    %50 = vector.shape_cast %39 : vector<8x128xf32> to vector<1x8x128xf32>
    %c0_35 = arith.constant 0 : index
    %c0_36 = arith.constant 0 : index
    %c0_37 = arith.constant 0 : index
    %51 = vector.load %arg26[%c0_35, %c0_36, %c0_37] : memref<1x16x384xf32, #tpu.memory_space<vmem>>, vector<1x8x128xf32>
    tpu.vector_store %arg26[%c0_35, %c0_36, %c0_37], %50 {strides = array<i32>} : memref<1x16x384xf32, #tpu.memory_space<vmem>>, vector<1x8x128xf32>,
    %52 = vector.shape_cast %44 : vector<16x128xf32> to vector<1x16x128xf32>
    %c0_38 = arith.constant 0 : index
    %c0_39 = arith.constant 0 : index
    %c128_40 = arith.constant 128 : index
    %53 = vector.load %arg26[%c0_38, %c0_39, %c128_40] : memref<1x16x384xf32, #tpu.memory_space<vmem>>, vector<1x16x128xf32>
    tpu.vector_store %arg26[%c0_38, %c0_39, %c128_40], %52 {strides = array<i32>} : memref<1x16x384xf32, #tpu.memory_space<vmem>>, vector<1x16x128xf32>,
    %54 = vector.shape_cast %49 : vector<16x128xf32> to vector<1x16x128xf32>
    %c0_41 = arith.constant 0 : index
    %c0_42 = arith.constant 0 : index
    %c256_43 = arith.constant 256 : index
    %55 = vector.load %arg26[%c0_41, %c0_42, %c256_43] : memref<1x16x384xf32, #tpu.memory_space<vmem>>, vector<1x16x128xf32>
    tpu.vector_store %arg26[%c0_41, %c0_42, %c256_43], %54 {strides = array<i32>} : memref<1x16x384xf32, #tpu.memory_space<vmem>>, vector<1x16x128xf32>,
    %c0_44 = arith.constant 0 : index
    %c0_45 = arith.constant 0 : index
    %c0_46 = arith.constant 0 : index
    %56 = vector.load %arg26[%c0_44, %c0_45, %c0_46] : memref<1x16x384xf32, #tpu.memory_space<vmem>>, vector<1x8x8xf32>
    %cst_47 = arith.constant 0.353553385 : f32
    %57 = vector.broadcast %cst_47 : f32 to vector<1x8x8xf32>
    %58 = arith.mulf %56, %57 : vector<1x8x8xf32>
    %c0_48 = arith.constant 0 : index
    %c0_49 = arith.constant 0 : index
    %c128_50 = arith.constant 128 : index
    %59 = vector.load %arg26[%c0_48, %c0_49, %c128_50] : memref<1x16x384xf32, #tpu.memory_space<vmem>>, vector<1x16x8xf32>
    %c0_51 = arith.constant 0 : index
    %c0_52 = arith.constant 0 : index
    %c256_53 = arith.constant 256 : index
    %60 = vector.load %arg26[%c0_51, %c0_52, %c256_53] : memref<1x16x384xf32, #tpu.memory_space<vmem>>, vector<1x16x8xf32>
    "tpu.trace_start"() <{level = 10 : i32, message = "bqd,bkd->bqk"}> : () -> ()
    %cst_54 = arith.constant dense<0.000000e+00> : vector<1x8x16xf32>
    %61 = tpu.matmul %58, %59, %cst_54 {dimension_numbers = #tpu.dot_dimension_numbers<[2], [2], [1], [1], [0, 0, 0, 1, 1, 1], [0], [0]>} : vector<1x8x8xf32>, vector<1x16x8xf32>, vector<1x8x16xf32> -> vector<1x8x16xf32>
    "tpu.trace_stop"() : () -> ()
    %62 = vector.broadcast %13 : vector<1x1x16xf32> to vector<1x8x16xf32>
    %63 = arith.addf %61, %62 : vector<1x8x16xf32>
    %cst_55 = arith.constant dense<0xFF800000> : vector<1x8xf32>
    %64 = vector.multi_reduction <maximumf>, %63, %cst_55 [2] : vector<1x8x16xf32> to vector<1x8xf32>
    %65 = vector.shape_cast %64 : vector<1x8xf32> to vector<1x8x1xf32>
    %66 = vector.broadcast %65 : vector<1x8x1xf32> to vector<1x8x16xf32>
    %67 = arith.subf %63, %66 : vector<1x8x16xf32>
    %68 = math.exp %67 : vector<1x8x16xf32>
    %cst_56 = arith.constant dense<0.000000e+00> : vector<1x8xf32>
    %69 = vector.multi_reduction <add>, %68, %cst_56 [2] : vector<1x8x16xf32> to vector<1x8xf32>
    %70 = vector.shape_cast %69 : vector<1x8xf32> to vector<1x8x1xf32>
    %71 = tpu.reciprocal %70 {approx = true} : vector<1x8x1xf32> -> vector<1x8x1xf32>
    %72 = vector.broadcast %71 : vector<1x8x1xf32> to vector<1x8x16xf32>
    %73 = arith.mulf %68, %72 : vector<1x8x16xf32>
    "tpu.trace_start"() <{level = 10 : i32, message = "bqk,bkd->bqd"}> : () -> ()
    %cst_57 = arith.constant dense<0.000000e+00> : vector<1x8x8xf32>
    %74 = tpu.matmul %73, %60, %cst_57 {dimension_numbers = #tpu.dot_dimension_numbers<[2], [1], [1], [2], [0, 0, 0, 1, 1, 2], [0], [0]>} : vector<1x8x16xf32>, vector<1x16x8xf32>, vector<1x8x8xf32> -> vector<1x8x8xf32>
    "tpu.trace_stop"() : () -> ()
    %c0_58 = arith.constant 0 : index
    %c0_59 = arith.constant 0 : index
    %c0_60 = arith.constant 0 : index
    %75 = vector.load %arg27[%c0_58, %c0_59, %c0_60] : memref<1x8x128xf32, #tpu.memory_space<vmem>>, vector<1x8x8xf32>
    tpu.vector_store %arg27[%c0_58, %c0_59, %c0_60], %74 {strides = array<i32>} : memref<1x8x128xf32, #tpu.memory_space<vmem>>, vector<1x8x8xf32>,
    %c0_61 = arith.constant 0 : index
    %c0_62 = arith.constant 0 : index
    %c8 = arith.constant 8 : index
    %76 = vector.load %arg26[%c0_61, %c0_62, %c8] : memref<1x16x384xf32, #tpu.memory_space<vmem>>, vector<1x8x8xf32>
    %cst_63 = arith.constant 0.353553385 : f32
    %77 = vector.broadcast %cst_63 : f32 to vector<1x8x8xf32>
    %78 = arith.mulf %76, %77 : vector<1x8x8xf32>
    %c0_64 = arith.constant 0 : index
    %c0_65 = arith.constant 0 : index
    %c136 = arith.constant 136 : index
    %79 = vector.load %arg26[%c0_64, %c0_65, %c136] : memref<1x16x384xf32, #tpu.memory_space<vmem>>, vector<1x16x8xf32>
    %c0_66 = arith.constant 0 : index
    %c0_67 = arith.constant 0 : index
    %c264 = arith.constant 264 : index
    %80 = vector.load %arg26[%c0_66, %c0_67, %c264] : memref<1x16x384xf32, #tpu.memory_space<vmem>>, vector<1x16x8xf32>
    "tpu.trace_start"() <{level = 10 : i32, message = "bqd,bkd->bqk"}> : () -> ()
    %cst_68 = arith.constant dense<0.000000e+00> : vector<1x8x16xf32>
    %81 = tpu.matmul %78, %79, %cst_68 {dimension_numbers = #tpu.dot_dimension_numbers<[2], [2], [1], [1], [0, 0, 0, 1, 1, 1], [0], [0]>} : vector<1x8x8xf32>, vector<1x16x8xf32>, vector<1x8x16xf32> -> vector<1x8x16xf32>
    "tpu.trace_stop"() : () -> ()
    %82 = vector.broadcast %13 : vector<1x1x16xf32> to vector<1x8x16xf32>
    %83 = arith.addf %81, %82 : vector<1x8x16xf32>
    %cst_69 = arith.constant dense<0xFF800000> : vector<1x8xf32>
    %84 = vector.multi_reduction <maximumf>, %83, %cst_69 [2] : vector<1x8x16xf32> to vector<1x8xf32>
    %85 = vector.shape_cast %84 : vector<1x8xf32> to vector<1x8x1xf32>
    %86 = vector.broadcast %85 : vector<1x8x1xf32> to vector<1x8x16xf32>
    %87 = arith.subf %83, %86 : vector<1x8x16xf32>
    %88 = math.exp %87 : vector<1x8x16xf32>
    %cst_70 = arith.constant dense<0.000000e+00> : vector<1x8xf32>
    %89 = vector.multi_reduction <add>, %88, %cst_70 [2] : vector<1x8x16xf32> to vector<1x8xf32>
    %90 = vector.shape_cast %89 : vector<1x8xf32> to vector<1x8x1xf32>
    %91 = tpu.reciprocal %90 {approx = true} : vector<1x8x1xf32> -> vector<1x8x1xf32>
    %92 = vector.broadcast %91 : vector<1x8x1xf32> to vector<1x8x16xf32>
    %93 = arith.mulf %88, %92 : vector<1x8x16xf32>
    "tpu.trace_start"() <{level = 10 : i32, message = "bqk,bkd->bqd"}> : () -> ()
    %cst_71 = arith.constant dense<0.000000e+00> : vector<1x8x8xf32>
    %94 = tpu.matmul %93, %80, %cst_71 {dimension_numbers = #tpu.dot_dimension_numbers<[2], [1], [1], [2], [0, 0, 0, 1, 1, 2], [0], [0]>} : vector<1x8x16xf32>, vector<1x16x8xf32>, vector<1x8x8xf32> -> vector<1x8x8xf32>
    "tpu.trace_stop"() : () -> ()
    %c0_72 = arith.constant 0 : index
    %c0_73 = arith.constant 0 : index
    %c8_74 = arith.constant 8 : index
    %95 = vector.load %arg27[%c0_72, %c0_73, %c8_74] : memref<1x8x128xf32, #tpu.memory_space<vmem>>, vector<1x8x8xf32>
    tpu.vector_store %arg27[%c0_72, %c0_73, %c8_74], %94 {strides = array<i32>} : memref<1x8x128xf32, #tpu.memory_space<vmem>>, vector<1x8x8xf32>,
    %c0_75 = arith.constant 0 : index
    %c0_76 = arith.constant 0 : index
    %c16 = arith.constant 16 : index
    %96 = vector.load %arg26[%c0_75, %c0_76, %c16] : memref<1x16x384xf32, #tpu.memory_space<vmem>>, vector<1x8x8xf32>
    %cst_77 = arith.constant 0.353553385 : f32
    %97 = vector.broadcast %cst_77 : f32 to vector<1x8x8xf32>
    %98 = arith.mulf %96, %97 : vector<1x8x8xf32>
    %c0_78 = arith.constant 0 : index
    %c0_79 = arith.constant 0 : index
    %c144 = arith.constant 144 : index
    %99 = vector.load %arg26[%c0_78, %c0_79, %c144] : memref<1x16x384xf32, #tpu.memory_space<vmem>>, vector<1x16x8xf32>
    %c0_80 = arith.constant 0 : index
    %c0_81 = arith.constant 0 : index
    %c272 = arith.constant 272 : index
    %100 = vector.load %arg26[%c0_80, %c0_81, %c272] : memref<1x16x384xf32, #tpu.memory_space<vmem>>, vector<1x16x8xf32>
    "tpu.trace_start"() <{level = 10 : i32, message = "bqd,bkd->bqk"}> : () -> ()
    %cst_82 = arith.constant dense<0.000000e+00> : vector<1x8x16xf32>
    %101 = tpu.matmul %98, %99, %cst_82 {dimension_numbers = #tpu.dot_dimension_numbers<[2], [2], [1], [1], [0, 0, 0, 1, 1, 1], [0], [0]>} : vector<1x8x8xf32>, vector<1x16x8xf32>, vector<1x8x16xf32> -> vector<1x8x16xf32>
    "tpu.trace_stop"() : () -> ()
    %102 = vector.broadcast %13 : vector<1x1x16xf32> to vector<1x8x16xf32>
    %103 = arith.addf %101, %102 : vector<1x8x16xf32>
    %cst_83 = arith.constant dense<0xFF800000> : vector<1x8xf32>
    %104 = vector.multi_reduction <maximumf>, %103, %cst_83 [2] : vector<1x8x16xf32> to vector<1x8xf32>
    %105 = vector.shape_cast %104 : vector<1x8xf32> to vector<1x8x1xf32>
    %106 = vector.broadcast %105 : vector<1x8x1xf32> to vector<1x8x16xf32>
    %107 = arith.subf %103, %106 : vector<1x8x16xf32>
    %108 = math.exp %107 : vector<1x8x16xf32>
    %cst_84 = arith.constant dense<0.000000e+00> : vector<1x8xf32>
    %109 = vector.multi_reduction <add>, %108, %cst_84 [2] : vector<1x8x16xf32> to vector<1x8xf32>
    %110 = vector.shape_cast %109 : vector<1x8xf32> to vector<1x8x1xf32>
    %111 = tpu.reciprocal %110 {approx = true} : vector<1x8x1xf32> -> vector<1x8x1xf32>
    %112 = vector.broadcast %111 : vector<1x8x1xf32> to vector<1x8x16xf32>
    %113 = arith.mulf %108, %112 : vector<1x8x16xf32>
    "tpu.trace_start"() <{level = 10 : i32, message = "bqk,bkd->bqd"}> : () -> ()
    %cst_85 = arith.constant dense<0.000000e+00> : vector<1x8x8xf32>
    %114 = tpu.matmul %113, %100, %cst_85 {dimension_numbers = #tpu.dot_dimension_numbers<[2], [1], [1], [2], [0, 0, 0, 1, 1, 2], [0], [0]>} : vector<1x8x16xf32>, vector<1x16x8xf32>, vector<1x8x8xf32> -> vector<1x8x8xf32>
    "tpu.trace_stop"() : () -> ()
    %c0_86 = arith.constant 0 : index
    %c0_87 = arith.constant 0 : index
    %c16_88 = arith.constant 16 : index
    %115 = vector.load %arg27[%c0_86, %c0_87, %c16_88] : memref<1x8x128xf32, #tpu.memory_space<vmem>>, vector<1x8x8xf32>
    tpu.vector_store %arg27[%c0_86, %c0_87, %c16_88], %114 {strides = array<i32>} : memref<1x8x128xf32, #tpu.memory_space<vmem>>, vector<1x8x8xf32>,
    %c0_89 = arith.constant 0 : index
    %c0_90 = arith.constant 0 : index
    %c24 = arith.constant 24 : index
    %116 = vector.load %arg26[%c0_89, %c0_90, %c24] : memref<1x16x384xf32, #tpu.memory_space<vmem>>, vector<1x8x8xf32>
    %cst_91 = arith.constant 0.353553385 : f32
    %117 = vector.broadcast %cst_91 : f32 to vector<1x8x8xf32>
    %118 = arith.mulf %116, %117 : vector<1x8x8xf32>
    %c0_92 = arith.constant 0 : index
    %c0_93 = arith.constant 0 : index
    %c152 = arith.constant 152 : index
    %119 = vector.load %arg26[%c0_92, %c0_93, %c152] : memref<1x16x384xf32, #tpu.memory_space<vmem>>, vector<1x16x8xf32>
    %c0_94 = arith.constant 0 : index
    %c0_95 = arith.constant 0 : index
    %c280 = arith.constant 280 : index
    %120 = vector.load %arg26[%c0_94, %c0_95, %c280] : memref<1x16x384xf32, #tpu.memory_space<vmem>>, vector<1x16x8xf32>
    "tpu.trace_start"() <{level = 10 : i32, message = "bqd,bkd->bqk"}> : () -> ()
    %cst_96 = arith.constant dense<0.000000e+00> : vector<1x8x16xf32>
    %121 = tpu.matmul %118, %119, %cst_96 {dimension_numbers = #tpu.dot_dimension_numbers<[2], [2], [1], [1], [0, 0, 0, 1, 1, 1], [0], [0]>} : vector<1x8x8xf32>, vector<1x16x8xf32>, vector<1x8x16xf32> -> vector<1x8x16xf32>
    "tpu.trace_stop"() : () -> ()
    %122 = vector.broadcast %13 : vector<1x1x16xf32> to vector<1x8x16xf32>
    %123 = arith.addf %121, %122 : vector<1x8x16xf32>
    %cst_97 = arith.constant dense<0xFF800000> : vector<1x8xf32>
    %124 = vector.multi_reduction <maximumf>, %123, %cst_97 [2] : vector<1x8x16xf32> to vector<1x8xf32>
    %125 = vector.shape_cast %124 : vector<1x8xf32> to vector<1x8x1xf32>
    %126 = vector.broadcast %125 : vector<1x8x1xf32> to vector<1x8x16xf32>
    %127 = arith.subf %123, %126 : vector<1x8x16xf32>
    %128 = math.exp %127 : vector<1x8x16xf32>
    %cst_98 = arith.constant dense<0.000000e+00> : vector<1x8xf32>
    %129 = vector.multi_reduction <add>, %128, %cst_98 [2] : vector<1x8x16xf32> to vector<1x8xf32>
    %130 = vector.shape_cast %129 : vector<1x8xf32> to vector<1x8x1xf32>
    %131 = tpu.reciprocal %130 {approx = true} : vector<1x8x1xf32> -> vector<1x8x1xf32>
    %132 = vector.broadcast %131 : vector<1x8x1xf32> to vector<1x8x16xf32>
    %133 = arith.mulf %128, %132 : vector<1x8x16xf32>
    "tpu.trace_start"() <{level = 10 : i32, message = "bqk,bkd->bqd"}> : () -> ()
    %cst_99 = arith.constant dense<0.000000e+00> : vector<1x8x8xf32>
    %134 = tpu.matmul %133, %120, %cst_99 {dimension_numbers = #tpu.dot_dimension_numbers<[2], [1], [1], [2], [0, 0, 0, 1, 1, 2], [0], [0]>} : vector<1x8x16xf32>, vector<1x16x8xf32>, vector<1x8x8xf32> -> vector<1x8x8xf32>
    "tpu.trace_stop"() : () -> ()
    %c0_100 = arith.constant 0 : index
    %c0_101 = arith.constant 0 : index
    %c24_102 = arith.constant 24 : index
    %135 = vector.load %arg27[%c0_100, %c0_101, %c24_102] : memref<1x8x128xf32, #tpu.memory_space<vmem>>, vector<1x8x8xf32>
    tpu.vector_store %arg27[%c0_100, %c0_101, %c24_102], %134 {strides = array<i32>} : memref<1x8x128xf32, #tpu.memory_space<vmem>>, vector<1x8x8xf32>,
    %c0_103 = arith.constant 0 : index
    %c0_104 = arith.constant 0 : index
    %c0_105 = arith.constant 0 : index
    %136 = vector.load %arg27[%c0_103, %c0_104, %c0_105] : memref<1x8x128xf32, #tpu.memory_space<vmem>>, vector<1x8x128xf32>
    %137 = vector.shape_cast %136 : vector<1x8x128xf32> to vector<8x128xf32>
    %c0_106 = arith.constant 0 : index
    %c0_107 = arith.constant 0 : index
    %138 = vector.load %arg9[%c0_106, %c0_107] : memref<128x128xf32, #tpu.memory_space<vmem>>, vector<128x128xf32>
    %cst_108 = arith.constant dense<0.000000e+00> : vector<8x128xf32>
    %139 = tpu.matmul %137, %138, %cst_108 {dimension_numbers = #tpu.dot_dimension_numbers<[1], [0], [0], [1], [0, 0, 1, 1], [], []>} : vector<8x128xf32>, vector<128x128xf32>, vector<8x128xf32> -> vector<8x128xf32>
    %c0_109 = arith.constant 0 : index
    %c0_110 = arith.constant 0 : index
    %140 = vector.load %arg10[%c0_109, %c0_110] : memref<1x128xf32, #tpu.memory_space<vmem>>, vector<1x128xf32>
    %141 = vector.broadcast %140 : vector<1x128xf32> to vector<8x128xf32>
    %142 = arith.addf %139, %141 : vector<8x128xf32>
    %143 = arith.addf %26, %142 : vector<8x128xf32>
    %144 = vector.broadcast %4 : vector<1x128xf32> to vector<8x128xf32>
    %145 = arith.mulf %143, %144 : vector<8x128xf32>
    %cst_111 = arith.constant dense<0.000000e+00> : vector<8xf32>
    %146 = vector.multi_reduction <add>, %145, %cst_111 [1] : vector<8x128xf32> to vector<8xf32>
    %147 = vector.shape_cast %146 : vector<8xf32> to vector<8x1xf32>
    %cst_112 = arith.constant 3.125000e-02 : f32
    %148 = vector.broadcast %cst_112 : f32 to vector<8x1xf32>
    %149 = arith.mulf %147, %148 : vector<8x1xf32>
    %150 = vector.broadcast %149 : vector<8x1xf32> to vector<8x128xf32>
    %151 = arith.subf %143, %150 : vector<8x128xf32>
    %152 = vector.broadcast %4 : vector<1x128xf32> to vector<8x128xf32>
    %153 = arith.mulf %151, %152 : vector<8x128xf32>
    %154 = arith.mulf %153, %153 : vector<8x128xf32>
    %cst_113 = arith.constant dense<0.000000e+00> : vector<8xf32>
    %155 = vector.multi_reduction <add>, %154, %cst_113 [1] : vector<8x128xf32> to vector<8xf32>
    %156 = vector.shape_cast %155 : vector<8xf32> to vector<8x1xf32>
    %cst_114 = arith.constant 3.125000e-02 : f32
    %157 = vector.broadcast %cst_114 : f32 to vector<8x1xf32>
    %158 = arith.mulf %156, %157 : vector<8x1xf32>
    %cst_115 = arith.constant 9.99999974E-6 : f32
    %159 = vector.broadcast %cst_115 : f32 to vector<8x1xf32>
    %160 = arith.addf %158, %159 : vector<8x1xf32>
    %161 = math.rsqrt %160 : vector<8x1xf32>
    %162 = vector.broadcast %161 : vector<8x1xf32> to vector<8x128xf32>
    %163 = arith.mulf %153, %162 : vector<8x128xf32>
    %c0_116 = arith.constant 0 : index
    %c0_117 = arith.constant 0 : index
    %164 = vector.load %arg11[%c0_116, %c0_117] : memref<1x128xf32, #tpu.memory_space<vmem>>, vector<1x128xf32>
    %165 = vector.broadcast %164 : vector<1x128xf32> to vector<8x128xf32>
    %166 = arith.mulf %163, %165 : vector<8x128xf32>
    %c0_118 = arith.constant 0 : index
    %c0_119 = arith.constant 0 : index
    %167 = vector.load %arg12[%c0_118, %c0_119] : memref<1x128xf32, #tpu.memory_space<vmem>>, vector<1x128xf32>
    %168 = vector.broadcast %167 : vector<1x128xf32> to vector<8x128xf32>
    %169 = arith.addf %166, %168 : vector<8x128xf32>
    %170 = arith.addf %169, %28 : vector<8x128xf32>
    %c0_120 = arith.constant 0 : index
    %c0_121 = arith.constant 0 : index
    %171 = vector.load %arg13[%c0_120, %c0_121] : memref<128x384xf32, #tpu.memory_space<vmem>>, vector<128x384xf32>
    %cst_122 = arith.constant dense<0.000000e+00> : vector<8x384xf32>
    %172 = tpu.matmul %170, %171, %cst_122 {dimension_numbers = #tpu.dot_dimension_numbers<[1], [0], [0], [1], [0, 0, 1, 1], [], []>} : vector<8x128xf32>, vector<128x384xf32>, vector<8x384xf32> -> vector<8x384xf32>
    %c0_123 = arith.constant 0 : index
    %c0_124 = arith.constant 0 : index
    %173 = vector.load %arg14[%c0_123, %c0_124] : memref<1x384xf32, #tpu.memory_space<vmem>>, vector<1x384xf32>
    %174 = vector.broadcast %173 : vector<1x384xf32> to vector<8x384xf32>
    %175 = arith.addf %172, %174 : vector<8x384xf32>
    %176 = vector.shape_cast %175 : vector<8x384xf32> to vector<1x8x384xf32>
    %c0_125 = arith.constant 0 : index
    %c0_126 = arith.constant 0 : index
    %c0_127 = arith.constant 0 : index
    %177 = vector.load %arg26[%c0_125, %c0_126, %c0_127] : memref<1x16x384xf32, #tpu.memory_space<vmem>>, vector<1x8x384xf32>
    tpu.vector_store %arg26[%c0_125, %c0_126, %c0_127], %176 {strides = array<i32>} : memref<1x16x384xf32, #tpu.memory_space<vmem>>, vector<1x8x384xf32>,
    %c0_128 = arith.constant 0 : index
    %c0_129 = arith.constant 0 : index
    %c0_130 = arith.constant 0 : index
    %178 = vector.load %arg26[%c0_128, %c0_129, %c0_130] : memref<1x16x384xf32, #tpu.memory_space<vmem>>, vector<1x8x8xf32>
    %cst_131 = arith.constant 0.353553385 : f32
    %179 = vector.broadcast %cst_131 : f32 to vector<1x8x8xf32>
    %180 = arith.mulf %178, %179 : vector<1x8x8xf32>
    %c0_132 = arith.constant 0 : index
    %c0_133 = arith.constant 0 : index
    %c128_134 = arith.constant 128 : index
    %181 = vector.load %arg26[%c0_132, %c0_133, %c128_134] : memref<1x16x384xf32, #tpu.memory_space<vmem>>, vector<1x8x8xf32>
    %c0_135 = arith.constant 0 : index
    %c0_136 = arith.constant 0 : index
    %c256_137 = arith.constant 256 : index
    %182 = vector.load %arg26[%c0_135, %c0_136, %c256_137] : memref<1x16x384xf32, #tpu.memory_space<vmem>>, vector<1x8x8xf32>
    "tpu.trace_start"() <{level = 10 : i32, message = "bqd,bkd->bqk"}> : () -> ()
    %cst_138 = arith.constant dense<0.000000e+00> : vector<1x8x8xf32>
    %183 = tpu.matmul %180, %181, %cst_138 {dimension_numbers = #tpu.dot_dimension_numbers<[2], [2], [1], [1], [0, 0, 0, 1, 1, 1], [0], [0]>} : vector<1x8x8xf32>, vector<1x8x8xf32>, vector<1x8x8xf32> -> vector<1x8x8xf32>
    "tpu.trace_stop"() : () -> ()
    %184 = vector.broadcast %22 : vector<1x1x8xf32> to vector<1x8x8xf32>
    %185 = arith.addf %183, %184 : vector<1x8x8xf32>
    %cst_139 = arith.constant dense<0xFF800000> : vector<1x8xf32>
    %186 = vector.multi_reduction <maximumf>, %185, %cst_139 [2] : vector<1x8x8xf32> to vector<1x8xf32>
    %187 = vector.shape_cast %186 : vector<1x8xf32> to vector<1x8x1xf32>
    %188 = vector.broadcast %187 : vector<1x8x1xf32> to vector<1x8x8xf32>
    %189 = arith.subf %185, %188 : vector<1x8x8xf32>
    %190 = math.exp %189 : vector<1x8x8xf32>
    %cst_140 = arith.constant dense<0.000000e+00> : vector<1x8xf32>
    %191 = vector.multi_reduction <add>, %190, %cst_140 [2] : vector<1x8x8xf32> to vector<1x8xf32>
    %192 = vector.shape_cast %191 : vector<1x8xf32> to vector<1x8x1xf32>
    %193 = tpu.reciprocal %192 {approx = true} : vector<1x8x1xf32> -> vector<1x8x1xf32>
    %194 = vector.broadcast %193 : vector<1x8x1xf32> to vector<1x8x8xf32>
    %195 = arith.mulf %190, %194 : vector<1x8x8xf32>
    "tpu.trace_start"() <{level = 10 : i32, message = "bqk,bkd->bqd"}> : () -> ()
    %cst_141 = arith.constant dense<0.000000e+00> : vector<1x8x8xf32>
    %196 = tpu.matmul %195, %182, %cst_141 {dimension_numbers = #tpu.dot_dimension_numbers<[2], [1], [1], [2], [0, 0, 0, 1, 1, 2], [0], [0]>} : vector<1x8x8xf32>, vector<1x8x8xf32>, vector<1x8x8xf32> -> vector<1x8x8xf32>
    "tpu.trace_stop"() : () -> ()
    %c0_142 = arith.constant 0 : index
    %c0_143 = arith.constant 0 : index
    %c0_144 = arith.constant 0 : index
    %197 = vector.load %arg27[%c0_142, %c0_143, %c0_144] : memref<1x8x128xf32, #tpu.memory_space<vmem>>, vector<1x8x8xf32>
    tpu.vector_store %arg27[%c0_142, %c0_143, %c0_144], %196 {strides = array<i32>} : memref<1x8x128xf32, #tpu.memory_space<vmem>>, vector<1x8x8xf32>,
    %c0_145 = arith.constant 0 : index
    %c0_146 = arith.constant 0 : index
    %c8_147 = arith.constant 8 : index
    %198 = vector.load %arg26[%c0_145, %c0_146, %c8_147] : memref<1x16x384xf32, #tpu.memory_space<vmem>>, vector<1x8x8xf32>
    %cst_148 = arith.constant 0.353553385 : f32
    %199 = vector.broadcast %cst_148 : f32 to vector<1x8x8xf32>
    %200 = arith.mulf %198, %199 : vector<1x8x8xf32>
    %c0_149 = arith.constant 0 : index
    %c0_150 = arith.constant 0 : index
    %c136_151 = arith.constant 136 : index
    %201 = vector.load %arg26[%c0_149, %c0_150, %c136_151] : memref<1x16x384xf32, #tpu.memory_space<vmem>>, vector<1x8x8xf32>
    %c0_152 = arith.constant 0 : index
    %c0_153 = arith.constant 0 : index
    %c264_154 = arith.constant 264 : index
    %202 = vector.load %arg26[%c0_152, %c0_153, %c264_154] : memref<1x16x384xf32, #tpu.memory_space<vmem>>, vector<1x8x8xf32>
    "tpu.trace_start"() <{level = 10 : i32, message = "bqd,bkd->bqk"}> : () -> ()
    %cst_155 = arith.constant dense<0.000000e+00> : vector<1x8x8xf32>
    %203 = tpu.matmul %200, %201, %cst_155 {dimension_numbers = #tpu.dot_dimension_numbers<[2], [2], [1], [1], [0, 0, 0, 1, 1, 1], [0], [0]>} : vector<1x8x8xf32>, vector<1x8x8xf32>, vector<1x8x8xf32> -> vector<1x8x8xf32>
    "tpu.trace_stop"() : () -> ()
    %204 = vector.broadcast %22 : vector<1x1x8xf32> to vector<1x8x8xf32>
    %205 = arith.addf %203, %204 : vector<1x8x8xf32>
    %cst_156 = arith.constant dense<0xFF800000> : vector<1x8xf32>
    %206 = vector.multi_reduction <maximumf>, %205, %cst_156 [2] : vector<1x8x8xf32> to vector<1x8xf32>
    %207 = vector.shape_cast %206 : vector<1x8xf32> to vector<1x8x1xf32>
    %208 = vector.broadcast %207 : vector<1x8x1xf32> to vector<1x8x8xf32>
    %209 = arith.subf %205, %208 : vector<1x8x8xf32>
    %210 = math.exp %209 : vector<1x8x8xf32>
    %cst_157 = arith.constant dense<0.000000e+00> : vector<1x8xf32>
    %211 = vector.multi_reduction <add>, %210, %cst_157 [2] : vector<1x8x8xf32> to vector<1x8xf32>
    %212 = vector.shape_cast %211 : vector<1x8xf32> to vector<1x8x1xf32>
    %213 = tpu.reciprocal %212 {approx = true} : vector<1x8x1xf32> -> vector<1x8x1xf32>
    %214 = vector.broadcast %213 : vector<1x8x1xf32> to vector<1x8x8xf32>
    %215 = arith.mulf %210, %214 : vector<1x8x8xf32>
    "tpu.trace_start"() <{level = 10 : i32, message = "bqk,bkd->bqd"}> : () -> ()
    %cst_158 = arith.constant dense<0.000000e+00> : vector<1x8x8xf32>
    %216 = tpu.matmul %215, %202, %cst_158 {dimension_numbers = #tpu.dot_dimension_numbers<[2], [1], [1], [2], [0, 0, 0, 1, 1, 2], [0], [0]>} : vector<1x8x8xf32>, vector<1x8x8xf32>, vector<1x8x8xf32> -> vector<1x8x8xf32>
    "tpu.trace_stop"() : () -> ()
    %c0_159 = arith.constant 0 : index
    %c0_160 = arith.constant 0 : index
    %c8_161 = arith.constant 8 : index
    %217 = vector.load %arg27[%c0_159, %c0_160, %c8_161] : memref<1x8x128xf32, #tpu.memory_space<vmem>>, vector<1x8x8xf32>
    tpu.vector_store %arg27[%c0_159, %c0_160, %c8_161], %216 {strides = array<i32>} : memref<1x8x128xf32, #tpu.memory_space<vmem>>, vector<1x8x8xf32>,
    %c0_162 = arith.constant 0 : index
    %c0_163 = arith.constant 0 : index
    %c16_164 = arith.constant 16 : index
    %218 = vector.load %arg26[%c0_162, %c0_163, %c16_164] : memref<1x16x384xf32, #tpu.memory_space<vmem>>, vector<1x8x8xf32>
    %cst_165 = arith.constant 0.353553385 : f32
    %219 = vector.broadcast %cst_165 : f32 to vector<1x8x8xf32>
    %220 = arith.mulf %218, %219 : vector<1x8x8xf32>
    %c0_166 = arith.constant 0 : index
    %c0_167 = arith.constant 0 : index
    %c144_168 = arith.constant 144 : index
    %221 = vector.load %arg26[%c0_166, %c0_167, %c144_168] : memref<1x16x384xf32, #tpu.memory_space<vmem>>, vector<1x8x8xf32>
    %c0_169 = arith.constant 0 : index
    %c0_170 = arith.constant 0 : index
    %c272_171 = arith.constant 272 : index
    %222 = vector.load %arg26[%c0_169, %c0_170, %c272_171] : memref<1x16x384xf32, #tpu.memory_space<vmem>>, vector<1x8x8xf32>
    "tpu.trace_start"() <{level = 10 : i32, message = "bqd,bkd->bqk"}> : () -> ()
    %cst_172 = arith.constant dense<0.000000e+00> : vector<1x8x8xf32>
    %223 = tpu.matmul %220, %221, %cst_172 {dimension_numbers = #tpu.dot_dimension_numbers<[2], [2], [1], [1], [0, 0, 0, 1, 1, 1], [0], [0]>} : vector<1x8x8xf32>, vector<1x8x8xf32>, vector<1x8x8xf32> -> vector<1x8x8xf32>
    "tpu.trace_stop"() : () -> ()
    %224 = vector.broadcast %22 : vector<1x1x8xf32> to vector<1x8x8xf32>
    %225 = arith.addf %223, %224 : vector<1x8x8xf32>
    %cst_173 = arith.constant dense<0xFF800000> : vector<1x8xf32>
    %226 = vector.multi_reduction <maximumf>, %225, %cst_173 [2] : vector<1x8x8xf32> to vector<1x8xf32>
    %227 = vector.shape_cast %226 : vector<1x8xf32> to vector<1x8x1xf32>
    %228 = vector.broadcast %227 : vector<1x8x1xf32> to vector<1x8x8xf32>
    %229 = arith.subf %225, %228 : vector<1x8x8xf32>
    %230 = math.exp %229 : vector<1x8x8xf32>
    %cst_174 = arith.constant dense<0.000000e+00> : vector<1x8xf32>
    %231 = vector.multi_reduction <add>, %230, %cst_174 [2] : vector<1x8x8xf32> to vector<1x8xf32>
    %232 = vector.shape_cast %231 : vector<1x8xf32> to vector<1x8x1xf32>
    %233 = tpu.reciprocal %232 {approx = true} : vector<1x8x1xf32> -> vector<1x8x1xf32>
    %234 = vector.broadcast %233 : vector<1x8x1xf32> to vector<1x8x8xf32>
    %235 = arith.mulf %230, %234 : vector<1x8x8xf32>
    "tpu.trace_start"() <{level = 10 : i32, message = "bqk,bkd->bqd"}> : () -> ()
    %cst_175 = arith.constant dense<0.000000e+00> : vector<1x8x8xf32>
    %236 = tpu.matmul %235, %222, %cst_175 {dimension_numbers = #tpu.dot_dimension_numbers<[2], [1], [1], [2], [0, 0, 0, 1, 1, 2], [0], [0]>} : vector<1x8x8xf32>, vector<1x8x8xf32>, vector<1x8x8xf32> -> vector<1x8x8xf32>
    "tpu.trace_stop"() : () -> ()
    %c0_176 = arith.constant 0 : index
    %c0_177 = arith.constant 0 : index
    %c16_178 = arith.constant 16 : index
    %237 = vector.load %arg27[%c0_176, %c0_177, %c16_178] : memref<1x8x128xf32, #tpu.memory_space<vmem>>, vector<1x8x8xf32>
    tpu.vector_store %arg27[%c0_176, %c0_177, %c16_178], %236 {strides = array<i32>} : memref<1x8x128xf32, #tpu.memory_space<vmem>>, vector<1x8x8xf32>,
    %c0_179 = arith.constant 0 : index
    %c0_180 = arith.constant 0 : index
    %c24_181 = arith.constant 24 : index
    %238 = vector.load %arg26[%c0_179, %c0_180, %c24_181] : memref<1x16x384xf32, #tpu.memory_space<vmem>>, vector<1x8x8xf32>
    %cst_182 = arith.constant 0.353553385 : f32
    %239 = vector.broadcast %cst_182 : f32 to vector<1x8x8xf32>
    %240 = arith.mulf %238, %239 : vector<1x8x8xf32>
    %c0_183 = arith.constant 0 : index
    %c0_184 = arith.constant 0 : index
    %c152_185 = arith.constant 152 : index
    %241 = vector.load %arg26[%c0_183, %c0_184, %c152_185] : memref<1x16x384xf32, #tpu.memory_space<vmem>>, vector<1x8x8xf32>
    %c0_186 = arith.constant 0 : index
    %c0_187 = arith.constant 0 : index
    %c280_188 = arith.constant 280 : index
    %242 = vector.load %arg26[%c0_186, %c0_187, %c280_188] : memref<1x16x384xf32, #tpu.memory_space<vmem>>, vector<1x8x8xf32>
    "tpu.trace_start"() <{level = 10 : i32, message = "bqd,bkd->bqk"}> : () -> ()
    %cst_189 = arith.constant dense<0.000000e+00> : vector<1x8x8xf32>
    %243 = tpu.matmul %240, %241, %cst_189 {dimension_numbers = #tpu.dot_dimension_numbers<[2], [2], [1], [1], [0, 0, 0, 1, 1, 1], [0], [0]>} : vector<1x8x8xf32>, vector<1x8x8xf32>, vector<1x8x8xf32> -> vector<1x8x8xf32>
    "tpu.trace_stop"() : () -> ()
    %244 = vector.broadcast %22 : vector<1x1x8xf32> to vector<1x8x8xf32>
    %245 = arith.addf %243, %244 : vector<1x8x8xf32>
    %cst_190 = arith.constant dense<0xFF800000> : vector<1x8xf32>
    %246 = vector.multi_reduction <maximumf>, %245, %cst_190 [2] : vector<1x8x8xf32> to vector<1x8xf32>
    %247 = vector.shape_cast %246 : vector<1x8xf32> to vector<1x8x1xf32>
    %248 = vector.broadcast %247 : vector<1x8x1xf32> to vector<1x8x8xf32>
    %249 = arith.subf %245, %248 : vector<1x8x8xf32>
    %250 = math.exp %249 : vector<1x8x8xf32>
    %cst_191 = arith.constant dense<0.000000e+00> : vector<1x8xf32>
    %251 = vector.multi_reduction <add>, %250, %cst_191 [2] : vector<1x8x8xf32> to vector<1x8xf32>
    %252 = vector.shape_cast %251 : vector<1x8xf32> to vector<1x8x1xf32>
    %253 = tpu.reciprocal %252 {approx = true} : vector<1x8x1xf32> -> vector<1x8x1xf32>
    %254 = vector.broadcast %253 : vector<1x8x1xf32> to vector<1x8x8xf32>
    %255 = arith.mulf %250, %254 : vector<1x8x8xf32>
    "tpu.trace_start"() <{level = 10 : i32, message = "bqk,bkd->bqd"}> : () -> ()
    %cst_192 = arith.constant dense<0.000000e+00> : vector<1x8x8xf32>
    %256 = tpu.matmul %255, %242, %cst_192 {dimension_numbers = #tpu.dot_dimension_numbers<[2], [1], [1], [2], [0, 0, 0, 1, 1, 2], [0], [0]>} : vector<1x8x8xf32>, vector<1x8x8xf32>, vector<1x8x8xf32> -> vector<1x8x8xf32>
    "tpu.trace_stop"() : () -> ()
    %c0_193 = arith.constant 0 : index
    %c0_194 = arith.constant 0 : index
    %c24_195 = arith.constant 24 : index
    %257 = vector.load %arg27[%c0_193, %c0_194, %c24_195] : memref<1x8x128xf32, #tpu.memory_space<vmem>>, vector<1x8x8xf32>
    tpu.vector_store %arg27[%c0_193, %c0_194, %c24_195], %256 {strides = array<i32>} : memref<1x8x128xf32, #tpu.memory_space<vmem>>, vector<1x8x8xf32>,
    %c0_196 = arith.constant 0 : index
    %c0_197 = arith.constant 0 : index
    %c0_198 = arith.constant 0 : index
    %258 = vector.load %arg27[%c0_196, %c0_197, %c0_198] : memref<1x8x128xf32, #tpu.memory_space<vmem>>, vector<1x8x128xf32>
    %259 = vector.shape_cast %258 : vector<1x8x128xf32> to vector<8x128xf32>
    %c0_199 = arith.constant 0 : index
    %c0_200 = arith.constant 0 : index
    %260 = vector.load %arg15[%c0_199, %c0_200] : memref<128x128xf32, #tpu.memory_space<vmem>>, vector<128x128xf32>
    %cst_201 = arith.constant dense<0.000000e+00> : vector<8x128xf32>
    %261 = tpu.matmul %259, %260, %cst_201 {dimension_numbers = #tpu.dot_dimension_numbers<[1], [0], [0], [1], [0, 0, 1, 1], [], []>} : vector<8x128xf32>, vector<128x128xf32>, vector<8x128xf32> -> vector<8x128xf32>
    %c0_202 = arith.constant 0 : index
    %c0_203 = arith.constant 0 : index
    %262 = vector.load %arg16[%c0_202, %c0_203] : memref<1x128xf32, #tpu.memory_space<vmem>>, vector<1x128xf32>
    %263 = vector.broadcast %262 : vector<1x128xf32> to vector<8x128xf32>
    %264 = arith.addf %261, %263 : vector<8x128xf32>
    %265 = arith.addf %169, %264 : vector<8x128xf32>
    %266 = vector.broadcast %4 : vector<1x128xf32> to vector<8x128xf32>
    %267 = arith.mulf %265, %266 : vector<8x128xf32>
    %cst_204 = arith.constant dense<0.000000e+00> : vector<8xf32>
    %268 = vector.multi_reduction <add>, %267, %cst_204 [1] : vector<8x128xf32> to vector<8xf32>
    %269 = vector.shape_cast %268 : vector<8xf32> to vector<8x1xf32>
    %cst_205 = arith.constant 3.125000e-02 : f32
    %270 = vector.broadcast %cst_205 : f32 to vector<8x1xf32>
    %271 = arith.mulf %269, %270 : vector<8x1xf32>
    %272 = vector.broadcast %271 : vector<8x1xf32> to vector<8x128xf32>
    %273 = arith.subf %265, %272 : vector<8x128xf32>
    %274 = vector.broadcast %4 : vector<1x128xf32> to vector<8x128xf32>
    %275 = arith.mulf %273, %274 : vector<8x128xf32>
    %276 = arith.mulf %275, %275 : vector<8x128xf32>
    %cst_206 = arith.constant dense<0.000000e+00> : vector<8xf32>
    %277 = vector.multi_reduction <add>, %276, %cst_206 [1] : vector<8x128xf32> to vector<8xf32>
    %278 = vector.shape_cast %277 : vector<8xf32> to vector<8x1xf32>
    %cst_207 = arith.constant 3.125000e-02 : f32
    %279 = vector.broadcast %cst_207 : f32 to vector<8x1xf32>
    %280 = arith.mulf %278, %279 : vector<8x1xf32>
    %cst_208 = arith.constant 9.99999974E-6 : f32
    %281 = vector.broadcast %cst_208 : f32 to vector<8x1xf32>
    %282 = arith.addf %280, %281 : vector<8x1xf32>
    %283 = math.rsqrt %282 : vector<8x1xf32>
    %284 = vector.broadcast %283 : vector<8x1xf32> to vector<8x128xf32>
    %285 = arith.mulf %275, %284 : vector<8x128xf32>
    %c0_209 = arith.constant 0 : index
    %c0_210 = arith.constant 0 : index
    %286 = vector.load %arg17[%c0_209, %c0_210] : memref<1x128xf32, #tpu.memory_space<vmem>>, vector<1x128xf32>
    %287 = vector.broadcast %286 : vector<1x128xf32> to vector<8x128xf32>
    %288 = arith.mulf %285, %287 : vector<8x128xf32>
    %c0_211 = arith.constant 0 : index
    %c0_212 = arith.constant 0 : index
    %289 = vector.load %arg18[%c0_211, %c0_212] : memref<1x128xf32, #tpu.memory_space<vmem>>, vector<1x128xf32>
    %290 = vector.broadcast %289 : vector<1x128xf32> to vector<8x128xf32>
    %291 = arith.addf %288, %290 : vector<8x128xf32>
    %c0_213 = arith.constant 0 : index
    %c0_214 = arith.constant 0 : index
    %292 = vector.load %arg19[%c0_213, %c0_214] : memref<128x128xf32, #tpu.memory_space<vmem>>, vector<128x128xf32>
    %cst_215 = arith.constant dense<0.000000e+00> : vector<8x128xf32>
    %293 = tpu.matmul %291, %292, %cst_215 {dimension_numbers = #tpu.dot_dimension_numbers<[1], [0], [0], [1], [0, 0, 1, 1], [], []>} : vector<8x128xf32>, vector<128x128xf32>, vector<8x128xf32> -> vector<8x128xf32>
    %c0_216 = arith.constant 0 : index
    %c0_217 = arith.constant 0 : index
    %294 = vector.load %arg20[%c0_216, %c0_217] : memref<1x128xf32, #tpu.memory_space<vmem>>, vector<1x128xf32>
    %295 = vector.broadcast %294 : vector<1x128xf32> to vector<8x128xf32>
    %296 = arith.addf %293, %295 : vector<8x128xf32>
    %cst_218 = arith.constant 0.000000e+00 : f32
    %297 = vector.broadcast %cst_218 : f32 to vector<8x128xf32>
    %298 = arith.maximumf %296, %297 : vector<8x128xf32>
    %c0_219 = arith.constant 0 : index
    %c0_220 = arith.constant 0 : index
    %299 = vector.load %arg21[%c0_219, %c0_220] : memref<128x128xf32, #tpu.memory_space<vmem>>, vector<128x128xf32>
    %cst_221 = arith.constant dense<0.000000e+00> : vector<8x128xf32>
    %300 = tpu.matmul %298, %299, %cst_221 {dimension_numbers = #tpu.dot_dimension_numbers<[1], [0], [0], [1], [0, 0, 1, 1], [], []>} : vector<8x128xf32>, vector<128x128xf32>, vector<8x128xf32> -> vector<8x128xf32>
    %c0_222 = arith.constant 0 : index
    %c0_223 = arith.constant 0 : index
    %301 = vector.load %arg22[%c0_222, %c0_223] : memref<1x128xf32, #tpu.memory_space<vmem>>, vector<1x128xf32>
    %302 = vector.broadcast %301 : vector<1x128xf32> to vector<8x128xf32>
    %303 = arith.addf %300, %302 : vector<8x128xf32>
    %304 = arith.addf %291, %303 : vector<8x128xf32>
    %305 = vector.broadcast %4 : vector<1x128xf32> to vector<8x128xf32>
    %306 = arith.mulf %304, %305 : vector<8x128xf32>
    %cst_224 = arith.constant dense<0.000000e+00> : vector<8xf32>
    %307 = vector.multi_reduction <add>, %306, %cst_224 [1] : vector<8x128xf32> to vector<8xf32>
    %308 = vector.shape_cast %307 : vector<8xf32> to vector<8x1xf32>
    %cst_225 = arith.constant 3.125000e-02 : f32
    %309 = vector.broadcast %cst_225 : f32 to vector<8x1xf32>
    %310 = arith.mulf %308, %309 : vector<8x1xf32>
    %311 = vector.broadcast %310 : vector<8x1xf32> to vector<8x128xf32>
    %312 = arith.subf %304, %311 : vector<8x128xf32>
    %313 = vector.broadcast %4 : vector<1x128xf32> to vector<8x128xf32>
    %314 = arith.mulf %312, %313 : vector<8x128xf32>
    %315 = arith.mulf %314, %314 : vector<8x128xf32>
    %cst_226 = arith.constant dense<0.000000e+00> : vector<8xf32>
    %316 = vector.multi_reduction <add>, %315, %cst_226 [1] : vector<8x128xf32> to vector<8xf32>
    %317 = vector.shape_cast %316 : vector<8xf32> to vector<8x1xf32>
    %cst_227 = arith.constant 3.125000e-02 : f32
    %318 = vector.broadcast %cst_227 : f32 to vector<8x1xf32>
    %319 = arith.mulf %317, %318 : vector<8x1xf32>
    %cst_228 = arith.constant 9.99999974E-6 : f32
    %320 = vector.broadcast %cst_228 : f32 to vector<8x1xf32>
    %321 = arith.addf %319, %320 : vector<8x1xf32>
    %322 = math.rsqrt %321 : vector<8x1xf32>
    %323 = vector.broadcast %322 : vector<8x1xf32> to vector<8x128xf32>
    %324 = arith.mulf %314, %323 : vector<8x128xf32>
    %c0_229 = arith.constant 0 : index
    %c0_230 = arith.constant 0 : index
    %325 = vector.load %arg23[%c0_229, %c0_230] : memref<1x128xf32, #tpu.memory_space<vmem>>, vector<1x128xf32>
    %326 = vector.broadcast %325 : vector<1x128xf32> to vector<8x128xf32>
    %327 = arith.mulf %324, %326 : vector<8x128xf32>
    %c0_231 = arith.constant 0 : index
    %c0_232 = arith.constant 0 : index
    %328 = vector.load %arg24[%c0_231, %c0_232] : memref<1x128xf32, #tpu.memory_space<vmem>>, vector<1x128xf32>
    %329 = vector.broadcast %328 : vector<1x128xf32> to vector<8x128xf32>
    %330 = arith.addf %327, %329 : vector<8x128xf32>
    %331 = vector.shape_cast %330 : vector<8x128xf32> to vector<1x8x128xf32>
    %c0_233 = arith.constant 0 : index
    %c0_234 = arith.constant 0 : index
    %c0_235 = arith.constant 0 : index
    %332 = vector.load %arg25[%c0_233, %c0_234, %c0_235] : memref<1x8x128xf32, #tpu.memory_space<vmem>>, vector<1x8x128xf32>
    tpu.vector_store %arg25[%c0_233, %c0_234, %c0_235], %331 {strides = array<i32>} : memref<1x8x128xf32, #tpu.memory_space<vmem>>, vector<1x8x128xf32>,
    return
  }
  func.func @transform_0(%arg0: i32) -> (i32, i32, i32) {
    %c0_i32 = arith.constant 0 : i32
    %c0_i32_0 = arith.constant 0 : i32
    %c0_i32_1 = arith.constant 0 : i32
    return %arg0, %c0_i32, %c0_i32_0 : i32, i32, i32
  }
  func.func @transform_1(%arg0: i32) -> (i32, i32, i32) {
    %c0_i32 = arith.constant 0 : i32
    %c0_i32_0 = arith.constant 0 : i32
    %c0_i32_1 = arith.constant 0 : i32
    return %arg0, %c0_i32, %c0_i32_0 : i32, i32, i32
  }
  func.func @transform_2(%arg0: i32) -> (i32, i32, i32) {
    %c0_i32 = arith.constant 0 : i32
    %c0_i32_0 = arith.constant 0 : i32
    %c0_i32_1 = arith.constant 0 : i32
    return %arg0, %c0_i32, %c0_i32_0 : i32, i32, i32
  }
  func.func @transform_3(%arg0: i32) -> (i32, i32, i32) {
    %c0_i32 = arith.constant 0 : i32
    %c0_i32_0 = arith.constant 0 : i32
    %c0_i32_1 = arith.constant 0 : i32
    return %arg0, %c0_i32, %c0_i32_0 : i32, i32, i32
  }
  func.func @transform_4(%arg0: i32) -> (i32, i32) {
    %c0_i32 = arith.constant 0 : i32
    %c0_i32_0 = arith.constant 0 : i32
    %c0_i32_1 = arith.constant 0 : i32
    return %c0_i32, %c0_i32_0 : i32, i32
  }
  func.func @transform_5(%arg0: i32) -> (i32, i32) {
    %c0_i32 = arith.constant 0 : i32
    %c0_i32_0 = arith.constant 0 : i32
    %c0_i32_1 = arith.constant 0 : i32
    return %c0_i32, %c0_i32_0 : i32, i32
  }
  func.func @transform_6(%arg0: i32) -> (i32, i32) {
    %c0_i32 = arith.constant 0 : i32
    %c0_i32_0 = arith.constant 0 : i32
    %c0_i32_1 = arith.constant 0 : i32
    return %c0_i32, %c0_i32_0 : i32, i32
  }
  func.func @transform_7(%arg0: i32) -> (i32, i32) {
    %c0_i32 = arith.constant 0 : i32
    %c0_i32_0 = arith.constant 0 : i32
    %c0_i32_1 = arith.constant 0 : i32
    return %c0_i32, %c0_i32_0 : i32, i32
  }
  func.func @transform_8(%arg0: i32) -> (i32, i32) {
    %c0_i32 = arith.constant 0 : i32
    %c0_i32_0 = arith.constant 0 : i32
    %c0_i32_1 = arith.constant 0 : i32
    return %c0_i32, %c0_i32_0 : i32, i32
  }
  func.func @transform_9(%arg0: i32) -> (i32, i32) {
    %c0_i32 = arith.constant 0 : i32
    %c0_i32_0 = arith.constant 0 : i32
    %c0_i32_1 = arith.constant 0 : i32
    return %c0_i32, %c0_i32_0 : i32, i32
  }
  func.func @transform_10(%arg0: i32) -> (i32, i32) {
    %c0_i32 = arith.constant 0 : i32
    %c0_i32_0 = arith.constant 0 : i32
    %c0_i32_1 = arith.constant 0 : i32
    return %c0_i32, %c0_i32_0 : i32, i32
  }
  func.func @transform_11(%arg0: i32) -> (i32, i32) {
    %c0_i32 = arith.constant 0 : i32
    %c0_i32_0 = arith.constant 0 : i32
    %c0_i32_1 = arith.constant 0 : i32
    return %c0_i32, %c0_i32_0 : i32, i32
  }
  func.func @transform_12(%arg0: i32) -> (i32, i32) {
    %c0_i32 = arith.constant 0 : i32
    %c0_i32_0 = arith.constant 0 : i32
    %c0_i32_1 = arith.constant 0 : i32
    return %c0_i32, %c0_i32_0 : i32, i32
  }
  func.func @transform_13(%arg0: i32) -> (i32, i32) {
    %c0_i32 = arith.constant 0 : i32
    %c0_i32_0 = arith.constant 0 : i32
    %c0_i32_1 = arith.constant 0 : i32
    return %c0_i32, %c0_i32_0 : i32, i32
  }
  func.func @transform_14(%arg0: i32) -> (i32, i32) {
    %c0_i32 = arith.constant 0 : i32
    %c0_i32_0 = arith.constant 0 : i32
    %c0_i32_1 = arith.constant 0 : i32
    return %c0_i32, %c0_i32_0 : i32, i32
  }
  func.func @transform_15(%arg0: i32) -> (i32, i32) {
    %c0_i32 = arith.constant 0 : i32
    %c0_i32_0 = arith.constant 0 : i32
    %c0_i32_1 = arith.constant 0 : i32
    return %c0_i32, %c0_i32_0 : i32, i32
  }
  func.func @transform_16(%arg0: i32) -> (i32, i32) {
    %c0_i32 = arith.constant 0 : i32
    %c0_i32_0 = arith.constant 0 : i32
    %c0_i32_1 = arith.constant 0 : i32
    return %c0_i32, %c0_i32_0 : i32, i32
  }
  func.func @transform_17(%arg0: i32) -> (i32, i32) {
    %c0_i32 = arith.constant 0 : i32
    %c0_i32_0 = arith.constant 0 : i32
    %c0_i32_1 = arith.constant 0 : i32
    return %c0_i32, %c0_i32_0 : i32, i32
  }
  func.func @transform_18(%arg0: i32) -> (i32, i32) {
    %c0_i32 = arith.constant 0 : i32
    %c0_i32_0 = arith.constant 0 : i32
    %c0_i32_1 = arith.constant 0 : i32
    return %c0_i32, %c0_i32_0 : i32, i32
  }
  func.func @transform_19(%arg0: i32) -> (i32, i32) {
    %c0_i32 = arith.constant 0 : i32
    %c0_i32_0 = arith.constant 0 : i32
    %c0_i32_1 = arith.constant 0 : i32
    return %c0_i32, %c0_i32_0 : i32, i32
  }
  func.func @transform_20(%arg0: i32) -> (i32, i32) {
    %c0_i32 = arith.constant 0 : i32
    %c0_i32_0 = arith.constant 0 : i32
    %c0_i32_1 = arith.constant 0 : i32
    return %c0_i32, %c0_i32_0 : i32, i32
  }
  func.func @transform_21(%arg0: i32) -> (i32, i32) {
    %c0_i32 = arith.constant 0 : i32
    %c0_i32_0 = arith.constant 0 : i32
    %c0_i32_1 = arith.constant 0 : i32
    return %c0_i32, %c0_i32_0 : i32, i32
  }
  func.func @transform_22(%arg0: i32) -> (i32, i32) {
    %c0_i32 = arith.constant 0 : i32
    %c0_i32_0 = arith.constant 0 : i32
    %c0_i32_1 = arith.constant 0 : i32
    return %c0_i32, %c0_i32_0 : i32, i32
  }
  func.func @transform_23(%arg0: i32) -> (i32, i32) {
    %c0_i32 = arith.constant 0 : i32
    %c0_i32_0 = arith.constant 0 : i32
    %c0_i32_1 = arith.constant 0 : i32
    return %c0_i32, %c0_i32_0 : i32, i32
  }
  func.func @transform_24(%arg0: i32) -> (i32, i32, i32) {
    %c0_i32 = arith.constant 0 : i32
    %c0_i32_0 = arith.constant 0 : i32
    %c0_i32_1 = arith.constant 0 : i32
    return %arg0, %c0_i32, %c0_i32_0 : i32, i32, i32
  }
}

</mosaic_0001>

<llo_original>
// kernel: tpu_custom_call.1
$region0: #{tpu_custom_call.1}
  #allocation0 [shape = 'u32[]', space=smem, size = 0x4, offset = 0x4, fixed_abs, tag = 'smem constant byte address 0x4 - core index']
  #allocation1 [shape = 'u32[144,128]{1,0:T(1,128)}', space=vmem, size = 0x12000, scoped, tag = 'internal scratch']
  #allocation2 [shape = 'f32[1,16,384]{2,1,0:T(8,128)}', space=vmem, size = 0x6000, scoped, tag = 'scratch operand']
  #allocation3 [shape = 'f32[1,8,128]{2,1,0:T(8,128)}', space=vmem, size = 0x1000, scoped, tag = 'scratch operand']
  %s0 = inlined_call_operand.hbm [shape: f32[2,8,128], index: 0, kind: input, shape index: {}]
  %s1 = inlined_call_operand.hbm [shape: f32[2,8,128], index: 1, kind: input, shape index: {}]
  %s2 = inlined_call_operand.hbm [shape: f32[2,16,128], index: 2, kind: input, shape index: {}]
  %s3 = inlined_call_operand.hbm [shape: f32[2,16,128], index: 3, kind: input, shape index: {}]
  %s4 = inlined_call_operand.hbm [shape: s32[2,16], index: 4, kind: input, shape index: {}]
  %s5 = inlined_call_operand.vmem [shape: s32[2,8], index: 5, kind: input, shape index: {}]
  %s6 = inlined_call_operand.hbm [shape: f32[128,384], index: 6, kind: input, shape index: {}]
  %s7 = inlined_call_operand.vmem [shape: f32[1,384], index: 7, kind: input, shape index: {}]
  %s8 = inlined_call_operand.hbm [shape: f32[128,128], index: 8, kind: input, shape index: {}]
  %s9 = inlined_call_operand.vmem [shape: f32[1,128], index: 9, kind: input, shape index: {}]
  %s10 = inlined_call_operand.vmem [shape: f32[1,128], index: 10, kind: input, shape index: {}]
  %s11 = inlined_call_operand.vmem [shape: f32[1,128], index: 11, kind: input, shape index: {}]
  %s12 = inlined_call_operand.hbm [shape: f32[128,384], index: 12, kind: input, shape index: {}]
  %s13 = inlined_call_operand.vmem [shape: f32[1,384], index: 13, kind: input, shape index: {}]
  %s14 = inlined_call_operand.hbm [shape: f32[128,128], index: 14, kind: input, shape index: {}]
  %s15 = inlined_call_operand.vmem [shape: f32[1,128], index: 15, kind: input, shape index: {}]
  %s16 = inlined_call_operand.vmem [shape: f32[1,128], index: 16, kind: input, shape index: {}]
  %s17 = inlined_call_operand.vmem [shape: f32[1,128], index: 17, kind: input, shape index: {}]
  %s18 = inlined_call_operand.hbm [shape: f32[128,128], index: 18, kind: input, shape index: {}]
  %s19 = inlined_call_operand.vmem [shape: f32[1,128], index: 19, kind: input, shape index: {}]
  %s20 = inlined_call_operand.hbm [shape: f32[128,128], index: 20, kind: input, shape index: {}]
  %s21 = inlined_call_operand.vmem [shape: f32[1,128], index: 21, kind: input, shape index: {}]
  %s22 = inlined_call_operand.vmem [shape: f32[1,128], index: 22, kind: input, shape index: {}]
  %s23 = inlined_call_operand.vmem [shape: f32[1,128], index: 23, kind: input, shape index: {}]
  %s24 = inlined_call_operand.hbm [shape: f32[2,8,128], index: 24, kind: output, shape index: {}]
  %s25 = sld [smem:[#allocation0]]
  $region173: #{tpu_custom_call.1} parent=0
    _
  %s27 = ssub.s32 1, %s25
  %s28 = scalar_select 0, %s27, %s25
  $region1: #{tpu_custom_call.1} parent=0
    #allocation4 [shape = 'u8[8192]{0}', space=vmem, size = 0x2000, scoped, tag = 'input window, operand 0']
    #allocation5 [shape = 's32[2]{0}', space=sflag, size = 0x8, scoped, tag = 'scoped memory for tpu_custom_call.1']
    #allocation6 [shape = 's32[2]{0}', space=sflag, size = 0x8, scoped, tag = 'scoped memory for tpu_custom_call.1']
    #allocation7 [shape = 'u8[8192]{0}', space=vmem, size = 0x2000, scoped, tag = 'input window, operand 1']
    #allocation8 [shape = 's32[2]{0}', space=sflag, size = 0x8, scoped, tag = 'scoped memory for tpu_custom_call.1']
    #allocation9 [shape = 'u8[16384]{0}', space=vmem, size = 0x4000, scoped, tag = 'input window, operand 2']
    #allocation10 [shape = 'u8[16384]{0}', space=vmem, size = 0x4000, scoped, tag = 'input window, operand 3']
    #allocation11 [shape = 's32[2]{0}', space=sflag, size = 0x8, scoped, tag = 'scoped memory for tpu_custom_call.1']
    #allocation12 [shape = 'u8[1024]{0}', space=vmem, size = 0x400, scoped, tag = 'input window, operand 4, single buffered']
    #allocation13 [shape = 'u8[196608]{0}', space=vmem, size = 0x30000, scoped, tag = 'input window, operand 6, single buffered']
    #allocation14 [shape = 's32[1]{0}', space=sflag, size = 0x4, scoped, tag = 'scoped memory for tpu_custom_call.1']
    #allocation15 [shape = 'u8[65536]{0}', space=vmem, size = 0x10000, scoped, tag = 'input window, operand 8, single buffered']
    #allocation16 [shape = 'u8[196608]{0}', space=vmem, size = 0x30000, scoped, tag = 'input window, operand 12, single buffered']
    #allocation17 [shape = 's32[1]{0}', space=sflag, size = 0x4, scoped, tag = 'scoped memory for tpu_custom_call.1']
    #allocation18 [shape = 'u8[65536]{0}', space=vmem, size = 0x10000, scoped, tag = 'input window, operand 14, single buffered']
    #allocation19 [shape = 'u8[65536]{0}', space=vmem, size = 0x10000, scoped, tag = 'input window, operand 18, single buffered']
    #allocation20 [shape = 's32[1]{0}', space=sflag, size = 0x4, scoped, tag = 'scoped memory for tpu_custom_call.1']
    #allocation21 [shape = 'u8[65536]{0}', space=vmem, size = 0x10000, scoped, tag = 'input window, operand 20, single buffered']
    #allocation22 [shape = 'u8[8192]{0}', space=vmem, size = 0x2000, scoped, tag = 'output window, operand 0']
    %29 = vsyncpa [#allocation5], 0
    %s30 = scalar_lea.sflag [#allocation5], 1
    %31 = vsyncpa %s30, 0
    %32 = vsyncpa [#allocation8], 0
    %s33 = scalar_lea.sflag [#allocation8], 1
    %34 = vsyncpa %s33, 0
    %35 = vsyncpa [#allocation11], 0
    %s36 = scalar_lea.sflag [#allocation11], 1
    %37 = vsyncpa %s36, 0
    %38 = vsyncpa [#allocation14], 0
    %39 = vsyncpa [#allocation17], 0
    %40 = vsyncpa [#allocation20], 0
    %41 = vsyncpa [#allocation6], 0
    %s42 = scalar_lea.sflag [#allocation6], 1
    %43 = vsyncpa %s42, 0
    loop: start=0, step=1, limit=4
    $region2: #{tpu_custom_call.1} parent=1 // loop_pre_header
      _
    $region3: #{tpu_custom_call.1} parent=1 // loop_header
      %s45 = sphi 0, %s49
      %p46 = scmp.ge.s32.totalorder %s45, 4
      %s55 = sphi 0, %s57
      %s58 = sphi 0, %s55
      %s59 = sphi 0, %s58
      %s75 = sphi 0, %s59
      %s81 = sphi 0, %s83
      %s84 = sphi 0, %s81
      %s85 = sphi 0, %s84
      %s101 = sphi 0, %s85
      %s107 = sphi 0, %s109
      %s110 = sphi 0, %s107
      %s111 = sphi 0, %s110
      %s127 = sphi 0, %s111
      %s133 = sphi 0, %s135
      %s136 = sphi 0, %s133
      %s137 = sphi 0, %s136
      %s153 = sphi 0, %s137
      %s157 = sphi 0, %s157
      %s159 = sphi 0, %s157
      %s160 = sphi 0, %s159
      %s174 = sphi 0, %s160
      %s178 = sphi 0, %s178
      %s180 = sphi 0, %s178
      %s181 = sphi 0, %s180
      %s195 = sphi 0, %s181
      %s199 = sphi 0, %s199
      %s201 = sphi 0, %s199
      %s202 = sphi 0, %s201
      %s216 = sphi 0, %s202
      %s220 = sphi 0, %s220
      %s222 = sphi 0, %s220
      %s223 = sphi 0, %s222
      %s237 = sphi 0, %s223
      %s241 = sphi 0, %s241
      %s243 = sphi 0, %s241
      %s244 = sphi 0, %s243
      %s258 = sphi 0, %s244
      %s262 = sphi 0, %s262
      %s264 = sphi 0, %s262
      %s265 = sphi 0, %s264
      %s279 = sphi 0, %s265
      %s283 = sphi 0, %s283
      %s285 = sphi 0, %s283
      %s286 = sphi 0, %s285
      %s300 = sphi 0, %s286
      %s304 = sphi 0, %s304
      %s306 = sphi 0, %s304
      %s307 = sphi 0, %s306
      %s321 = sphi 0, %s307
      %s325 = sphi 0, %s325
      %s327 = sphi 0, %s325
      %s328 = sphi 0, %s327
      %s342 = sphi 0, %s328
      %s346 = sphi 0, %s346
      %s348 = sphi 0, %s346
      %s349 = sphi 0, %s348
      %s363 = sphi 0, %s349
      %s367 = sphi 0, %s367
      %s369 = sphi 0, %s367
      %s370 = sphi 0, %s369
      %s384 = sphi 0, %s370
      %s388 = sphi 0, %s388
      %s390 = sphi 0, %s388
      %s391 = sphi 0, %s390
      %s405 = sphi 0, %s391
      %s409 = sphi 0, %s409
      %s411 = sphi 0, %s409
      %s412 = sphi 0, %s411
      %s426 = sphi 0, %s412
      %s430 = sphi 0, %s430
      %s432 = sphi 0, %s430
      %s433 = sphi 0, %s432
      %s447 = sphi 0, %s433
      %s451 = sphi 0, %s451
      %s453 = sphi 0, %s451
      %s454 = sphi 0, %s453
      %s468 = sphi 0, %s454
      %s472 = sphi 0, %s472
      %s474 = sphi 0, %s472
      %s475 = sphi 0, %s474
      %s489 = sphi 0, %s475
      %s493 = sphi 0, %s493
      %s495 = sphi 0, %s493
      %s496 = sphi 0, %s495
      %s510 = sphi 0, %s496
      %s514 = sphi 0, %s514
      %s516 = sphi 0, %s514
      %s517 = sphi 0, %s516
      %s531 = sphi 0, %s517
      %s535 = sphi 0, %s535
      %s537 = sphi 0, %s535
      %s538 = sphi 0, %s537
      %s552 = sphi 0, %s538
      %s556 = sphi 0, %s556
      %s558 = sphi 0, %s556
      %s559 = sphi 0, %s558
      %s573 = sphi 0, %s559
      %s579 = sphi 0, %s581
      %s582 = sphi 0, %s579
      %s583 = sphi 0, %s582
      %s599 = sphi 0, %s583
    $region4: #{tpu_custom_call.1} parent=1 // loop_header_branch
      %48 = sbr.rel (%p46) target = $region8
    $region5: #{tpu_custom_call.1} parent=1 // loop_body
      %s50 = ssub.s32 %s45, 1
      %s51 = ssub.s32 %s45, 2
      %s52 = sadd.s32 %s45, 1
      %s53 = ssub.s32 %s45, %s52
      %p54 = scmp.eq.s32.totalorder %s53, 0
      %s56 = sadd.s32 %s55, 1
      %s57 = scalar_select %p54, %s55, %s56
      %p60 = pneg %p54
      %p61 = scmp.eq.s32.totalorder %s45, 1
      %p62 = por %p60, %p61
      %p63 = scmp.ne.s32.totalorder %s55, %s58
      %p64 = scmp.eq.s32.totalorder %s45, 0
      %p65 = por %p63, %p64
      %p66 = scmp.ne.s32.totalorder %s55, %s58
      %p67 = scmp.eq.s32.totalorder %s50, 1
      %p68 = por %p66, %p67
      %p69 = scmp.ne.s32.totalorder %s58, %s59
      %p70 = scmp.eq.s32.totalorder %s50, 0
      %p71 = por %p69, %p70
      %p72 = scmp.ne.s32.totalorder %s58, %s59
      %p73 = scmp.eq.s32.totalorder %s51, 1
      %p74 = por %p72, %p73
      %p76 = scmp.ne.s32.totalorder %s59, %s75
      %p77 = scmp.eq.s32.totalorder %s51, 0
      %p78 = por %p76, %p77
      %s79 = ssub.s32 %s45, %s52
      %p80 = scmp.eq.s32.totalorder %s79, 0
      %s82 = sadd.s32 %s81, 1
      %s83 = scalar_select %p80, %s81, %s82
      %p86 = pneg %p80
      %p87 = scmp.eq.s32.totalorder %s45, 1
      %p88 = por %p86, %p87
      %p89 = scmp.ne.s32.totalorder %s81, %s84
      %p90 = scmp.eq.s32.totalorder %s45, 0
      %p91 = por %p89, %p90
      %p92 = scmp.ne.s32.totalorder %s81, %s84
      %p93 = scmp.eq.s32.totalorder %s50, 1
      %p94 = por %p92, %p93
      %p95 = scmp.ne.s32.totalorder %s84, %s85
      %p96 = scmp.eq.s32.totalorder %s50, 0
      %p97 = por %p95, %p96
      %p98 = scmp.ne.s32.totalorder %s84, %s85
      %p99 = scmp.eq.s32.totalorder %s51, 1
      %p100 = por %p98, %p99
      %p102 = scmp.ne.s32.totalorder %s85, %s101
      %p103 = scmp.eq.s32.totalorder %s51, 0
      %p104 = por %p102, %p103
      %s105 = ssub.s32 %s45, %s52
      %p106 = scmp.eq.s32.totalorder %s105, 0
      %s108 = sadd.s32 %s107, 1
      %s109 = scalar_select %p106, %s107, %s108
      %p112 = pneg %p106
      %p113 = scmp.eq.s32.totalorder %s45, 1
      %p114 = por %p112, %p113
      %p115 = scmp.ne.s32.totalorder %s107, %s110
      %p116 = scmp.eq.s32.totalorder %s45, 0
      %p117 = por %p115, %p116
      %p118 = scmp.ne.s32.totalorder %s107, %s110
      %p119 = scmp.eq.s32.totalorder %s50, 1
      %p120 = por %p118, %p119
      %p121 = scmp.ne.s32.totalorder %s110, %s111
      %p122 = scmp.eq.s32.totalorder %s50, 0
      %p123 = por %p121, %p122
      %p124 = scmp.ne.s32.totalorder %s110, %s111
      %p125 = scmp.eq.s32.totalorder %s51, 1
      %p126 = por %p124, %p125
      %p128 = scmp.ne.s32.totalorder %s111, %s127
      %p129 = scmp.eq.s32.totalorder %s51, 0
      %p130 = por %p128, %p129
      %s131 = ssub.s32 %s45, %s52
      %p132 = scmp.eq.s32.totalorder %s131, 0
      %s134 = sadd.s32 %s133, 1
      %s135 = scalar_select %p132, %s133, %s134
      %p138 = pneg %p132
      %p139 = scmp.eq.s32.totalorder %s45, 1
      %p140 = por %p138, %p139
      %p141 = scmp.ne.s32.totalorder %s133, %s136
      %p142 = scmp.eq.s32.totalorder %s45, 0
      %p143 = por %p141, %p142
      %p144 = scmp.ne.s32.totalorder %s133, %s136
      %p145 = scmp.eq.s32.totalorder %s50, 1
      %p146 = por %p144, %p145
      %p147 = scmp.ne.s32.totalorder %s136, %s137
      %p148 = scmp.eq.s32.totalorder %s50, 0
      %p149 = por %p147, %p148
      %p150 = scmp.ne.s32.totalorder %s136, %s137
      %p151 = scmp.eq.s32.totalorder %s51, 1
      %p152 = por %p150, %p151
      %p154 = scmp.ne.s32.totalorder %s137, %s153
      %p155 = scmp.eq.s32.totalorder %s51, 0
      %p156 = por %p154, %p155
      %s158 = sadd.s32 %s157, 1
      %p161 = scmp.eq.s32.totalorder %s45, 1
      %p162 = scmp.ne.s32.totalorder %s157, %s159
      %p163 = scmp.eq.s32.totalorder %s45, 0
      %p164 = por %p162, %p163
      %p165 = scmp.ne.s32.totalorder %s157, %s159
      %p166 = scmp.eq.s32.totalorder %s50, 1
      %p167 = por %p165, %p166
      %p168 = scmp.ne.s32.totalorder %s159, %s160
      %p169 = scmp.eq.s32.totalorder %s50, 0
      %p170 = por %p168, %p169
      %p171 = scmp.ne.s32.totalorder %s159, %s160
      %p172 = scmp.eq.s32.totalorder %s51, 1
      %p173 = por %p171, %p172
      %p175 = scmp.ne.s32.totalorder %s160, %s174
      %p176 = scmp.eq.s32.totalorder %s51, 0
      %p177 = por %p175, %p176
      %s179 = sadd.s32 %s178, 1
      %p182 = scmp.eq.s32.totalorder %s45, 1
      %p183 = scmp.ne.s32.totalorder %s178, %s180
      %p184 = scmp.eq.s32.totalorder %s45, 0
      %p185 = por %p183, %p184
      %p186 = scmp.ne.s32.totalorder %s178, %s180
      %p187 = scmp.eq.s32.totalorder %s50, 1
      %p188 = por %p186, %p187
      %p189 = scmp.ne.s32.totalorder %s180, %s181
      %p190 = scmp.eq.s32.totalorder %s50, 0
      %p191 = por %p189, %p190
      %p192 = scmp.ne.s32.totalorder %s180, %s181
      %p193 = scmp.eq.s32.totalorder %s51, 1
      %p194 = por %p192, %p193
      %p196 = scmp.ne.s32.totalorder %s181, %s195
      %p197 = scmp.eq.s32.totalorder %s51, 0
      %p198 = por %p196, %p197
      %s200 = sadd.s32 %s199, 1
      %p203 = scmp.eq.s32.totalorder %s45, 1
      %p204 = scmp.ne.s32.totalorder %s199, %s201
      %p205 = scmp.eq.s32.totalorder %s45, 0
      %p206 = por %p204, %p205
      %p207 = scmp.ne.s32.totalorder %s199, %s201
      %p208 = scmp.eq.s32.totalorder %s50, 1
      %p209 = por %p207, %p208
      %p210 = scmp.ne.s32.totalorder %s201, %s202
      %p211 = scmp.eq.s32.totalorder %s50, 0
      %p212 = por %p210, %p211
      %p213 = scmp.ne.s32.totalorder %s201, %s202
      %p214 = scmp.eq.s32.totalorder %s51, 1
      %p215 = por %p213, %p214
      %p217 = scmp.ne.s32.totalorder %s202, %s216
      %p218 = scmp.eq.s32.totalorder %s51, 0
      %p219 = por %p217, %p218
      %s221 = sadd.s32 %s220, 1
      %p224 = scmp.eq.s32.totalorder %s45, 1
      %p225 = scmp.ne.s32.totalorder %s220, %s222
      %p226 = scmp.eq.s32.totalorder %s45, 0
      %p227 = por %p225, %p226
      %p228 = scmp.ne.s32.totalorder %s220, %s222
      %p229 = scmp.eq.s32.totalorder %s50, 1
      %p230 = por %p228, %p229
      %p231 = scmp.ne.s32.totalorder %s222, %s223
      %p232 = scmp.eq.s32.totalorder %s50, 0
      %p233 = por %p231, %p232
      %p234 = scmp.ne.s32.totalorder %s222, %s223
      %p235 = scmp.eq.s32.totalorder %s51, 1
      %p236 = por %p234, %p235
      %p238 = scmp.ne.s32.totalorder %s223, %s237
      %p239 = scmp.eq.s32.totalorder %s51, 0
      %p240 = por %p238, %p239
      %s242 = sadd.s32 %s241, 1
      %p245 = scmp.eq.s32.totalorder %s45, 1
      %p246 = scmp.ne.s32.totalorder %s241, %s243
      %p247 = scmp.eq.s32.totalorder %s45, 0
      %p248 = por %p246, %p247
      %p249 = scmp.ne.s32.totalorder %s241, %s243
      %p250 = scmp.eq.s32.totalorder %s50, 1
      %p251 = por %p249, %p250
      %p252 = scmp.ne.s32.totalorder %s243, %s244
      %p253 = scmp.eq.s32.totalorder %s50, 0
      %p254 = por %p252, %p253
      %p255 = scmp.ne.s32.totalorder %s243, %s244
      %p256 = scmp.eq.s32.totalorder %s51, 1
      %p257 = por %p255, %p256
      %p259 = scmp.ne.s32.totalorder %s244, %s258
      %p260 = scmp.eq.s32.totalorder %s51, 0
      %p261 = por %p259, %p260
      %s263 = sadd.s32 %s262, 1
      %p266 = scmp.eq.s32.totalorder %s45, 1
      %p267 = scmp.ne.s32.totalorder %s262, %s264
      %p268 = scmp.eq.s32.totalorder %s45, 0
      %p269 = por %p267, %p268
      %p270 = scmp.ne.s32.totalorder %s262, %s264
      %p271 = scmp.eq.s32.totalorder %s50, 1
      %p272 = por %p270, %p271
      %p273 = scmp.ne.s32.totalorder %s264, %s265
      %p274 = scmp.eq.s32.totalorder %s50, 0
      %p275 = por %p273, %p274
      %p276 = scmp.ne.s32.totalorder %s264, %s265
      %p277 = scmp.eq.s32.totalorder %s51, 1
      %p278 = por %p276, %p277
      %p280 = scmp.ne.s32.totalorder %s265, %s279
      %p281 = scmp.eq.s32.totalorder %s51, 0
      %p282 = por %p280, %p281
      %s284 = sadd.s32 %s283, 1
      %p287 = scmp.eq.s32.totalorder %s45, 1
      %p288 = scmp.ne.s32.totalorder %s283, %s285
      %p289 = scmp.eq.s32.totalorder %s45, 0
      %p290 = por %p288, %p289
      %p291 = scmp.ne.s32.totalorder %s283, %s285
      %p292 = scmp.eq.s32.totalorder %s50, 1
      %p293 = por %p291, %p292
      %p294 = scmp.ne.s32.totalorder %s285, %s286
      %p295 = scmp.eq.s32.totalorder %s50, 0
      %p296 = por %p294, %p295
      %p297 = scmp.ne.s32.totalorder %s285, %s286
      %p298 = scmp.eq.s32.totalorder %s51, 1
      %p299 = por %p297, %p298
      %p301 = scmp.ne.s32.totalorder %s286, %s300
      %p302 = scmp.eq.s32.totalorder %s51, 0
      %p303 = por %p301, %p302
      %s305 = sadd.s32 %s304, 1
      %p308 = scmp.eq.s32.totalorder %s45, 1
      %p309 = scmp.ne.s32.totalorder %s304, %s306
      %p310 = scmp.eq.s32.totalorder %s45, 0
      %p311 = por %p309, %p310
      %p312 = scmp.ne.s32.totalorder %s304, %s306
      %p313 = scmp.eq.s32.totalorder %s50, 1
      %p314 = por %p312, %p313
      %p315 = scmp.ne.s32.totalorder %s306, %s307
      %p316 = scmp.eq.s32.totalorder %s50, 0
      %p317 = por %p315, %p316
      %p318 = scmp.ne.s32.totalorder %s306, %s307
      %p319 = scmp.eq.s32.totalorder %s51, 1
      %p320 = por %p318, %p319
      %p322 = scmp.ne.s32.totalorder %s307, %s321
      %p323 = scmp.eq.s32.totalorder %s51, 0
      %p324 = por %p322, %p323
      %s326 = sadd.s32 %s325, 1
      %p329 = scmp.eq.s32.totalorder %s45, 1
      %p330 = scmp.ne.s32.totalorder %s325, %s327
      %p331 = scmp.eq.s32.totalorder %s45, 0
      %p332 = por %p330, %p331
      %p333 = scmp.ne.s32.totalorder %s325, %s327
      %p334 = scmp.eq.s32.totalorder %s50, 1
      %p335 = por %p333, %p334
      %p336 = scmp.ne.s32.totalorder %s327, %s328
      %p337 = scmp.eq.s32.totalorder %s50, 0
      %p338 = por %p336, %p337
      %p339 = scmp.ne.s32.totalorder %s327, %s328
      %p340 = scmp.eq.s32.totalorder %s51, 1
      %p341 = por %p339, %p340
      %p343 = scmp.ne.s32.totalorder %s328, %s342
      %p344 = scmp.eq.s32.totalorder %s51, 0
      %p345 = por %p343, %p344
      %s347 = sadd.s32 %s346, 1
      %p350 = scmp.eq.s32.totalorder %s45, 1
      %p351 = scmp.ne.s32.totalorder %s346, %s348
      %p352 = scmp.eq.s32.totalorder %s45, 0
      %p353 = por %p351, %p352
      %p354 = scmp.ne.s32.totalorder %s346, %s348
      %p355 = scmp.eq.s32.totalorder %s50, 1
      %p356 = por %p354, %p355
      %p357 = scmp.ne.s32.totalorder %s348, %s349
      %p358 = scmp.eq.s32.totalorder %s50, 0
      %p359 = por %p357, %p358
      %p360 = scmp.ne.s32.totalorder %s348, %s349
      %p361 = scmp.eq.s32.totalorder %s51, 1
      %p362 = por %p360, %p361
      %p364 = scmp.ne.s32.totalorder %s349, %s363
      %p365 = scmp.eq.s32.totalorder %s51, 0
      %p366 = por %p364, %p365
      %s368 = sadd.s32 %s367, 1
      %p371 = scmp.eq.s32.totalorder %s45, 1
      %p372 = scmp.ne.s32.totalorder %s367, %s369
      %p373 = scmp.eq.s32.totalorder %s45, 0
      %p374 = por %p372, %p373
      %p375 = scmp.ne.s32.totalorder %s367, %s369
      %p376 = scmp.eq.s32.totalorder %s50, 1
      %p377 = por %p375, %p376
      %p378 = scmp.ne.s32.totalorder %s369, %s370
      %p379 = scmp.eq.s32.totalorder %s50, 0
      %p380 = por %p378, %p379
      %p381 = scmp.ne.s32.totalorder %s369, %s370
      %p382 = scmp.eq.s32.totalorder %s51, 1
      %p383 = por %p381, %p382
      %p385 = scmp.ne.s32.totalorder %s370, %s384
      %p386 = scmp.eq.s32.totalorder %s51, 0
      %p387 = por %p385, %p386
      %s389 = sadd.s32 %s388, 1
      %p392 = scmp.eq.s32.totalorder %s45, 1
      %p393 = scmp.ne.s32.totalorder %s388, %s390
      %p394 = scmp.eq.s32.totalorder %s45, 0
      %p395 = por %p393, %p394
      %p396 = scmp.ne.s32.totalorder %s388, %s390
      %p397 = scmp.eq.s32.totalorder %s50, 1
      %p398 = por %p396, %p397
      %p399 = scmp.ne.s32.totalorder %s390, %s391
      %p400 = scmp.eq.s32.totalorder %s50, 0
      %p401 = por %p399, %p400
      %p402 = scmp.ne.s32.totalorder %s390, %s391
      %p403 = scmp.eq.s32.totalorder %s51, 1
      %p404 = por %p402, %p403
      %p406 = scmp.ne.s32.totalorder %s391, %s405
      %p407 = scmp.eq.s32.totalorder %s51, 0
      %p408 = por %p406, %p407
      %s410 = sadd.s32 %s409, 1
      %p413 = scmp.eq.s32.totalorder %s45, 1
      %p414 = scmp.ne.s32.totalorder %s409, %s411
      %p415 = scmp.eq.s32.totalorder %s45, 0
      %p416 = por %p414, %p415
      %p417 = scmp.ne.s32.totalorder %s409, %s411
      %p418 = scmp.eq.s32.totalorder %s50, 1
      %p419 = por %p417, %p418
      %p420 = scmp.ne.s32.totalorder %s411, %s412
      %p421 = scmp.eq.s32.totalorder %s50, 0
      %p422 = por %p420, %p421
      %p423 = scmp.ne.s32.totalorder %s411, %s412
      %p424 = scmp.eq.s32.totalorder %s51, 1
      %p425 = por %p423, %p424
      %p427 = scmp.ne.s32.totalorder %s412, %s426
      %p428 = scmp.eq.s32.totalorder %s51, 0
      %p429 = por %p427, %p428
      %s431 = sadd.s32 %s430, 1
      %p434 = scmp.eq.s32.totalorder %s45, 1
      %p435 = scmp.ne.s32.totalorder %s430, %s432
      %p436 = scmp.eq.s32.totalorder %s45, 0
      %p437 = por %p435, %p436
      %p438 = scmp.ne.s32.totalorder %s430, %s432
      %p439 = scmp.eq.s32.totalorder %s50, 1
      %p440 = por %p438, %p439
      %p441 = scmp.ne.s32.totalorder %s432, %s433
      %p442 = scmp.eq.s32.totalorder %s50, 0
      %p443 = por %p441, %p442
      %p444 = scmp.ne.s32.totalorder %s432, %s433
      %p445 = scmp.eq.s32.totalorder %s51, 1
      %p446 = por %p444, %p445
      %p448 = scmp.ne.s32.totalorder %s433, %s447
      %p449 = scmp.eq.s32.totalorder %s51, 0
      %p450 = por %p448, %p449
      %s452 = sadd.s32 %s451, 1
      %p455 = scmp.eq.s32.totalorder %s45, 1
      %p456 = scmp.ne.s32.totalorder %s451, %s453
      %p457 = scmp.eq.s32.totalorder %s45, 0
      %p458 = por %p456, %p457
      %p459 = scmp.ne.s32.totalorder %s451, %s453
      %p460 = scmp.eq.s32.totalorder %s50, 1
      %p461 = por %p459, %p460
      %p462 = scmp.ne.s32.totalorder %s453, %s454
      %p463 = scmp.eq.s32.totalorder %s50, 0
      %p464 = por %p462, %p463
      %p465 = scmp.ne.s32.totalorder %s453, %s454
      %p466 = scmp.eq.s32.totalorder %s51, 1
      %p467 = por %p465, %p466
      %p469 = scmp.ne.s32.totalorder %s454, %s468
      %p470 = scmp.eq.s32.totalorder %s51, 0
      %p471 = por %p469, %p470
      %s473 = sadd.s32 %s472, 1
      %p476 = scmp.eq.s32.totalorder %s45, 1
      %p477 = scmp.ne.s32.totalorder %s472, %s474
      %p478 = scmp.eq.s32.totalorder %s45, 0
      %p479 = por %p477, %p478
      %p480 = scmp.ne.s32.totalorder %s472, %s474
      %p481 = scmp.eq.s32.totalorder %s50, 1
      %p482 = por %p480, %p481
      %p483 = scmp.ne.s32.totalorder %s474, %s475
      %p484 = scmp.eq.s32.totalorder %s50, 0
      %p485 = por %p483, %p484
      %p486 = scmp.ne.s32.totalorder %s474, %s475
      %p487 = scmp.eq.s32.totalorder %s51, 1
      %p488 = por %p486, %p487
      %p490 = scmp.ne.s32.totalorder %s475, %s489
      %p491 = scmp.eq.s32.totalorder %s51, 0
      %p492 = por %p490, %p491
      %s494 = sadd.s32 %s493, 1
      %p497 = scmp.eq.s32.totalorder %s45, 1
      %p498 = scmp.ne.s32.totalorder %s493, %s495
      %p499 = scmp.eq.s32.totalorder %s45, 0
      %p500 = por %p498, %p499
      %p501 = scmp.ne.s32.totalorder %s493, %s495
      %p502 = scmp.eq.s32.totalorder %s50, 1
      %p503 = por %p501, %p502
      %p504 = scmp.ne.s32.totalorder %s495, %s496
      %p505 = scmp.eq.s32.totalorder %s50, 0
      %p506 = por %p504, %p505
      %p507 = scmp.ne.s32.totalorder %s495, %s496
      %p508 = scmp.eq.s32.totalorder %s51, 1
      %p509 = por %p507, %p508
      %p511 = scmp.ne.s32.totalorder %s496, %s510
      %p512 = scmp.eq.s32.totalorder %s51, 0
      %p513 = por %p511, %p512
      %s515 = sadd.s32 %s514, 1
      %p518 = scmp.eq.s32.totalorder %s45, 1
      %p519 = scmp.ne.s32.totalorder %s514, %s516
      %p520 = scmp.eq.s32.totalorder %s45, 0
      %p521 = por %p519, %p520
      %p522 = scmp.ne.s32.totalorder %s514, %s516
      %p523 = scmp.eq.s32.totalorder %s50, 1
      %p524 = por %p522, %p523
      %p525 = scmp.ne.s32.totalorder %s516, %s517
      %p526 = scmp.eq.s32.totalorder %s50, 0
      %p527 = por %p525, %p526
      %p528 = scmp.ne.s32.totalorder %s516, %s517
      %p529 = scmp.eq.s32.totalorder %s51, 1
      %p530 = por %p528, %p529
      %p532 = scmp.ne.s32.totalorder %s517, %s531
      %p533 = scmp.eq.s32.totalorder %s51, 0
      %p534 = por %p532, %p533
      %s536 = sadd.s32 %s535, 1
      %p539 = scmp.eq.s32.totalorder %s45, 1
      %p540 = scmp.ne.s32.totalorder %s535, %s537
      %p541 = scmp.eq.s32.totalorder %s45, 0
      %p542 = por %p540, %p541
      %p543 = scmp.ne.s32.totalorder %s535, %s537
      %p544 = scmp.eq.s32.totalorder %s50, 1
      %p545 = por %p543, %p544
      %p546 = scmp.ne.s32.totalorder %s537, %s538
      %p547 = scmp.eq.s32.totalorder %s50, 0
      %p548 = por %p546, %p547
      %p549 = scmp.ne.s32.totalorder %s537, %s538
      %p550 = scmp.eq.s32.totalorder %s51, 1
      %p551 = por %p549, %p550
      %p553 = scmp.ne.s32.totalorder %s538, %s552
      %p554 = scmp.eq.s32.totalorder %s51, 0
      %p555 = por %p553, %p554
      %s557 = sadd.s32 %s556, 1
      %p560 = scmp.eq.s32.totalorder %s45, 1
      %p561 = scmp.ne.s32.totalorder %s556, %s558
      %p562 = scmp.eq.s32.totalorder %s45, 0
      %p563 = por %p561, %p562
      %p564 = scmp.ne.s32.totalorder %s556, %s558
      %p565 = scmp.eq.s32.totalorder %s50, 1
      %p566 = por %p564, %p565
      %p567 = scmp.ne.s32.totalorder %s558, %s559
      %p568 = scmp.eq.s32.totalorder %s50, 0
      %p569 = por %p567, %p568
      %p570 = scmp.ne.s32.totalorder %s558, %s559
      %p571 = scmp.eq.s32.totalorder %s51, 1
      %p572 = por %p570, %p571
      %p574 = scmp.ne.s32.totalorder %s559, %s573
      %p575 = scmp.eq.s32.totalorder %s51, 0
      %p576 = por %p574, %p575
      %s577 = ssub.s32 %s45, %s52
      %p578 = scmp.eq.s32.totalorder %s577, 0
      %s580 = sadd.s32 %s579, 1
      %s581 = scalar_select %p578, %s579, %s580
      %p584 = pneg %p578
      %p585 = scmp.eq.s32.totalorder %s45, 1
      %p586 = por %p584, %p585
      %p587 = scmp.ne.s32.totalorder %s579, %s582
      %p588 = scmp.eq.s32.totalorder %s45, 0
      %p589 = por %p587, %p588
      %p590 = scmp.ne.s32.totalorder %s579, %s582
      %p591 = scmp.eq.s32.totalorder %s50, 1
      %p592 = por %p590, %p591
      %p593 = scmp.ne.s32.totalorder %s582, %s583
      %p594 = scmp.eq.s32.totalorder %s50, 0
      %p595 = por %p593, %p594
      %p596 = scmp.ne.s32.totalorder %s582, %s583
      %p597 = scmp.eq.s32.totalorder %s51, 1
      %p598 = por %p596, %p597
      %p600 = scmp.ne.s32.totalorder %s583, %s599
      %p601 = scmp.eq.s32.totalorder %s51, 0
      %p602 = por %p600, %p601
      %p603 = scmp.le.s32.totalorder 1, %s45
      %p604 = scmp.lt.s32.totalorder %s45, 3
      %p605 = pnand %p603, %p604
      %p606 = pneg %p605
      // Predicated region
      $region9: #{tpu_custom_call.1} parent=5 // pred_check
        _
      $region10: #{tpu_custom_call.1} parent=5 // pred_check_branch
        %608 = sbr.rel (%p605) target = $region12
      $region11: #{tpu_custom_call.1} parent=5 // pred_region
        %s609 = ssub.s32 %s45, 1
        // Predicated region
        $region13: #{tpu_custom_call.1} parent=11 // pred_check
          %p610 = pneg %p170
        $region14: #{tpu_custom_call.1} parent=11 // pred_check_branch
          %612 = sbr.rel (%p610) target = $region16
        $region15: #{tpu_custom_call.1} parent=11 // pred_region
          %s614 = ssub.s32 32, 32
          %615 = vsyncadd [#allocation11], %s614
          %s617 = sshll.u32 [#allocation12], 4
          %s618 = int_to_ptr.vmem [resolvable:$true] %s617
          %620 = dma.hbm_to_vmem [thread:$0]  %s4, 32, %s618, [#allocation11]
        $region16: #{tpu_custom_call.1} parent=11 // pred_fallthru
          _
        // Predicated region
        $region17: #{tpu_custom_call.1} parent=11 // pred_check
          %p621 = pneg %p191
        $region18: #{tpu_custom_call.1} parent=11 // pred_check_branch
          %623 = sbr.rel (%p621) target = $region20
        $region19: #{tpu_custom_call.1} parent=11 // pred_region
          _
        $region20: #{tpu_custom_call.1} parent=11 // pred_fallthru
          _
        // Predicated region
        $region21: #{tpu_custom_call.1} parent=11 // pred_check
          %p624 = pneg %p212
        $region22: #{tpu_custom_call.1} parent=11 // pred_check_branch
          %626 = sbr.rel (%p624) target = $region24
        $region23: #{tpu_custom_call.1} parent=11 // pred_region
          %s628 = ssub.s32 6144, 6144
          %629 = vsyncadd [#allocation14], %s628
          %s630 = sshll.u32 [#allocation13], 4
          %s631 = int_to_ptr.vmem [resolvable:$true] %s630
          %636 = dma.hbm_to_vmem [thread:$0]  %s6, 6144, %s631, [#allocation14], 384, 384, 24
        $region24: #{tpu_custom_call.1} parent=11 // pred_fallthru
          _
        // Predicated region
        $region25: #{tpu_custom_call.1} parent=11 // pred_check
          %p637 = pneg %p233
        $region26: #{tpu_custom_call.1} parent=11 // pred_check_branch
          %639 = sbr.rel (%p637) target = $region28
        $region27: #{tpu_custom_call.1} parent=11 // pred_region
          _
        $region28: #{tpu_custom_call.1} parent=11 // pred_fallthru
          _
        // Predicated region
        $region29: #{tpu_custom_call.1} parent=11 // pred_check
          %p640 = pneg %p254
        $region30: #{tpu_custom_call.1} parent=11 // pred_check_branch
          %642 = sbr.rel (%p640) target = $region32
        $region31: #{tpu_custom_call.1} parent=11 // pred_region
          %s644 = ssub.s32 2048, 2048
          %645 = vsyncadd [#allocation14], %s644
          %s646 = sshll.u32 [#allocation15], 4
          %s647 = int_to_ptr.vmem [resolvable:$true] %s646
          %652 = dma.hbm_to_vmem [thread:$0]  %s8, 2048, %s647, [#allocation14], 128, 128, 8
        $region32: #{tpu_custom_call.1} parent=11 // pred_fallthru
          _
        // Predicated region
        $region33: #{tpu_custom_call.1} parent=11 // pred_check
          %p653 = pneg %p275
        $region34: #{tpu_custom_call.1} parent=11 // pred_check_branch
          %655 = sbr.rel (%p653) target = $region36
        $region35: #{tpu_custom_call.1} parent=11 // pred_region
          _
        $region36: #{tpu_custom_call.1} parent=11 // pred_fallthru
          _
        // Predicated region
        $region37: #{tpu_custom_call.1} parent=11 // pred_check
          %p656 = pneg %p296
        $region38: #{tpu_custom_call.1} parent=11 // pred_check_branch
          %658 = sbr.rel (%p656) target = $region40
        $region39: #{tpu_custom_call.1} parent=11 // pred_region
          _
        $region40: #{tpu_custom_call.1} parent=11 // pred_fallthru
          _
        // Predicated region
        $region41: #{tpu_custom_call.1} parent=11 // pred_check
          %p659 = pneg %p317
        $region42: #{tpu_custom_call.1} parent=11 // pred_check_branch
          %661 = sbr.rel (%p659) target = $region44
        $region43: #{tpu_custom_call.1} parent=11 // pred_region
          _
        $region44: #{tpu_custom_call.1} parent=11 // pred_fallthru
          _
        // Predicated region
        $region45: #{tpu_custom_call.1} parent=11 // pred_check
          %p662 = pneg %p338
        $region46: #{tpu_custom_call.1} parent=11 // pred_check_branch
          %664 = sbr.rel (%p662) target = $region48
        $region47: #{tpu_custom_call.1} parent=11 // pred_region
          %s666 = ssub.s32 6144, 6144
          %667 = vsyncadd [#allocation17], %s666
          %s668 = sshll.u32 [#allocation16], 4
          %s669 = int_to_ptr.vmem [resolvable:$true] %s668
          %674 = dma.hbm_to_vmem [thread:$0]  %s12, 6144, %s669, [#allocation17], 384, 384, 24
        $region48: #{tpu_custom_call.1} parent=11 // pred_fallthru
          _
        // Predicated region
        $region49: #{tpu_custom_call.1} parent=11 // pred_check
          %p675 = pneg %p359
        $region50: #{tpu_custom_call.1} parent=11 // pred_check_branch
          %677 = sbr.rel (%p675) target = $region52
        $region51: #{tpu_custom_call.1} parent=11 // pred_region
          _
        $region52: #{tpu_custom_call.1} parent=11 // pred_fallthru
          _
        // Predicated region
        $region53: #{tpu_custom_call.1} parent=11 // pred_check
          %p678 = pneg %p380
        $region54: #{tpu_custom_call.1} parent=11 // pred_check_branch
          %680 = sbr.rel (%p678) target = $region56
        $region55: #{tpu_custom_call.1} parent=11 // pred_region
          %s682 = ssub.s32 2048, 2048
          %683 = vsyncadd [#allocation17], %s682
          %s684 = sshll.u32 [#allocation18], 4
          %s685 = int_to_ptr.vmem [resolvable:$true] %s684
          %690 = dma.hbm_to_vmem [thread:$0]  %s14, 2048, %s685, [#allocation17], 128, 128, 8
        $region56: #{tpu_custom_call.1} parent=11 // pred_fallthru
          _
        // Predicated region
        $region57: #{tpu_custom_call.1} parent=11 // pred_check
          %p691 = pneg %p401
        $region58: #{tpu_custom_call.1} parent=11 // pred_check_branch
          %693 = sbr.rel (%p691) target = $region60
        $region59: #{tpu_custom_call.1} parent=11 // pred_region
          _
        $region60: #{tpu_custom_call.1} parent=11 // pred_fallthru
          _
        // Predicated region
        $region61: #{tpu_custom_call.1} parent=11 // pred_check
          %p694 = pneg %p422
        $region62: #{tpu_custom_call.1} parent=11 // pred_check_branch
          %696 = sbr.rel (%p694) target = $region64
        $region63: #{tpu_custom_call.1} parent=11 // pred_region
          _
        $region64: #{tpu_custom_call.1} parent=11 // pred_fallthru
          _
        // Predicated region
        $region65: #{tpu_custom_call.1} parent=11 // pred_check
          %p697 = pneg %p443
        $region66: #{tpu_custom_call.1} parent=11 // pred_check_branch
          %699 = sbr.rel (%p697) target = $region68
        $region67: #{tpu_custom_call.1} parent=11 // pred_region
          _
        $region68: #{tpu_custom_call.1} parent=11 // pred_fallthru
          _
        // Predicated region
        $region69: #{tpu_custom_call.1} parent=11 // pred_check
          %p700 = pneg %p464
        $region70: #{tpu_custom_call.1} parent=11 // pred_check_branch
          %702 = sbr.rel (%p700) target = $region72
        $region71: #{tpu_custom_call.1} parent=11 // pred_region
          %s704 = ssub.s32 2048, 2048
          %705 = vsyncadd [#allocation20], %s704
          %s706 = sshll.u32 [#allocation19], 4
          %s707 = int_to_ptr.vmem [resolvable:$true] %s706
          %712 = dma.hbm_to_vmem [thread:$0]  %s18, 2048, %s707, [#allocation20], 128, 128, 8
        $region72: #{tpu_custom_call.1} parent=11 // pred_fallthru
          _
        // Predicated region
        $region73: #{tpu_custom_call.1} parent=11 // pred_check
          %p713 = pneg %p485
        $region74: #{tpu_custom_call.1} parent=11 // pred_check_branch
          %715 = sbr.rel (%p713) target = $region76
        $region75: #{tpu_custom_call.1} parent=11 // pred_region
          _
        $region76: #{tpu_custom_call.1} parent=11 // pred_fallthru
          _
        // Predicated region
        $region77: #{tpu_custom_call.1} parent=11 // pred_check
          %p716 = pneg %p506
        $region78: #{tpu_custom_call.1} parent=11 // pred_check_branch
          %718 = sbr.rel (%p716) target = $region80
        $region79: #{tpu_custom_call.1} parent=11 // pred_region
          %s720 = ssub.s32 2048, 2048
          %721 = vsyncadd [#allocation20], %s720
          %s722 = sshll.u32 [#allocation21], 4
          %s723 = int_to_ptr.vmem [resolvable:$true] %s722
          %728 = dma.hbm_to_vmem [thread:$0]  %s20, 2048, %s723, [#allocation20], 128, 128, 8
        $region80: #{tpu_custom_call.1} parent=11 // pred_fallthru
          _
        // Predicated region
        $region81: #{tpu_custom_call.1} parent=11 // pred_check
          %p729 = pneg %p527
        $region82: #{tpu_custom_call.1} parent=11 // pred_check_branch
          %731 = sbr.rel (%p729) target = $region84
        $region83: #{tpu_custom_call.1} parent=11 // pred_region
          _
        $region84: #{tpu_custom_call.1} parent=11 // pred_fallthru
          _
        // Predicated region
        $region85: #{tpu_custom_call.1} parent=11 // pred_check
          %p732 = pneg %p548
        $region86: #{tpu_custom_call.1} parent=11 // pred_check_branch
          %734 = sbr.rel (%p732) target = $region88
        $region87: #{tpu_custom_call.1} parent=11 // pred_region
          _
        $region88: #{tpu_custom_call.1} parent=11 // pred_fallthru
          _
        // Predicated region
        $region89: #{tpu_custom_call.1} parent=11 // pred_check
          %p735 = pneg %p569
        $region90: #{tpu_custom_call.1} parent=11 // pred_check_branch
          %737 = sbr.rel (%p735) target = $region92
        $region91: #{tpu_custom_call.1} parent=11 // pred_region
          _
        $region92: #{tpu_custom_call.1} parent=11 // pred_fallthru
          _
      $region12: #{tpu_custom_call.1} parent=5 // pred_fallthru
        _
      %p738 = scmp.lt.s32.totalorder %s45, 2
      // Predicated region
      $region93: #{tpu_custom_call.1} parent=5 // pred_check
        %p739 = pneg %p738
      $region94: #{tpu_custom_call.1} parent=5 // pred_check_branch
        %741 = sbr.rel (%p739) target = $region96
      $region95: #{tpu_custom_call.1} parent=5 // pred_region
        // Predicated region
        $region97: #{tpu_custom_call.1} parent=95 // pred_check
          %p742 = pneg %p65
        $region98: #{tpu_custom_call.1} parent=95 // pred_check_branch
          %744 = sbr.rel (%p742) target = $region100
        $region99: #{tpu_custom_call.1} parent=95 // pred_region
          %s745 = sand.u32 %s55, 1
          %s746 = scalar_lea.sflag [#allocation5], %s745
          %s747 = sand.u32 %s55, 1
          %s748 = smul.addr %s747, 8
          %s749 = scalar_lea.vmem [#allocation4], %s748
          %s751 = ssub.s32 128, 128
          %752 = vsyncadd %s746, %s751
          %s753 = smul.addr %s45, 128
          %s754 = scalar_lea.hbm %s0, %s753
          %s756 = sshll.u32 %s749, 4
          %s757 = int_to_ptr.vmem [resolvable:$true] %s756
          %759 = dma.hbm_to_vmem [thread:$0]  %s754, 128, %s757, %s746
        $region100: #{tpu_custom_call.1} parent=95 // pred_fallthru
          _
        // Predicated region
        $region101: #{tpu_custom_call.1} parent=95 // pred_check
          %p760 = pneg %p91
        $region102: #{tpu_custom_call.1} parent=95 // pred_check_branch
          %762 = sbr.rel (%p760) target = $region104
        $region103: #{tpu_custom_call.1} parent=95 // pred_region
          %s763 = sand.u32 %s45, 1
          %s764 = scalar_lea.sflag [#allocation8], %s763
          %s765 = sand.u32 %s81, 1
          %s766 = smul.addr %s765, 8
          %s767 = scalar_lea.vmem [#allocation7], %s766
          %s769 = ssub.s32 128, 128
          %770 = vsyncadd %s764, %s769
          %s771 = smul.addr %s45, 128
          %s772 = scalar_lea.hbm %s1, %s771
          %s774 = sshll.u32 %s767, 4
          %s775 = int_to_ptr.vmem [resolvable:$true] %s774
          %777 = dma.hbm_to_vmem [thread:$0]  %s772, 128, %s775, %s764
        $region104: #{tpu_custom_call.1} parent=95 // pred_fallthru
          _
        // Predicated region
        $region105: #{tpu_custom_call.1} parent=95 // pred_check
          %p778 = pneg %p117
        $region106: #{tpu_custom_call.1} parent=95 // pred_check_branch
          %780 = sbr.rel (%p778) target = $region108
        $region107: #{tpu_custom_call.1} parent=95 // pred_region
          %s781 = sand.u32 %s45, 1
          %s782 = scalar_lea.sflag [#allocation8], %s781
          %s783 = sand.u32 %s107, 1
          %s784 = smul.addr %s783, 16
          %s785 = scalar_lea.vmem [#allocation9], %s784
          %s787 = ssub.s32 256, 256
          %788 = vsyncadd %s782, %s787
          %s789 = smul.addr %s45, 2
          %s790 = smul.addr %s789, 128
          %s791 = scalar_lea.hbm %s2, %s790
          %s792 = sshll.u32 %s785, 4
          %s793 = int_to_ptr.vmem [resolvable:$true] %s792
          %798 = dma.hbm_to_vmem [thread:$0]  %s791, 256, %s793, %s782, 128, 128, 8
        $region108: #{tpu_custom_call.1} parent=95 // pred_fallthru
          _
        // Predicated region
        $region109: #{tpu_custom_call.1} parent=95 // pred_check
          %p799 = pneg %p143
        $region110: #{tpu_custom_call.1} parent=95 // pred_check_branch
          %801 = sbr.rel (%p799) target = $region112
        $region111: #{tpu_custom_call.1} parent=95 // pred_region
          %s802 = sand.u32 %s45, 1
          %s803 = scalar_lea.sflag [#allocation11], %s802
          %s804 = sand.u32 %s133, 1
          %s805 = smul.addr %s804, 16
          %s806 = scalar_lea.vmem [#allocation10], %s805
          %s808 = ssub.s32 256, 256
          %809 = vsyncadd %s803, %s808
          %s810 = smul.addr %s45, 2
          %s811 = smul.addr %s810, 128
          %s812 = scalar_lea.hbm %s3, %s811
          %s813 = sshll.u32 %s806, 4
          %s814 = int_to_ptr.vmem [resolvable:$true] %s813
          %819 = dma.hbm_to_vmem [thread:$0]  %s812, 256, %s814, %s803, 128, 128, 8
        $region112: #{tpu_custom_call.1} parent=95 // pred_fallthru
          _
      $region96: #{tpu_custom_call.1} parent=5 // pred_fallthru
        _
      %p820 = scmp.le.s32.totalorder 1, %s45
      %p821 = scmp.lt.s32.totalorder %s45, 3
      %p822 = pnand %p820, %p821
      %p823 = pneg %p822
      // Predicated region
      $region113: #{tpu_custom_call.1} parent=5 // pred_check
        _
      $region114: #{tpu_custom_call.1} parent=5 // pred_check_branch
        %825 = sbr.rel (%p822) target = $region116
      $region115: #{tpu_custom_call.1} parent=5 // pred_region
        %s826 = ssub.s32 %s45, 1
        %s827 = sand.u32 %s58, 1
        %s828 = scalar_lea.sflag [#allocation5], %s827
        %s829 = sand.u32 %s58, 1
        %s830 = smul.addr %s829, 8
        %s831 = scalar_lea.vmem [#allocation4], %s830
        // Predicated region
        $region117: #{tpu_custom_call.1} parent=115 // pred_check
          %p832 = pneg %p71
        $region118: #{tpu_custom_call.1} parent=115 // pred_check_branch
          %834 = sbr.rel (%p832) target = $region120
        $region119: #{tpu_custom_call.1} parent=115 // pred_region
          %835 = dma.done %s828, 128
        $region120: #{tpu_custom_call.1} parent=115 // pred_fallthru
          _
        %s836 = sand.u32 %s50, 1
        %s837 = scalar_lea.sflag [#allocation8], %s836
        %s838 = sand.u32 %s84, 1
        %s839 = smul.addr %s838, 8
        %s840 = scalar_lea.vmem [#allocation7], %s839
        // Predicated region
        $region121: #{tpu_custom_call.1} parent=115 // pred_check
          %p841 = pneg %p97
        $region122: #{tpu_custom_call.1} parent=115 // pred_check_branch
          %843 = sbr.rel (%p841) target = $region124
        $region123: #{tpu_custom_call.1} parent=115 // pred_region
          %844 = dma.done %s837, 128
        $region124: #{tpu_custom_call.1} parent=115 // pred_fallthru
          _
        %s845 = sand.u32 %s50, 1
        %s846 = scalar_lea.sflag [#allocation8], %s845
        %s847 = sand.u32 %s110, 1
        %s848 = smul.addr %s847, 16
        %s849 = scalar_lea.vmem [#allocation9], %s848
        // Predicated region
        $region125: #{tpu_custom_call.1} parent=115 // pred_check
          %p850 = pneg %p123
        $region126: #{tpu_custom_call.1} parent=115 // pred_check_branch
          %852 = sbr.rel (%p850) target = $region128
        $region127: #{tpu_custom_call.1} parent=115 // pred_region
          %853 = dma.done %s846, 256
        $region128: #{tpu_custom_call.1} parent=115 // pred_fallthru
          _
        %s854 = sand.u32 %s50, 1
        %s855 = scalar_lea.sflag [#allocation11], %s854
        %s856 = sand.u32 %s136, 1
        %s857 = smul.addr %s856, 16
        %s858 = scalar_lea.vmem [#allocation10], %s857
        // Predicated region
        $region129: #{tpu_custom_call.1} parent=115 // pred_check
          %p859 = pneg %p149
        $region130: #{tpu_custom_call.1} parent=115 // pred_check_branch
          %861 = sbr.rel (%p859) target = $region132
        $region131: #{tpu_custom_call.1} parent=115 // pred_region
          %862 = dma.done %s855, 256
        $region132: #{tpu_custom_call.1} parent=115 // pred_fallthru
          _
        // Predicated region
        $region133: #{tpu_custom_call.1} parent=115 // pred_check
          %p863 = pneg %p170
        $region134: #{tpu_custom_call.1} parent=115 // pred_check_branch
          %865 = sbr.rel (%p863) target = $region136
        $region135: #{tpu_custom_call.1} parent=115 // pred_region
          %866 = dma.done [#allocation11], 32
        $region136: #{tpu_custom_call.1} parent=115 // pred_fallthru
          _
        // Predicated region
        $region137: #{tpu_custom_call.1} parent=115 // pred_check
          %p867 = pneg %p212
        $region138: #{tpu_custom_call.1} parent=115 // pred_check_branch
          %869 = sbr.rel (%p867) target = $region140
        $region139: #{tpu_custom_call.1} parent=115 // pred_region
          %870 = dma.done [#allocation14], 6144
        $region140: #{tpu_custom_call.1} parent=115 // pred_fallthru
          _
        // Predicated region
        $region141: #{tpu_custom_call.1} parent=115 // pred_check
          %p871 = pneg %p254
        $region142: #{tpu_custom_call.1} parent=115 // pred_check_branch
          %873 = sbr.rel (%p871) target = $region144
        $region143: #{tpu_custom_call.1} parent=115 // pred_region
          %874 = dma.done [#allocation14], 2048
        $region144: #{tpu_custom_call.1} parent=115 // pred_fallthru
          _
        // Predicated region
        $region145: #{tpu_custom_call.1} parent=115 // pred_check
          %p875 = pneg %p338
        $region146: #{tpu_custom_call.1} parent=115 // pred_check_branch
          %877 = sbr.rel (%p875) target = $region148
        $region147: #{tpu_custom_call.1} parent=115 // pred_region
          %878 = dma.done [#allocation17], 6144
        $region148: #{tpu_custom_call.1} parent=115 // pred_fallthru
          _
        // Predicated region
        $region149: #{tpu_custom_call.1} parent=115 // pred_check
          %p879 = pneg %p380
        $region150: #{tpu_custom_call.1} parent=115 // pred_check_branch
          %881 = sbr.rel (%p879) target = $region152
        $region151: #{tpu_custom_call.1} parent=115 // pred_region
          %882 = dma.done [#allocation17], 2048
        $region152: #{tpu_custom_call.1} parent=115 // pred_fallthru
          _
        // Predicated region
        $region153: #{tpu_custom_call.1} parent=115 // pred_check
          %p883 = pneg %p464
        $region154: #{tpu_custom_call.1} parent=115 // pred_check_branch
          %885 = sbr.rel (%p883) target = $region156
        $region155: #{tpu_custom_call.1} parent=115 // pred_region
          %886 = dma.done [#allocation20], 2048
        $region156: #{tpu_custom_call.1} parent=115 // pred_fallthru
          _
        // Predicated region
        $region157: #{tpu_custom_call.1} parent=115 // pred_check
          %p887 = pneg %p506
        $region158: #{tpu_custom_call.1} parent=115 // pred_check_branch
          %889 = sbr.rel (%p887) target = $region160
        $region159: #{tpu_custom_call.1} parent=115 // pred_region
          %890 = dma.done [#allocation20], 2048
        $region160: #{tpu_custom_call.1} parent=115 // pred_fallthru
          _
        %s891 = sand.u32 %s58, 1
        %s892 = scalar_lea.sflag [#allocation5], %s891
        %s893 = sand.u32 %s58, 1
        %s894 = smul.addr %s893, 8
        %s895 = scalar_lea.vmem [#allocation4], %s894
        %p896 = pneg %p71
        %p897 = pneg %p68
        %s898 = sand.u32 %s50, 1
        %s899 = scalar_lea.sflag [#allocation8], %s898
        %s900 = sand.u32 %s84, 1
        %s901 = smul.addr %s900, 8
        %s902 = scalar_lea.vmem [#allocation7], %s901
        %p903 = pneg %p97
        %p904 = pneg %p94
        %s905 = sand.u32 %s50, 1
        %s906 = scalar_lea.sflag [#allocation8], %s905
        %s907 = sand.u32 %s110, 1
        %s908 = smul.addr %s907, 16
        %s909 = scalar_lea.vmem [#allocation9], %s908
        %p910 = pneg %p123
        %p911 = pneg %p120
        %s912 = sand.u32 %s50, 1
        %s913 = scalar_lea.sflag [#allocation11], %s912
        %s914 = sand.u32 %s136, 1
        %s915 = smul.addr %s914, 16
        %s916 = scalar_lea.vmem [#allocation10], %s915
        %p917 = pneg %p149
        %p918 = pneg %p146
        %p919 = pneg %p170
        %p920 = pneg %p167
        %p921 = pneg %p191
        %p922 = pneg %p188
        %p923 = pneg %p212
        %p924 = pneg %p209
        %p925 = pneg %p233
        %p926 = pneg %p230
        %p927 = pneg %p254
        %p928 = pneg %p251
        %p929 = pneg %p275
        %p930 = pneg %p272
        %p931 = pneg %p296
        %p932 = pneg %p293
        %p933 = pneg %p317
        %p934 = pneg %p314
        %p935 = pneg %p338
        %p936 = pneg %p335
        %p937 = pneg %p359
        %p938 = pneg %p356
        %p939 = pneg %p380
        %p940 = pneg %p377
        %p941 = pneg %p401
        %p942 = pneg %p398
        %p943 = pneg %p422
        %p944 = pneg %p419
        %p945 = pneg %p443
        %p946 = pneg %p440
        %p947 = pneg %p464
        %p948 = pneg %p461
        %p949 = pneg %p485
        %p950 = pneg %p482
        %p951 = pneg %p506
        %p952 = pneg %p503
        %p953 = pneg %p527
        %p954 = pneg %p524
        %p955 = pneg %p548
        %p956 = pneg %p545
        %p957 = pneg %p569
        %p958 = pneg %p566
        %p959 = pneg %p595
        %p960 = pneg %p592
        %s961 = sand.u32 %s582, 1
        %s962 = scalar_lea.sflag [#allocation6], %s961
        %s963 = sand.u32 %s582, 1
        %s964 = smul.addr %s963, 8
        %s965 = scalar_lea.vmem [#allocation22], %s964
        %v966 = vlaneseq
        %v967 = vand.u32 %v966, 127
        %vm968 = vcmp.lt.s32.totalorder %v967, 32
        %v969 = vsel %vm968, 1, 0
        %v970 = vcvt.s32.f32 %v969
        %s971 = scalar_lea.vmem [#allocation12], %s50
        %v972 = vld [vmem:[%s971] sm:$0x1]
        %vm973 = vcmp.gt.s32.totalorder %v972, 0
        %v974 = vsel %vm973, -1e+30, 0.0
        %s975 = scalar_lea.vmem %s5, %s50
        %v976 = vld [vmem:[%s975] sm:$0x1]
        %vm977 = vcmp.gt.s32.totalorder %v976, 0
        %v978 = vsel %vm977, -1e+30, 0.0
        %979 = vst [vmem:[#allocation3] sm:$0xff] 0.0
        %v980 = vld [vmem:[%s831] sm:$0xff]
        %v981 = vld [vmem:[%s840] sm:$0xff]
        %v982 = vld [vmem:[%s849] sm:$0xff]
        %v983 = vld [vmem:[%s849 + $0x8] sm:$0xff]
        %v984 = vld [vmem:[%s858] sm:$0xff]
        %v985 = vld [vmem:[%s858 + $0x8] sm:$0xff]
        %v986 = vadd.f32 %v980, %v981
        %v987 = vadd.f32 %v982, %v984
        %v988 = vadd.f32 %v983, %v985
        %v989 = vld [vmem:[#allocation13] sm:$0xff]
        %v990 = vld [vmem:[#allocation13 + $0x18] sm:$0xff]
        %v991 = vld [vmem:[#allocation13 + $0x30] sm:$0xff]
        %v992 = vld [vmem:[#allocation13 + $0x48] sm:$0xff]
        %v993 = vld [vmem:[#allocation13 + $0x60] sm:$0xff]
        %v994 = vld [vmem:[#allocation13 + $0x78] sm:$0xff]
        %v995 = vld [vmem:[#allocation13 + $0x90] sm:$0xff]
        %v996 = vld [vmem:[#allocation13 + $0xa8] sm:$0xff]
        %v997 = vld [vmem:[#allocation13 + $0xc0] sm:$0xff]
        %v998 = vld [vmem:[#allocation13 + $0xd8] sm:$0xff]
        %v999 = vld [vmem:[#allocation13 + $0xf0] sm:$0xff]
        %v1000 = vld [vmem:[#allocation13 + $0x108] sm:$0xff]
        %v1001 = vld [vmem:[#allocation13 + $0x120] sm:$0xff]
        %v1002 = vld [vmem:[#allocation13 + $0x138] sm:$0xff]
        %v1003 = vld [vmem:[#allocation13 + $0x150] sm:$0xff]
        %v1004 = vld [vmem:[#allocation13 + $0x168] sm:$0xff]
        %v1005 = vld [vmem:[%s7] sm:$0x1]
        %v1007 = vlaneseq
        %v1008 = vshrl.u32 %v1007, 7
        %v1009 = vsub.s32 0, %v1008
        %v1010 = vrot.slane %v1005, %v1009
        %1012 = vmatprep.subr.mxu0 0.0
        %1013 = vmatpush1.msra.mxu0 %v1004
        %1014 = vmatprep.subr.mxu0 0.0
        %1015 = vmatpush1.msra.mxu0 %v1003
        %1016 = vmatprep.subr.mxu0 0.0
        %1017 = vmatpush1.msra.mxu0 %v1002
        %1018 = vmatprep.subr.mxu0 0.0
        %1019 = vmatpush1.msra.mxu0 %v1001
        %1020 = vmatprep.subr.mxu0 0.0
        %1021 = vmatpush1.msra.mxu0 %v1000
        %1022 = vmatprep.subr.mxu0 0.0
        %1023 = vmatpush1.msra.mxu0 %v999
        %1024 = vmatprep.subr.mxu0 0.0
        %1025 = vmatpush1.msra.mxu0 %v998
        %1026 = vmatprep.subr.mxu0 0.0
        %1027 = vmatpush1.msra.mxu0 %v997
        %1028 = vmatprep.subr.mxu0 0.0
        %1029 = vmatpush1.msra.mxu0 %v996
        %1030 = vmatprep.subr.mxu0 0.0
        %1031 = vmatpush1.msra.mxu0 %v995
        %1032 = vmatprep.subr.mxu0 0.0
        %1033 = vmatpush1.msra.mxu0 %v994
        %1034 = vmatprep.subr.mxu0 0.0
        %1035 = vmatpush1.msra.mxu0 %v993
        %1036 = vmatprep.subr.mxu0 0.0
        %1037 = vmatpush1.msra.mxu0 %v992
        %1038 = vmatprep.subr.mxu0 0.0
        %1039 = vmatpush1.msra.mxu0 %v991
        %1040 = vmatprep.subr.mxu0 0.0
        %1041 = vmatpush1.msra.mxu0 %v990
        %1042 = vmatprep.subr.mxu0 0.0
        %1043 = vmatpush1.msra.mxu0 %v989
        %1044 = vmatprep.subr.mxu0 0.0
        %1045 = vmatpush2.msra.mxu0 0.0
        %1046 = vmatprep.subr.mxu0 0.0
        %1047 = vmatpush2.msra.mxu0 0.0
        %1048 = vmatprep.subr.mxu0 0.0
        %1049 = vmatpush2.msra.mxu0 0.0
        %1050 = vmatprep.subr.mxu0 0.0
        %1051 = vmatpush2.msra.mxu0 0.0
        %1052 = vmatprep.subr.mxu0 0.0
        %1053 = vmatpush2.msra.mxu0 0.0
        %1054 = vmatprep.subr.mxu0 0.0
        %1055 = vmatpush2.msra.mxu0 0.0
        %1056 = vmatprep.subr.mxu0 0.0
        %1057 = vmatpush2.msra.mxu0 0.0
        %1058 = vmatprep.subr.mxu0 0.0
        %1059 = vmatpush2.msra.mxu0 0.0
        %1060 = vmatprep.subr.mxu0 0.0
        %1061 = vmatpush2.msra.mxu0 0.0
        %1062 = vmatprep.subr.mxu0 0.0
        %1063 = vmatpush2.msra.mxu0 0.0
        %1064 = vmatprep.subr.mxu0 0.0
        %1065 = vmatpush2.msra.mxu0 0.0
        %1066 = vmatprep.subr.mxu0 0.0
        %1067 = vmatpush2.msra.mxu0 0.0
        %1068 = vmatprep.subr.mxu0 0.0
        %1069 = vmatpush2.msra.mxu0 0.0
        %1070 = vmatprep.subr.mxu0 0.0
        %1071 = vmatpush2.msra.mxu0 0.0
        %1072 = vmatprep.subr.mxu0 0.0
        %1073 = vmatpush2.msra.mxu0 0.0
        %1074 = vmatprep.subr.mxu0 0.0
        %1075 = vmatpush2.msra.mxu0 0.0
        %1076 = vmatprep.mubr.f32.mxu0 0.0
        %1077 = vmatmul.mubr.f32.gmra.mxu0 %v986
        %v1078 = vpop.f32.mrf.mxu0
        %v1079 = vadd.f32 %v1010, %v1078
        %v1080 = vpop.f32.mrf.mxu0
        %1081 = vdwg.mxu0
        %v1082 = vld [vmem:[#allocation13 + $0x8] sm:$0xff]
        %v1083 = vld [vmem:[#allocation13 + $0x20] sm:$0xff]
        %v1084 = vld [vmem:[#allocation13 + $0x38] sm:$0xff]
        %v1085 = vld [vmem:[#allocation13 + $0x50] sm:$0xff]
        %v1086 = vld [vmem:[#allocation13 + $0x68] sm:$0xff]
        %v1087 = vld [vmem:[#allocation13 + $0x80] sm:$0xff]
        %v1088 = vld [vmem:[#allocation13 + $0x98] sm:$0xff]
        %v1089 = vld [vmem:[#allocation13 + $0xb0] sm:$0xff]
        %v1090 = vld [vmem:[#allocation13 + $0xc8] sm:$0xff]
        %v1091 = vld [vmem:[#allocation13 + $0xe0] sm:$0xff]
        %v1092 = vld [vmem:[#allocation13 + $0xf8] sm:$0xff]
        %v1093 = vld [vmem:[#allocation13 + $0x110] sm:$0xff]
        %v1094 = vld [vmem:[#allocation13 + $0x128] sm:$0xff]
        %v1095 = vld [vmem:[#allocation13 + $0x140] sm:$0xff]
        %v1096 = vld [vmem:[#allocation13 + $0x158] sm:$0xff]
        %v1097 = vld [vmem:[#allocation13 + $0x170] sm:$0xff]
        %v1098 = vld [vmem:[%s7 + $0x1] sm:$0x1]
        %v1100 = vlaneseq
        %v1101 = vshrl.u32 %v1100, 7
        %v1102 = vsub.s32 0, %v1101
        %v1103 = vrot.slane %v1098, %v1102
        %1105 = vmatprep.subr.mxu0 0.0
        %1106 = vmatpush1.msra.mxu0 %v1097
        %1107 = vmatprep.subr.mxu0 0.0
        %1108 = vmatpush1.msra.mxu0 %v1096
        %1109 = vmatprep.subr.mxu0 0.0
        %1110 = vmatpush1.msra.mxu0 %v1095
        %1111 = vmatprep.subr.mxu0 0.0
        %1112 = vmatpush1.msra.mxu0 %v1094
        %1113 = vmatprep.subr.mxu0 0.0
        %1114 = vmatpush1.msra.mxu0 %v1093
        %1115 = vmatprep.subr.mxu0 0.0
        %1116 = vmatpush1.msra.mxu0 %v1092
        %1117 = vmatprep.subr.mxu0 0.0
        %1118 = vmatpush1.msra.mxu0 %v1091
        %1119 = vmatprep.subr.mxu0 0.0
        %1120 = vmatpush1.msra.mxu0 %v1090
        %1121 = vmatprep.subr.mxu0 0.0
        %1122 = vmatpush1.msra.mxu0 %v1089
        %1123 = vmatprep.subr.mxu0 0.0
        %1124 = vmatpush1.msra.mxu0 %v1088
        %1125 = vmatprep.subr.mxu0 0.0
        %1126 = vmatpush1.msra.mxu0 %v1087
        %1127 = vmatprep.subr.mxu0 0.0
        %1128 = vmatpush1.msra.mxu0 %v1086
        %1129 = vmatprep.subr.mxu0 0.0
        %1130 = vmatpush1.msra.mxu0 %v1085
        %1131 = vmatprep.subr.mxu0 0.0
        %1132 = vmatpush1.msra.mxu0 %v1084
        %1133 = vmatprep.subr.mxu0 0.0
        %1134 = vmatpush1.msra.mxu0 %v1083
        %1135 = vmatprep.subr.mxu0 0.0
        %1136 = vmatpush1.msra.mxu0 %v1082
        %1137 = vmatprep.subr.mxu0 0.0
        %1138 = vmatpush2.msra.mxu0 0.0
        %1139 = vmatprep.subr.mxu0 0.0
        %1140 = vmatpush2.msra.mxu0 0.0
        %1141 = vmatprep.subr.mxu0 0.0
        %1142 = vmatpush2.msra.mxu0 0.0
        %1143 = vmatprep.subr.mxu0 0.0
        %1144 = vmatpush2.msra.mxu0 0.0
        %1145 = vmatprep.subr.mxu0 0.0
        %1146 = vmatpush2.msra.mxu0 0.0
        %1147 = vmatprep.subr.mxu0 0.0
        %1148 = vmatpush2.msra.mxu0 0.0
        %1149 = vmatprep.subr.mxu0 0.0
        %1150 = vmatpush2.msra.mxu0 0.0
        %1151 = vmatprep.subr.mxu0 0.0
        %1152 = vmatpush2.msra.mxu0 0.0
        %1153 = vmatprep.subr.mxu0 0.0
        %1154 = vmatpush2.msra.mxu0 0.0
        %1155 = vmatprep.subr.mxu0 0.0
        %1156 = vmatpush2.msra.mxu0 0.0
        %1157 = vmatprep.subr.mxu0 0.0
        %1158 = vmatpush2.msra.mxu0 0.0
        %1159 = vmatprep.subr.mxu0 0.0
        %1160 = vmatpush2.msra.mxu0 0.0
        %1161 = vmatprep.subr.mxu0 0.0
        %1162 = vmatpush2.msra.mxu0 0.0
        %1163 = vmatprep.subr.mxu0 0.0
        %1164 = vmatpush2.msra.mxu0 0.0
        %1165 = vmatprep.subr.mxu0 0.0
        %1166 = vmatpush2.msra.mxu0 0.0
        %1167 = vmatprep.subr.mxu0 0.0
        %1168 = vmatpush2.msra.mxu0 0.0
        %1169 = vmatprep.mubr.f32.mxu0 0.0
        %1170 = vmatmul.mubr.f32.gmra.mxu0 %v987
        %v1171 = vpop.f32.mrf.mxu0
        %v1172 = vadd.f32 %v1103, %v1171
        %v1173 = vpop.f32.mrf.mxu0
        %1174 = vmatprep.mubr.f32.mxu0 0.0
        %1175 = vmatmul.mubr.f32.gmra.mxu0 %v988
        %v1176 = vpop.f32.mrf.mxu0
        %v1177 = vadd.f32 %v1103, %v1176
        %v1178 = vpop.f32.mrf.mxu0
        %1179 = vdwg.mxu0
        %v1180 = vld [vmem:[#allocation13 + $0x10] sm:$0xff]
        %v1181 = vld [vmem:[#allocation13 + $0x28] sm:$0xff]
        %v1182 = vld [vmem:[#allocation13 + $0x40] sm:$0xff]
        %v1183 = vld [vmem:[#allocation13 + $0x58] sm:$0xff]
        %v1184 = vld [vmem:[#allocation13 + $0x70] sm:$0xff]
        %v1185 = vld [vmem:[#allocation13 + $0x88] sm:$0xff]
        %v1186 = vld [vmem:[#allocation13 + $0xa0] sm:$0xff]
        %v1187 = vld [vmem:[#allocation13 + $0xb8] sm:$0xff]
        %v1188 = vld [vmem:[#allocation13 + $0xd0] sm:$0xff]
        %v1189 = vld [vmem:[#allocation13 + $0xe8] sm:$0xff]
        %v1190 = vld [vmem:[#allocation13 + $0x100] sm:$0xff]
        %v1191 = vld [vmem:[#allocation13 + $0x118] sm:$0xff]
        %v1192 = vld [vmem:[#allocation13 + $0x130] sm:$0xff]
        %v1193 = vld [vmem:[#allocation13 + $0x148] sm:$0xff]
        %v1194 = vld [vmem:[#allocation13 + $0x160] sm:$0xff]
        %v1195 = vld [vmem:[#allocation13 + $0x178] sm:$0xff]
        %v1196 = vld [vmem:[%s7 + $0x2] sm:$0x1]
        %v1198 = vlaneseq
        %v1199 = vshrl.u32 %v1198, 7
        %v1200 = vsub.s32 0, %v1199
        %v1201 = vrot.slane %v1196, %v1200
        %1203 = vmatprep.subr.mxu0 0.0
        %1204 = vmatpush1.msra.mxu0 %v1195
        %1205 = vmatprep.subr.mxu0 0.0
        %1206 = vmatpush1.msra.mxu0 %v1194
        %1207 = vmatprep.subr.mxu0 0.0
        %1208 = vmatpush1.msra.mxu0 %v1193
        %1209 = vmatprep.subr.mxu0 0.0
        %1210 = vmatpush1.msra.mxu0 %v1192
        %1211 = vmatprep.subr.mxu0 0.0
        %1212 = vmatpush1.msra.mxu0 %v1191
        %1213 = vmatprep.subr.mxu0 0.0
        %1214 = vmatpush1.msra.mxu0 %v1190
        %1215 = vmatprep.subr.mxu0 0.0
        %1216 = vmatpush1.msra.mxu0 %v1189
        %1217 = vmatprep.subr.mxu0 0.0
        %1218 = vmatpush1.msra.mxu0 %v1188
        %1219 = vmatprep.subr.mxu0 0.0
        %1220 = vmatpush1.msra.mxu0 %v1187
        %1221 = vmatprep.subr.mxu0 0.0
        %1222 = vmatpush1.msra.mxu0 %v1186
        %1223 = vmatprep.subr.mxu0 0.0
        %1224 = vmatpush1.msra.mxu0 %v1185
        %1225 = vmatprep.subr.mxu0 0.0
        %1226 = vmatpush1.msra.mxu0 %v1184
        %1227 = vmatprep.subr.mxu0 0.0
        %1228 = vmatpush1.msra.mxu0 %v1183
        %1229 = vmatprep.subr.mxu0 0.0
        %1230 = vmatpush1.msra.mxu0 %v1182
        %1231 = vmatprep.subr.mxu0 0.0
        %1232 = vmatpush1.msra.mxu0 %v1181
        %1233 = vmatprep.subr.mxu0 0.0
        %1234 = vmatpush1.msra.mxu0 %v1180
        %1235 = vmatprep.subr.mxu0 0.0
        %1236 = vmatpush2.msra.mxu0 0.0
        %1237 = vmatprep.subr.mxu0 0.0
        %1238 = vmatpush2.msra.mxu0 0.0
        %1239 = vmatprep.subr.mxu0 0.0
        %1240 = vmatpush2.msra.mxu0 0.0
        %1241 = vmatprep.subr.mxu0 0.0
        %1242 = vmatpush2.msra.mxu0 0.0
        %1243 = vmatprep.subr.mxu0 0.0
        %1244 = vmatpush2.msra.mxu0 0.0
        %1245 = vmatprep.subr.mxu0 0.0
        %1246 = vmatpush2.msra.mxu0 0.0
        %1247 = vmatprep.subr.mxu0 0.0
        %1248 = vmatpush2.msra.mxu0 0.0
        %1249 = vmatprep.subr.mxu0 0.0
        %1250 = vmatpush2.msra.mxu0 0.0
        %1251 = vmatprep.subr.mxu0 0.0
        %1252 = vmatpush2.msra.mxu0 0.0
        %1253 = vmatprep.subr.mxu0 0.0
        %1254 = vmatpush2.msra.mxu0 0.0
        %1255 = vmatprep.subr.mxu0 0.0
        %1256 = vmatpush2.msra.mxu0 0.0
        %1257 = vmatprep.subr.mxu0 0.0
        %1258 = vmatpush2.msra.mxu0 0.0
        %1259 = vmatprep.subr.mxu0 0.0
        %1260 = vmatpush2.msra.mxu0 0.0
        %1261 = vmatprep.subr.mxu0 0.0
        %1262 = vmatpush2.msra.mxu0 0.0
        %1263 = vmatprep.subr.mxu0 0.0
        %1264 = vmatpush2.msra.mxu0 0.0
        %1265 = vmatprep.subr.mxu0 0.0
        %1266 = vmatpush2.msra.mxu0 0.0
        %1267 = vmatprep.mubr.f32.mxu0 0.0
        %1268 = vmatmul.mubr.f32.gmra.mxu0 %v982
        %v1269 = vpop.f32.mrf.mxu0
        %v1270 = vadd.f32 %v1201, %v1269
        %v1271 = vpop.f32.mrf.mxu0
        %1272 = vmatprep.mubr.f32.mxu0 0.0
        %1273 = vmatmul.mubr.f32.gmra.mxu0 %v983
        %v1274 = vpop.f32.mrf.mxu0
        %v1275 = vadd.f32 %v1201, %v1274
        %v1276 = vpop.f32.mrf.mxu0
        %1277 = vdwg.mxu0
        %1278 = vst [vmem:[#allocation2] sm:$0xff] %v1079
        %1279 = vst [vmem:[#allocation2 + $0x8] sm:$0xff] %v1172
        %1280 = vst [vmem:[#allocation2 + $0x20] sm:$0xff] %v1177
        %1281 = vst [vmem:[#allocation2 + $0x10] sm:$0xff] %v1270
        %1282 = vst [vmem:[#allocation2 + $0x28] sm:$0xff] %v1275
        %v1283 = vld [vmem:[#allocation2] sm:$0xff]
        %v1284 = vmul.f32 %v1283, 0.35355338
        %v1285 = vld [vmem:[#allocation2 + $0x8] sm:$0xff]
        %v1286 = vld [vmem:[#allocation2 + $0x20] sm:$0xff]
        %v1287 = vld [vmem:[#allocation2 + $0x10] sm:$0xff]
        %v1288 = vld [vmem:[#allocation2 + $0x28] sm:$0xff]
        %v1289 = vlaneseq
        %v1290 = vshrl.u32 %v1289, 7
        %v1291 = vsub.s32 0, %v1290
        %v1292 = vrot.slane %v974, %v1291
        %vm1293 = vcmask 64512
        %v1295 = vsel %vm1293, %v1284, 0
        %v1298 = vsel %vm1293, %v1285, 0
        %v1301 = vsel %vm1293, %v1286, 0
        %1303 = vmatprep.subr.mxu0 0.0
        %1304 = vmatpush1.xpose.msra.mxu0 0.0
        %1305 = vmatprep.subr.mxu0 0.0
        %1306 = vmatpush1.xpose.msra.mxu0 0.0
        %1307 = vmatprep.subr.mxu0 0.0
        %1308 = vmatpush1.xpose.msra.mxu0 0.0
        %1309 = vmatprep.subr.mxu0 0.0
        %1310 = vmatpush1.xpose.msra.mxu0 0.0
        %1311 = vmatprep.subr.mxu0 0.0
        %1312 = vmatpush1.xpose.msra.mxu0 0.0
        %1313 = vmatprep.subr.mxu0 0.0
        %1314 = vmatpush1.xpose.msra.mxu0 0.0
        %1315 = vmatprep.subr.mxu0 0.0
        %1316 = vmatpush1.xpose.msra.mxu0 0.0
        %1317 = vmatprep.subr.mxu0 0.0
        %1318 = vmatpush1.xpose.msra.mxu0 0.0
        %1319 = vmatprep.subr.mxu0 0.0
        %1320 = vmatpush1.xpose.msra.mxu0 0.0
        %1321 = vmatprep.subr.mxu0 0.0
        %1322 = vmatpush1.xpose.msra.mxu0 0.0
        %1323 = vmatprep.subr.mxu0 0.0
        %1324 = vmatpush1.xpose.msra.mxu0 0.0
        %1325 = vmatprep.subr.mxu0 0.0
        %1326 = vmatpush1.xpose.msra.mxu0 0.0
        %1327 = vmatprep.subr.mxu0 0.0
        %1328 = vmatpush1.xpose.msra.mxu0 0.0
        %1329 = vmatprep.subr.mxu0 0.0
        %1330 = vmatpush1.xpose.msra.mxu0 0.0
        %1331 = vmatprep.subr.mxu0 0.0
        %1332 = vmatpush1.xpose.msra.mxu0 %v1301
        %1333 = vmatprep.subr.mxu0 0.0
        %1334 = vmatpush1.xpose.msra.mxu0 %v1298
        %1335 = vmatprep.subr.mxu0 0.0
        %1336 = vmatpush2.xpose.msra.mxu0 0.0
        %1337 = vmatprep.subr.mxu0 0.0
        %1338 = vmatpush2.xpose.msra.mxu0 0.0
        %1339 = vmatprep.subr.mxu0 0.0
        %1340 = vmatpush2.xpose.msra.mxu0 0.0
        %1341 = vmatprep.subr.mxu0 0.0
        %1342 = vmatpush2.xpose.msra.mxu0 0.0
        %1343 = vmatprep.subr.mxu0 0.0
        %1344 = vmatpush2.xpose.msra.mxu0 0.0
        %1345 = vmatprep.subr.mxu0 0.0
        %1346 = vmatpush2.xpose.msra.mxu0 0.0
        %1347 = vmatprep.subr.mxu0 0.0
        %1348 = vmatpush2.xpose.msra.mxu0 0.0
        %1349 = vmatprep.subr.mxu0 0.0
        %1350 = vmatpush2.xpose.msra.mxu0 0.0
        %1351 = vmatprep.subr.mxu0 0.0
        %1352 = vmatpush2.xpose.msra.mxu0 0.0
        %1353 = vmatprep.subr.mxu0 0.0
        %1354 = vmatpush2.xpose.msra.mxu0 0.0
        %1355 = vmatprep.subr.mxu0 0.0
        %1356 = vmatpush2.xpose.msra.mxu0 0.0
        %1357 = vmatprep.subr.mxu0 0.0
        %1358 = vmatpush2.xpose.msra.mxu0 0.0
        %1359 = vmatprep.subr.mxu0 0.0
        %1360 = vmatpush2.xpose.msra.mxu0 0.0
        %1361 = vmatprep.subr.mxu0 0.0
        %1362 = vmatpush2.xpose.msra.mxu0 0.0
        %1363 = vmatprep.subr.mxu0 0.0
        %1364 = vmatpush2.xpose.msra.mxu0 0.0
        %1365 = vmatprep.subr.mxu0 0.0
        %1366 = vmatpush2.xpose.msra.mxu0 0.0
        %1367 = vmatprep.mubr.f32.mxu0 0.0
        %1368 = vmatmul.mubr.f32.gmra.mxu0 %v1295
        %v1369 = vpop.f32.mrf.mxu0
        %v1370 = vadd.f32 %v1292, %v1369
        %v1371 = vpop.f32.mrf.mxu0
        %1372 = vdwg.mxu0
        %vm1373 = vcmask 130048
        %v1374 = vsel %vm1373, %v1370, -inf
        %1375 = vmax.xlane.f32.xlu0 %v1374
        %v1376 = vpop.xlane.xlu0 %1375
        %v1377 = vsub.f32 %v1370, %v1376
        %v1378 = vmul.f32 %v1377, 1.442695
        %v1379 = vpow.pop %v1378
        %v1380 = vsel %vm1373, %v1379, 0.0
        %1381 = vadd.xlane.f32.xlu0 %v1380
        %v1382 = vpop.xlane.xlu0 %1381
        %v1383 = vrcp.pop %v1382
        %v1384 = vmul.f32 %v1379, %v1383
        %v1386 = vsel %vm1373, %v1384, 0
        %1388 = vmatprep.subr.mxu0 0.0
        %1389 = vmatpush1.msra.mxu0 0.0
        %1390 = vmatprep.subr.mxu0 0.0
        %1391 = vmatpush1.msra.mxu0 0.0
        %1392 = vmatprep.subr.mxu0 0.0
        %1393 = vmatpush1.msra.mxu0 0.0
        %1394 = vmatprep.subr.mxu0 0.0
        %1395 = vmatpush1.msra.mxu0 0.0
        %1396 = vmatprep.subr.mxu0 0.0
        %1397 = vmatpush1.msra.mxu0 0.0
        %1398 = vmatprep.subr.mxu0 0.0
        %1399 = vmatpush1.msra.mxu0 0.0
        %1400 = vmatprep.subr.mxu0 0.0
        %1401 = vmatpush1.msra.mxu0 0.0
        %1402 = vmatprep.subr.mxu0 0.0
        %1403 = vmatpush1.msra.mxu0 0.0
        %1404 = vmatprep.subr.mxu0 0.0
        %1405 = vmatpush1.msra.mxu0 0.0
        %1406 = vmatprep.subr.mxu0 0.0
        %1407 = vmatpush1.msra.mxu0 0.0
        %1408 = vmatprep.subr.mxu0 0.0
        %1409 = vmatpush1.msra.mxu0 0.0
        %1410 = vmatprep.subr.mxu0 0.0
        %1411 = vmatpush1.msra.mxu0 0.0
        %1412 = vmatprep.subr.mxu0 0.0
        %1413 = vmatpush1.msra.mxu0 0.0
        %1414 = vmatprep.subr.mxu0 0.0
        %1415 = vmatpush1.msra.mxu0 0.0
        %1416 = vmatprep.subr.mxu0 0.0
        %1417 = vmatpush1.msra.mxu0 %v1288
        %1418 = vmatprep.subr.mxu0 0.0
        %1419 = vmatpush1.msra.mxu0 %v1287
        %1420 = vmatprep.subr.mxu0 0.0
        %1421 = vmatpush2.msra.mxu0 0.0
        %1422 = vmatprep.subr.mxu0 0.0
        %1423 = vmatpush2.msra.mxu0 0.0
        %1424 = vmatprep.subr.mxu0 0.0
        %1425 = vmatpush2.msra.mxu0 0.0
        %1426 = vmatprep.subr.mxu0 0.0
        %1427 = vmatpush2.msra.mxu0 0.0
        %1428 = vmatprep.subr.mxu0 0.0
        %1429 = vmatpush2.msra.mxu0 0.0
        %1430 = vmatprep.subr.mxu0 0.0
        %1431 = vmatpush2.msra.mxu0 0.0
        %1432 = vmatprep.subr.mxu0 0.0
        %1433 = vmatpush2.msra.mxu0 0.0
        %1434 = vmatprep.subr.mxu0 0.0
        %1435 = vmatpush2.msra.mxu0 0.0
        %1436 = vmatprep.subr.mxu0 0.0
        %1437 = vmatpush2.msra.mxu0 0.0
        %1438 = vmatprep.subr.mxu0 0.0
        %1439 = vmatpush2.msra.mxu0 0.0
        %1440 = vmatprep.subr.mxu0 0.0
        %1441 = vmatpush2.msra.mxu0 0.0
        %1442 = vmatprep.subr.mxu0 0.0
        %1443 = vmatpush2.msra.mxu0 0.0
        %1444 = vmatprep.subr.mxu0 0.0
        %1445 = vmatpush2.msra.mxu0 0.0
        %1446 = vmatprep.subr.mxu0 0.0
        %1447 = vmatpush2.msra.mxu0 0.0
        %1448 = vmatprep.subr.mxu0 0.0
        %1449 = vmatpush2.msra.mxu0 0.0
        %1450 = vmatprep.subr.mxu0 0.0
        %1451 = vmatpush2.msra.mxu0 0.0
        %1452 = vmatprep.mubr.f32.mxu0 0.0
        %1453 = vmatmul.mubr.f32.gmra.mxu0 %v1386
        %v1454 = vpop.f32.mrf.mxu0
        %v1455 = vadd.f32 0.0, %v1454
        %v1456 = vpop.f32.mrf.mxu0
        %1457 = vdwg.mxu0
        %1458 = vst.msk [vmem:[#allocation3] sm:$0xff] %vm1293, %v1455
        %v1459 = vld [vmem:[#allocation2] sm:$0xff]
        %v1460 = vmul.f32 %v1459, 0.35355338
        %v1461 = vld [vmem:[#allocation2 + $0x8] sm:$0xff]
        %v1462 = vld [vmem:[#allocation2 + $0x20] sm:$0xff]
        %v1463 = vld [vmem:[#allocation2 + $0x10] sm:$0xff]
        %v1464 = vld [vmem:[#allocation2 + $0x28] sm:$0xff]
        %1466 = vrot.lane.b32.xlu0 %v1460, 120
        %v1467 = vpop.permute.xlu0 %1466
        %1470 = vrot.lane.b32.xlu0 %v1461, 120
        %v1471 = vpop.permute.xlu0 %1470
        %1472 = vrot.lane.b32.xlu0 %v1462, 120
        %v1473 = vpop.permute.xlu0 %1472
        %v1474 = vsel %vm1293, %v1467, 0
        %v1476 = vsel %vm1293, %v1471, 0
        %v1478 = vsel %vm1293, %v1473, 0
        %1480 = vmatprep.subr.mxu0 0.0
        %1481 = vmatpush1.xpose.msra.mxu0 0.0
        %1482 = vmatprep.subr.mxu0 0.0
        %1483 = vmatpush1.xpose.msra.mxu0 0.0
        %1484 = vmatprep.subr.mxu0 0.0
        %1485 = vmatpush1.xpose.msra.mxu0 0.0
        %1486 = vmatprep.subr.mxu0 0.0
        %1487 = vmatpush1.xpose.msra.mxu0 0.0
        %1488 = vmatprep.subr.mxu0 0.0
        %1489 = vmatpush1.xpose.msra.mxu0 0.0
        %1490 = vmatprep.subr.mxu0 0.0
        %1491 = vmatpush1.xpose.msra.mxu0 0.0
        %1492 = vmatprep.subr.mxu0 0.0
        %1493 = vmatpush1.xpose.msra.mxu0 0.0
        %1494 = vmatprep.subr.mxu0 0.0
        %1495 = vmatpush1.xpose.msra.mxu0 0.0
        %1496 = vmatprep.subr.mxu0 0.0
        %1497 = vmatpush1.xpose.msra.mxu0 0.0
        %1498 = vmatprep.subr.mxu0 0.0
        %1499 = vmatpush1.xpose.msra.mxu0 0.0
        %1500 = vmatprep.subr.mxu0 0.0
        %1501 = vmatpush1.xpose.msra.mxu0 0.0
        %1502 = vmatprep.subr.mxu0 0.0
        %1503 = vmatpush1.xpose.msra.mxu0 0.0
        %1504 = vmatprep.subr.mxu0 0.0
        %1505 = vmatpush1.xpose.msra.mxu0 0.0
        %1506 = vmatprep.subr.mxu0 0.0
        %1507 = vmatpush1.xpose.msra.mxu0 0.0
        %1508 = vmatprep.subr.mxu0 0.0
        %1509 = vmatpush1.xpose.msra.mxu0 %v1478
        %1510 = vmatprep.subr.mxu0 0.0
        %1511 = vmatpush1.xpose.msra.mxu0 %v1476
        %1512 = vmatprep.subr.mxu0 0.0
        %1513 = vmatpush2.xpose.msra.mxu0 0.0
        %1514 = vmatprep.subr.mxu0 0.0
        %1515 = vmatpush2.xpose.msra.mxu0 0.0
        %1516 = vmatprep.subr.mxu0 0.0
        %1517 = vmatpush2.xpose.msra.mxu0 0.0
        %1518 = vmatprep.subr.mxu0 0.0
        %1519 = vmatpush2.xpose.msra.mxu0 0.0
        %1520 = vmatprep.subr.mxu0 0.0
        %1521 = vmatpush2.xpose.msra.mxu0 0.0
        %1522 = vmatprep.subr.mxu0 0.0
        %1523 = vmatpush2.xpose.msra.mxu0 0.0
        %1524 = vmatprep.subr.mxu0 0.0
        %1525 = vmatpush2.xpose.msra.mxu0 0.0
        %1526 = vmatprep.subr.mxu0 0.0
        %1527 = vmatpush2.xpose.msra.mxu0 0.0
        %1528 = vmatprep.subr.mxu0 0.0
        %1529 = vmatpush2.xpose.msra.mxu0 0.0
        %1530 = vmatprep.subr.mxu0 0.0
        %1531 = vmatpush2.xpose.msra.mxu0 0.0
        %1532 = vmatprep.subr.mxu0 0.0
        %1533 = vmatpush2.xpose.msra.mxu0 0.0
        %1534 = vmatprep.subr.mxu0 0.0
        %1535 = vmatpush2.xpose.msra.mxu0 0.0
        %1536 = vmatprep.subr.mxu0 0.0
        %1537 = vmatpush2.xpose.msra.mxu0 0.0
        %1538 = vmatprep.subr.mxu0 0.0
        %1539 = vmatpush2.xpose.msra.mxu0 0.0
        %1540 = vmatprep.subr.mxu0 0.0
        %1541 = vmatpush2.xpose.msra.mxu0 0.0
        %1542 = vmatprep.subr.mxu0 0.0
        %1543 = vmatpush2.xpose.msra.mxu0 0.0
        %1544 = vmatprep.mubr.f32.mxu0 0.0
        %1545 = vmatmul.mubr.f32.gmra.mxu0 %v1474
        %v1546 = vpop.f32.mrf.mxu0
        %v1547 = vadd.f32 %v1292, %v1546
        %v1548 = vpop.f32.mrf.mxu0
        %1549 = vdwg.mxu0
        %v1550 = vsel %vm1373, %v1547, -inf
        %1551 = vmax.xlane.f32.xlu0 %v1550
        %v1552 = vpop.xlane.xlu0 %1551
        %v1553 = vsub.f32 %v1547, %v1552
        %v1554 = vmul.f32 %v1553, 1.442695
        %v1555 = vpow.pop %v1554
        %v1556 = vsel %vm1373, %v1555, 0.0
        %1557 = vadd.xlane.f32.xlu0 %v1556
        %v1558 = vpop.xlane.xlu0 %1557
        %v1559 = vrcp.pop %v1558
        %v1560 = vmul.f32 %v1555, %v1559
        %1563 = vrot.lane.b32.xlu0 %v1463, 120
        %v1564 = vpop.permute.xlu0 %1563
        %1565 = vrot.lane.b32.xlu0 %v1464, 120
        %v1566 = vpop.permute.xlu0 %1565
        %v1570 = vsel %vm1373, %v1560, 0
        %1572 = vmatprep.subr.mxu0 0.0
        %1573 = vmatpush1.msra.mxu0 0.0
        %1574 = vmatprep.subr.mxu0 0.0
        %1575 = vmatpush1.msra.mxu0 0.0
        %1576 = vmatprep.subr.mxu0 0.0
        %1577 = vmatpush1.msra.mxu0 0.0
        %1578 = vmatprep.subr.mxu0 0.0
        %1579 = vmatpush1.msra.mxu0 0.0
        %1580 = vmatprep.subr.mxu0 0.0
        %1581 = vmatpush1.msra.mxu0 0.0
        %1582 = vmatprep.subr.mxu0 0.0
        %1583 = vmatpush1.msra.mxu0 0.0
        %1584 = vmatprep.subr.mxu0 0.0
        %1585 = vmatpush1.msra.mxu0 0.0
        %1586 = vmatprep.subr.mxu0 0.0
        %1587 = vmatpush1.msra.mxu0 0.0
        %1588 = vmatprep.subr.mxu0 0.0
        %1589 = vmatpush1.msra.mxu0 0.0
        %1590 = vmatprep.subr.mxu0 0.0
        %1591 = vmatpush1.msra.mxu0 0.0
        %1592 = vmatprep.subr.mxu0 0.0
        %1593 = vmatpush1.msra.mxu0 0.0
        %1594 = vmatprep.subr.mxu0 0.0
        %1595 = vmatpush1.msra.mxu0 0.0
        %1596 = vmatprep.subr.mxu0 0.0
        %1597 = vmatpush1.msra.mxu0 0.0
        %1598 = vmatprep.subr.mxu0 0.0
        %1599 = vmatpush1.msra.mxu0 0.0
        %1600 = vmatprep.subr.mxu0 0.0
        %1601 = vmatpush1.msra.mxu0 %v1566
        %1602 = vmatprep.subr.mxu0 0.0
        %1603 = vmatpush1.msra.mxu0 %v1564
        %1604 = vmatprep.subr.mxu0 0.0
        %1605 = vmatpush2.msra.mxu0 0.0
        %1606 = vmatprep.subr.mxu0 0.0
        %1607 = vmatpush2.msra.mxu0 0.0
        %1608 = vmatprep.subr.mxu0 0.0
        %1609 = vmatpush2.msra.mxu0 0.0
        %1610 = vmatprep.subr.mxu0 0.0
        %1611 = vmatpush2.msra.mxu0 0.0
        %1612 = vmatprep.subr.mxu0 0.0
        %1613 = vmatpush2.msra.mxu0 0.0
        %1614 = vmatprep.subr.mxu0 0.0
        %1615 = vmatpush2.msra.mxu0 0.0
        %1616 = vmatprep.subr.mxu0 0.0
        %1617 = vmatpush2.msra.mxu0 0.0
        %1618 = vmatprep.subr.mxu0 0.0
        %1619 = vmatpush2.msra.mxu0 0.0
        %1620 = vmatprep.subr.mxu0 0.0
        %1621 = vmatpush2.msra.mxu0 0.0
        %1622 = vmatprep.subr.mxu0 0.0
        %1623 = vmatpush2.msra.mxu0 0.0
        %1624 = vmatprep.subr.mxu0 0.0
        %1625 = vmatpush2.msra.mxu0 0.0
        %1626 = vmatprep.subr.mxu0 0.0
        %1627 = vmatpush2.msra.mxu0 0.0
        %1628 = vmatprep.subr.mxu0 0.0
        %1629 = vmatpush2.msra.mxu0 0.0
        %1630 = vmatprep.subr.mxu0 0.0
        %1631 = vmatpush2.msra.mxu0 0.0
        %1632 = vmatprep.subr.mxu0 0.0
        %1633 = vmatpush2.msra.mxu0 0.0
        %1634 = vmatprep.subr.mxu0 0.0
        %1635 = vmatpush2.msra.mxu0 0.0
        %1636 = vmatprep.mubr.f32.mxu0 0.0
        %1637 = vmatmul.mubr.f32.gmra.mxu0 %v1570
        %v1638 = vpop.f32.mrf.mxu0
        %v1639 = vadd.f32 0.0, %v1638
        %v1640 = vpop.f32.mrf.mxu0
        %1641 = vdwg.mxu0
        %1643 = vrot.lane.b32.xlu0 %v1639, 8
        %v1644 = vpop.permute.xlu0 %1643
        %vm1646 = vcmask 130112
        %1647 = vst.msk [vmem:[#allocation3] sm:$0xff] %vm1646, %v1644
        %v1648 = vld [vmem:[#allocation2] sm:$0xff]
        %v1649 = vmul.f32 %v1648, 0.35355338
        %v1650 = vld [vmem:[#allocation2 + $0x8] sm:$0xff]
        %v1651 = vld [vmem:[#allocation2 + $0x20] sm:$0xff]
        %v1652 = vld [vmem:[#allocation2 + $0x10] sm:$0xff]
        %v1653 = vld [vmem:[#allocation2 + $0x28] sm:$0xff]
        %1655 = vrot.lane.b32.xlu0 %v1649, 112
        %v1656 = vpop.permute.xlu0 %1655
        %1659 = vrot.lane.b32.xlu0 %v1650, 112
        %v1660 = vpop.permute.xlu0 %1659
        %1661 = vrot.lane.b32.xlu0 %v1651, 112
        %v1662 = vpop.permute.xlu0 %1661
        %v1663 = vsel %vm1293, %v1656, 0
        %v1665 = vsel %vm1293, %v1660, 0
        %v1667 = vsel %vm1293, %v1662, 0
        %1669 = vmatprep.subr.mxu0 0.0
        %1670 = vmatpush1.xpose.msra.mxu0 0.0
        %1671 = vmatprep.subr.mxu0 0.0
        %1672 = vmatpush1.xpose.msra.mxu0 0.0
        %1673 = vmatprep.subr.mxu0 0.0
        %1674 = vmatpush1.xpose.msra.mxu0 0.0
        %1675 = vmatprep.subr.mxu0 0.0
        %1676 = vmatpush1.xpose.msra.mxu0 0.0
        %1677 = vmatprep.subr.mxu0 0.0
        %1678 = vmatpush1.xpose.msra.mxu0 0.0
        %1679 = vmatprep.subr.mxu0 0.0
        %1680 = vmatpush1.xpose.msra.mxu0 0.0
        %1681 = vmatprep.subr.mxu0 0.0
        %1682 = vmatpush1.xpose.msra.mxu0 0.0
        %1683 = vmatprep.subr.mxu0 0.0
        %1684 = vmatpush1.xpose.msra.mxu0 0.0
        %1685 = vmatprep.subr.mxu0 0.0
        %1686 = vmatpush1.xpose.msra.mxu0 0.0
        %1687 = vmatprep.subr.mxu0 0.0
        %1688 = vmatpush1.xpose.msra.mxu0 0.0
        %1689 = vmatprep.subr.mxu0 0.0
        %1690 = vmatpush1.xpose.msra.mxu0 0.0
        %1691 = vmatprep.subr.mxu0 0.0
        %1692 = vmatpush1.xpose.msra.mxu0 0.0
        %1693 = vmatprep.subr.mxu0 0.0
        %1694 = vmatpush1.xpose.msra.mxu0 0.0
        %1695 = vmatprep.subr.mxu0 0.0
        %1696 = vmatpush1.xpose.msra.mxu0 0.0
        %1697 = vmatprep.subr.mxu0 0.0
        %1698 = vmatpush1.xpose.msra.mxu0 %v1667
        %1699 = vmatprep.subr.mxu0 0.0
        %1700 = vmatpush1.xpose.msra.mxu0 %v1665
        %1701 = vmatprep.subr.mxu0 0.0
        %1702 = vmatpush2.xpose.msra.mxu0 0.0
        %1703 = vmatprep.subr.mxu0 0.0
        %1704 = vmatpush2.xpose.msra.mxu0 0.0
        %1705 = vmatprep.subr.mxu0 0.0
        %1706 = vmatpush2.xpose.msra.mxu0 0.0
        %1707 = vmatprep.subr.mxu0 0.0
        %1708 = vmatpush2.xpose.msra.mxu0 0.0
        %1709 = vmatprep.subr.mxu0 0.0
        %1710 = vmatpush2.xpose.msra.mxu0 0.0
        %1711 = vmatprep.subr.mxu0 0.0
        %1712 = vmatpush2.xpose.msra.mxu0 0.0
        %1713 = vmatprep.subr.mxu0 0.0
        %1714 = vmatpush2.xpose.msra.mxu0 0.0
        %1715 = vmatprep.subr.mxu0 0.0
        %1716 = vmatpush2.xpose.msra.mxu0 0.0
        %1717 = vmatprep.subr.mxu0 0.0
        %1718 = vmatpush2.xpose.msra.mxu0 0.0
        %1719 = vmatprep.subr.mxu0 0.0
        %1720 = vmatpush2.xpose.msra.mxu0 0.0
        %1721 = vmatprep.subr.mxu0 0.0
        %1722 = vmatpush2.xpose.msra.mxu0 0.0
        %1723 = vmatprep.subr.mxu0 0.0
        %1724 = vmatpush2.xpose.msra.mxu0 0.0
        %1725 = vmatprep.subr.mxu0 0.0
        %1726 = vmatpush2.xpose.msra.mxu0 0.0
        %1727 = vmatprep.subr.mxu0 0.0
        %1728 = vmatpush2.xpose.msra.mxu0 0.0
        %1729 = vmatprep.subr.mxu0 0.0
        %1730 = vmatpush2.xpose.msra.mxu0 0.0
        %1731 = vmatprep.subr.mxu0 0.0
        %1732 = vmatpush2.xpose.msra.mxu0 0.0
        %1733 = vmatprep.mubr.f32.mxu0 0.0
        %1734 = vmatmul.mubr.f32.gmra.mxu0 %v1663
        %v1735 = vpop.f32.mrf.mxu0
        %v1736 = vadd.f32 %v1292, %v1735
        %v1737 = vpop.f32.mrf.mxu0
        %1738 = vdwg.mxu0
        %v1739 = vsel %vm1373, %v1736, -inf
        %1740 = vmax.xlane.f32.xlu0 %v1739
        %v1741 = vpop.xlane.xlu0 %1740
        %v1742 = vsub.f32 %v1736, %v1741
        %v1743 = vmul.f32 %v1742, 1.442695
        %v1744 = vpow.pop %v1743
        %v1745 = vsel %vm1373, %v1744, 0.0
        %1746 = vadd.xlane.f32.xlu0 %v1745
        %v1747 = vpop.xlane.xlu0 %1746
        %v1748 = vrcp.pop %v1747
        %v1749 = vmul.f32 %v1744, %v1748
        %1752 = vrot.lane.b32.xlu0 %v1652, 112
        %v1753 = vpop.permute.xlu0 %1752
        %1754 = vrot.lane.b32.xlu0 %v1653, 112
        %v1755 = vpop.permute.xlu0 %1754
        %v1759 = vsel %vm1373, %v1749, 0
        %1761 = vmatprep.subr.mxu0 0.0
        %1762 = vmatpush1.msra.mxu0 0.0
        %1763 = vmatprep.subr.mxu0 0.0
        %1764 = vmatpush1.msra.mxu0 0.0
        %1765 = vmatprep.subr.mxu0 0.0
        %1766 = vmatpush1.msra.mxu0 0.0
        %1767 = vmatprep.subr.mxu0 0.0
        %1768 = vmatpush1.msra.mxu0 0.0
        %1769 = vmatprep.subr.mxu0 0.0
        %1770 = vmatpush1.msra.mxu0 0.0
        %1771 = vmatprep.subr.mxu0 0.0
        %1772 = vmatpush1.msra.mxu0 0.0
        %1773 = vmatprep.subr.mxu0 0.0
        %1774 = vmatpush1.msra.mxu0 0.0
        %1775 = vmatprep.subr.mxu0 0.0
        %1776 = vmatpush1.msra.mxu0 0.0
        %1777 = vmatprep.subr.mxu0 0.0
        %1778 = vmatpush1.msra.mxu0 0.0
        %1779 = vmatprep.subr.mxu0 0.0
        %1780 = vmatpush1.msra.mxu0 0.0
        %1781 = vmatprep.subr.mxu0 0.0
        %1782 = vmatpush1.msra.mxu0 0.0
        %1783 = vmatprep.subr.mxu0 0.0
        %1784 = vmatpush1.msra.mxu0 0.0
        %1785 = vmatprep.subr.mxu0 0.0
        %1786 = vmatpush1.msra.mxu0 0.0
        %1787 = vmatprep.subr.mxu0 0.0
        %1788 = vmatpush1.msra.mxu0 0.0
        %1789 = vmatprep.subr.mxu0 0.0
        %1790 = vmatpush1.msra.mxu0 %v1755
        %1791 = vmatprep.subr.mxu0 0.0
        %1792 = vmatpush1.msra.mxu0 %v1753
        %1793 = vmatprep.subr.mxu0 0.0
        %1794 = vmatpush2.msra.mxu0 0.0
        %1795 = vmatprep.subr.mxu0 0.0
        %1796 = vmatpush2.msra.mxu0 0.0
        %1797 = vmatprep.subr.mxu0 0.0
        %1798 = vmatpush2.msra.mxu0 0.0
        %1799 = vmatprep.subr.mxu0 0.0
        %1800 = vmatpush2.msra.mxu0 0.0
        %1801 = vmatprep.subr.mxu0 0.0
        %1802 = vmatpush2.msra.mxu0 0.0
        %1803 = vmatprep.subr.mxu0 0.0
        %1804 = vmatpush2.msra.mxu0 0.0
        %1805 = vmatprep.subr.mxu0 0.0
        %1806 = vmatpush2.msra.mxu0 0.0
        %1807 = vmatprep.subr.mxu0 0.0
        %1808 = vmatpush2.msra.mxu0 0.0
        %1809 = vmatprep.subr.mxu0 0.0
        %1810 = vmatpush2.msra.mxu0 0.0
        %1811 = vmatprep.subr.mxu0 0.0
        %1812 = vmatpush2.msra.mxu0 0.0
        %1813 = vmatprep.subr.mxu0 0.0
        %1814 = vmatpush2.msra.mxu0 0.0
        %1815 = vmatprep.subr.mxu0 0.0
        %1816 = vmatpush2.msra.mxu0 0.0
        %1817 = vmatprep.subr.mxu0 0.0
        %1818 = vmatpush2.msra.mxu0 0.0
        %1819 = vmatprep.subr.mxu0 0.0
        %1820 = vmatpush2.msra.mxu0 0.0
        %1821 = vmatprep.subr.mxu0 0.0
        %1822 = vmatpush2.msra.mxu0 0.0
        %1823 = vmatprep.subr.mxu0 0.0
        %1824 = vmatpush2.msra.mxu0 0.0
        %1825 = vmatprep.mubr.f32.mxu0 0.0
        %1826 = vmatmul.mubr.f32.gmra.mxu0 %v1759
        %v1827 = vpop.f32.mrf.mxu0
        %v1828 = vadd.f32 0.0, %v1827
        %v1829 = vpop.f32.mrf.mxu0
        %1830 = vdwg.mxu0
        %1832 = vrot.lane.b32.xlu0 %v1828, 16
        %v1833 = vpop.permute.xlu0 %1832
        %vm1835 = vcmask 195712
        %1836 = vst.msk [vmem:[#allocation3] sm:$0xff] %vm1835, %v1833
        %v1837 = vld [vmem:[#allocation2] sm:$0xff]
        %v1838 = vmul.f32 %v1837, 0.35355338
        %v1839 = vld [vmem:[#allocation2 + $0x8] sm:$0xff]
        %v1840 = vld [vmem:[#allocation2 + $0x20] sm:$0xff]
        %v1841 = vld [vmem:[#allocation2 + $0x10] sm:$0xff]
        %v1842 = vld [vmem:[#allocation2 + $0x28] sm:$0xff]
        %1844 = vrot.lane.b32.xlu0 %v1838, 104
        %v1845 = vpop.permute.xlu0 %1844
        %1848 = vrot.lane.b32.xlu0 %v1839, 104
        %v1849 = vpop.permute.xlu0 %1848
        %1850 = vrot.lane.b32.xlu0 %v1840, 104
        %v1851 = vpop.permute.xlu0 %1850
        %v1852 = vsel %vm1293, %v1845, 0
        %v1854 = vsel %vm1293, %v1849, 0
        %v1856 = vsel %vm1293, %v1851, 0
        %1858 = vmatprep.subr.mxu0 0.0
        %1859 = vmatpush1.xpose.msra.mxu0 0.0
        %1860 = vmatprep.subr.mxu0 0.0
        %1861 = vmatpush1.xpose.msra.mxu0 0.0
        %1862 = vmatprep.subr.mxu0 0.0
        %1863 = vmatpush1.xpose.msra.mxu0 0.0
        %1864 = vmatprep.subr.mxu0 0.0
        %1865 = vmatpush1.xpose.msra.mxu0 0.0
        %1866 = vmatprep.subr.mxu0 0.0
        %1867 = vmatpush1.xpose.msra.mxu0 0.0
        %1868 = vmatprep.subr.mxu0 0.0
        %1869 = vmatpush1.xpose.msra.mxu0 0.0
        %1870 = vmatprep.subr.mxu0 0.0
        %1871 = vmatpush1.xpose.msra.mxu0 0.0
        %1872 = vmatprep.subr.mxu0 0.0
        %1873 = vmatpush1.xpose.msra.mxu0 0.0
        %1874 = vmatprep.subr.mxu0 0.0
        %1875 = vmatpush1.xpose.msra.mxu0 0.0
        %1876 = vmatprep.subr.mxu0 0.0
        %1877 = vmatpush1.xpose.msra.mxu0 0.0
        %1878 = vmatprep.subr.mxu0 0.0
        %1879 = vmatpush1.xpose.msra.mxu0 0.0
        %1880 = vmatprep.subr.mxu0 0.0
        %1881 = vmatpush1.xpose.msra.mxu0 0.0
        %1882 = vmatprep.subr.mxu0 0.0
        %1883 = vmatpush1.xpose.msra.mxu0 0.0
        %1884 = vmatprep.subr.mxu0 0.0
        %1885 = vmatpush1.xpose.msra.mxu0 0.0
        %1886 = vmatprep.subr.mxu0 0.0
        %1887 = vmatpush1.xpose.msra.mxu0 %v1856
        %1888 = vmatprep.subr.mxu0 0.0
        %1889 = vmatpush1.xpose.msra.mxu0 %v1854
        %1890 = vmatprep.subr.mxu0 0.0
        %1891 = vmatpush2.xpose.msra.mxu0 0.0
        %1892 = vmatprep.subr.mxu0 0.0
        %1893 = vmatpush2.xpose.msra.mxu0 0.0
        %1894 = vmatprep.subr.mxu0 0.0
        %1895 = vmatpush2.xpose.msra.mxu0 0.0
        %1896 = vmatprep.subr.mxu0 0.0
        %1897 = vmatpush2.xpose.msra.mxu0 0.0
        %1898 = vmatprep.subr.mxu0 0.0
        %1899 = vmatpush2.xpose.msra.mxu0 0.0
        %1900 = vmatprep.subr.mxu0 0.0
        %1901 = vmatpush2.xpose.msra.mxu0 0.0
        %1902 = vmatprep.subr.mxu0 0.0
        %1903 = vmatpush2.xpose.msra.mxu0 0.0
        %1904 = vmatprep.subr.mxu0 0.0
        %1905 = vmatpush2.xpose.msra.mxu0 0.0
        %1906 = vmatprep.subr.mxu0 0.0
        %1907 = vmatpush2.xpose.msra.mxu0 0.0
        %1908 = vmatprep.subr.mxu0 0.0
        %1909 = vmatpush2.xpose.msra.mxu0 0.0
        %1910 = vmatprep.subr.mxu0 0.0
        %1911 = vmatpush2.xpose.msra.mxu0 0.0
        %1912 = vmatprep.subr.mxu0 0.0
        %1913 = vmatpush2.xpose.msra.mxu0 0.0
        %1914 = vmatprep.subr.mxu0 0.0
        %1915 = vmatpush2.xpose.msra.mxu0 0.0
        %1916 = vmatprep.subr.mxu0 0.0
        %1917 = vmatpush2.xpose.msra.mxu0 0.0
        %1918 = vmatprep.subr.mxu0 0.0
        %1919 = vmatpush2.xpose.msra.mxu0 0.0
        %1920 = vmatprep.subr.mxu0 0.0
        %1921 = vmatpush2.xpose.msra.mxu0 0.0
        %1922 = vmatprep.mubr.f32.mxu0 0.0
        %1923 = vmatmul.mubr.f32.gmra.mxu0 %v1852
        %v1924 = vpop.f32.mrf.mxu0
        %v1925 = vadd.f32 %v1292, %v1924
        %v1926 = vpop.f32.mrf.mxu0
        %1927 = vdwg.mxu0
        %v1928 = vsel %vm1373, %v1925, -inf
        %1929 = vmax.xlane.f32.xlu0 %v1928
        %v1930 = vpop.xlane.xlu0 %1929
        %v1931 = vsub.f32 %v1925, %v1930
        %v1932 = vmul.f32 %v1931, 1.442695
        %v1933 = vpow.pop %v1932
        %v1934 = vsel %vm1373, %v1933, 0.0
        %1935 = vadd.xlane.f32.xlu0 %v1934
        %v1936 = vpop.xlane.xlu0 %1935
        %v1937 = vrcp.pop %v1936
        %v1938 = vmul.f32 %v1933, %v1937
        %1941 = vrot.lane.b32.xlu0 %v1841, 104
        %v1942 = vpop.permute.xlu0 %1941
        %1943 = vrot.lane.b32.xlu0 %v1842, 104
        %v1944 = vpop.permute.xlu0 %1943
        %v1948 = vsel %vm1373, %v1938, 0
        %1950 = vmatprep.subr.mxu0 0.0
        %1951 = vmatpush1.msra.mxu0 0.0
        %1952 = vmatprep.subr.mxu0 0.0
        %1953 = vmatpush1.msra.mxu0 0.0
        %1954 = vmatprep.subr.mxu0 0.0
        %1955 = vmatpush1.msra.mxu0 0.0
        %1956 = vmatprep.subr.mxu0 0.0
        %1957 = vmatpush1.msra.mxu0 0.0
        %1958 = vmatprep.subr.mxu0 0.0
        %1959 = vmatpush1.msra.mxu0 0.0
        %1960 = vmatprep.subr.mxu0 0.0
        %1961 = vmatpush1.msra.mxu0 0.0
        %1962 = vmatprep.subr.mxu0 0.0
        %1963 = vmatpush1.msra.mxu0 0.0
        %1964 = vmatprep.subr.mxu0 0.0
        %1965 = vmatpush1.msra.mxu0 0.0
        %1966 = vmatprep.subr.mxu0 0.0
        %1967 = vmatpush1.msra.mxu0 0.0
        %1968 = vmatprep.subr.mxu0 0.0
        %1969 = vmatpush1.msra.mxu0 0.0
        %1970 = vmatprep.subr.mxu0 0.0
        %1971 = vmatpush1.msra.mxu0 0.0
        %1972 = vmatprep.subr.mxu0 0.0
        %1973 = vmatpush1.msra.mxu0 0.0
        %1974 = vmatprep.subr.mxu0 0.0
        %1975 = vmatpush1.msra.mxu0 0.0
        %1976 = vmatprep.subr.mxu0 0.0
        %1977 = vmatpush1.msra.mxu0 0.0
        %1978 = vmatprep.subr.mxu0 0.0
        %1979 = vmatpush1.msra.mxu0 %v1944
        %1980 = vmatprep.subr.mxu0 0.0
        %1981 = vmatpush1.msra.mxu0 %v1942
        %1982 = vmatprep.subr.mxu0 0.0
        %1983 = vmatpush2.msra.mxu0 0.0
        %1984 = vmatprep.subr.mxu0 0.0
        %1985 = vmatpush2.msra.mxu0 0.0
        %1986 = vmatprep.subr.mxu0 0.0
        %1987 = vmatpush2.msra.mxu0 0.0
        %1988 = vmatprep.subr.mxu0 0.0
        %1989 = vmatpush2.msra.mxu0 0.0
        %1990 = vmatprep.subr.mxu0 0.0
        %1991 = vmatpush2.msra.mxu0 0.0
        %1992 = vmatprep.subr.mxu0 0.0
        %1993 = vmatpush2.msra.mxu0 0.0
        %1994 = vmatprep.subr.mxu0 0.0
        %1995 = vmatpush2.msra.mxu0 0.0
        %1996 = vmatprep.subr.mxu0 0.0
        %1997 = vmatpush2.msra.mxu0 0.0
        %1998 = vmatprep.subr.mxu0 0.0
        %1999 = vmatpush2.msra.mxu0 0.0
        %2000 = vmatprep.subr.mxu0 0.0
        %2001 = vmatpush2.msra.mxu0 0.0
        %2002 = vmatprep.subr.mxu0 0.0
        %2003 = vmatpush2.msra.mxu0 0.0
        %2004 = vmatprep.subr.mxu0 0.0
        %2005 = vmatpush2.msra.mxu0 0.0
        %2006 = vmatprep.subr.mxu0 0.0
        %2007 = vmatpush2.msra.mxu0 0.0
        %2008 = vmatprep.subr.mxu0 0.0
        %2009 = vmatpush2.msra.mxu0 0.0
        %2010 = vmatprep.subr.mxu0 0.0
        %2011 = vmatpush2.msra.mxu0 0.0
        %2012 = vmatprep.subr.mxu0 0.0
        %2013 = vmatpush2.msra.mxu0 0.0
        %2014 = vmatprep.mubr.f32.mxu0 0.0
        %2015 = vmatmul.mubr.f32.gmra.mxu0 %v1948
        %v2016 = vpop.f32.mrf.mxu0
        %v2017 = vadd.f32 0.0, %v2016
        %v2018 = vpop.f32.mrf.mxu0
        %2019 = vdwg.mxu0
        %2021 = vrot.lane.b32.xlu0 %v2017, 24
        %v2022 = vpop.permute.xlu0 %2021
        %vm2024 = vcmask 261312
        %2025 = vst.msk [vmem:[#allocation3] sm:$0xff] %vm2024, %v2022
        %v2026 = vld [vmem:[#allocation3] sm:$0xff]
        %v2027 = vld [vmem:[#allocation15] sm:$0xff]
        %v2028 = vld [vmem:[#allocation15 + $0x8] sm:$0xff]
        %v2029 = vld [vmem:[#allocation15 + $0x10] sm:$0xff]
        %v2030 = vld [vmem:[#allocation15 + $0x18] sm:$0xff]
        %v2031 = vld [vmem:[#allocation15 + $0x20] sm:$0xff]
        %v2032 = vld [vmem:[#allocation15 + $0x28] sm:$0xff]
        %v2033 = vld [vmem:[#allocation15 + $0x30] sm:$0xff]
        %v2034 = vld [vmem:[#allocation15 + $0x38] sm:$0xff]
        %v2035 = vld [vmem:[#allocation15 + $0x40] sm:$0xff]
        %v2036 = vld [vmem:[#allocation15 + $0x48] sm:$0xff]
        %v2037 = vld [vmem:[#allocation15 + $0x50] sm:$0xff]
        %v2038 = vld [vmem:[#allocation15 + $0x58] sm:$0xff]
        %v2039 = vld [vmem:[#allocation15 + $0x60] sm:$0xff]
        %v2040 = vld [vmem:[#allocation15 + $0x68] sm:$0xff]
        %v2041 = vld [vmem:[#allocation15 + $0x70] sm:$0xff]
        %v2042 = vld [vmem:[#allocation15 + $0x78] sm:$0xff]
        %v2043 = vld [vmem:[%s9] sm:$0x1]
        %v2045 = vlaneseq
        %v2046 = vshrl.u32 %v2045, 7
        %v2047 = vsub.s32 0, %v2046
        %v2048 = vrot.slane %v2043, %v2047
        %2050 = vmatprep.subr.mxu0 0.0
        %2051 = vmatpush1.msra.mxu0 %v2042
        %2052 = vmatprep.subr.mxu0 0.0
        %2053 = vmatpush1.msra.mxu0 %v2041
        %2054 = vmatprep.subr.mxu0 0.0
        %2055 = vmatpush1.msra.mxu0 %v2040
        %2056 = vmatprep.subr.mxu0 0.0
        %2057 = vmatpush1.msra.mxu0 %v2039
        %2058 = vmatprep.subr.mxu0 0.0
        %2059 = vmatpush1.msra.mxu0 %v2038
        %2060 = vmatprep.subr.mxu0 0.0
        %2061 = vmatpush1.msra.mxu0 %v2037
        %2062 = vmatprep.subr.mxu0 0.0
        %2063 = vmatpush1.msra.mxu0 %v2036
        %2064 = vmatprep.subr.mxu0 0.0
        %2065 = vmatpush1.msra.mxu0 %v2035
        %2066 = vmatprep.subr.mxu0 0.0
        %2067 = vmatpush1.msra.mxu0 %v2034
        %2068 = vmatprep.subr.mxu0 0.0
        %2069 = vmatpush1.msra.mxu0 %v2033
        %2070 = vmatprep.subr.mxu0 0.0
        %2071 = vmatpush1.msra.mxu0 %v2032
        %2072 = vmatprep.subr.mxu0 0.0
        %2073 = vmatpush1.msra.mxu0 %v2031
        %2074 = vmatprep.subr.mxu0 0.0
        %2075 = vmatpush1.msra.mxu0 %v2030
        %2076 = vmatprep.subr.mxu0 0.0
        %2077 = vmatpush1.msra.mxu0 %v2029
        %2078 = vmatprep.subr.mxu0 0.0
        %2079 = vmatpush1.msra.mxu0 %v2028
        %2080 = vmatprep.subr.mxu0 0.0
        %2081 = vmatpush1.msra.mxu0 %v2027
        %2082 = vmatprep.subr.mxu0 0.0
        %2083 = vmatpush2.msra.mxu0 0.0
        %2084 = vmatprep.subr.mxu0 0.0
        %2085 = vmatpush2.msra.mxu0 0.0
        %2086 = vmatprep.subr.mxu0 0.0
        %2087 = vmatpush2.msra.mxu0 0.0
        %2088 = vmatprep.subr.mxu0 0.0
        %2089 = vmatpush2.msra.mxu0 0.0
        %2090 = vmatprep.subr.mxu0 0.0
        %2091 = vmatpush2.msra.mxu0 0.0
        %2092 = vmatprep.subr.mxu0 0.0
        %2093 = vmatpush2.msra.mxu0 0.0
        %2094 = vmatprep.subr.mxu0 0.0
        %2095 = vmatpush2.msra.mxu0 0.0
        %2096 = vmatprep.subr.mxu0 0.0
        %2097 = vmatpush2.msra.mxu0 0.0
        %2098 = vmatprep.subr.mxu0 0.0
        %2099 = vmatpush2.msra.mxu0 0.0
        %2100 = vmatprep.subr.mxu0 0.0
        %2101 = vmatpush2.msra.mxu0 0.0
        %2102 = vmatprep.subr.mxu0 0.0
        %2103 = vmatpush2.msra.mxu0 0.0
        %2104 = vmatprep.subr.mxu0 0.0
        %2105 = vmatpush2.msra.mxu0 0.0
        %2106 = vmatprep.subr.mxu0 0.0
        %2107 = vmatpush2.msra.mxu0 0.0
        %2108 = vmatprep.subr.mxu0 0.0
        %2109 = vmatpush2.msra.mxu0 0.0
        %2110 = vmatprep.subr.mxu0 0.0
        %2111 = vmatpush2.msra.mxu0 0.0
        %2112 = vmatprep.subr.mxu0 0.0
        %2113 = vmatpush2.msra.mxu0 0.0
        %2114 = vmatprep.mubr.f32.mxu0 0.0
        %2115 = vmatmul.mubr.f32.gmra.mxu0 %v2026
        %v2116 = vpop.f32.mrf.mxu0
        %v2117 = vadd.f32 %v2048, %v2116
        %v2118 = vpop.f32.mrf.mxu0
        %2119 = vdwg.mxu0
        %v2120 = vadd.f32 %v980, %v2117
        %v2121 = vmul.f32 %v2120, %v970
        %2122 = vadd.xlane.f32.xlu0 %v2121
        %v2123 = vpop.xlane.xlu0 %2122
        %v2124 = vmul.f32 %v2123, 0.03125
        %v2125 = vsub.f32 %v2120, %v2124
        %v2126 = vmul.f32 %v2125, %v970
        %v2127 = vmul.f32 %v2126, %v2126
        %2128 = vadd.xlane.f32.xlu0 %v2127
        %v2129 = vpop.xlane.xlu0 %2128
        %v2130 = vmul.f32 %v2129, 0.03125
        %v2131 = vadd.f32 %v2130, 1e-05
        %v2132 = vrsqrt.pop %v2131
        %v2133 = vmul.f32 %v2126, %v2132
        %v2134 = vld [vmem:[%s10] sm:$0x1]
        %v2136 = vlaneseq
        %v2137 = vshrl.u32 %v2136, 7
        %v2138 = vsub.s32 0, %v2137
        %v2139 = vrot.slane %v2134, %v2138
        %v2141 = vmul.f32 %v2133, %v2139
        %v2142 = vld [vmem:[%s11] sm:$0x1]
        %v2144 = vlaneseq
        %v2145 = vshrl.u32 %v2144, 7
        %v2146 = vsub.s32 0, %v2145
        %v2147 = vrot.slane %v2142, %v2146
        %v2149 = vadd.f32 %v2141, %v2147
        %v2150 = vadd.f32 %v2149, %v981
        %v2151 = vld [vmem:[#allocation16] sm:$0xff]
        %v2152 = vld [vmem:[#allocation16 + $0x8] sm:$0xff]
        %v2153 = vld [vmem:[#allocation16 + $0x10] sm:$0xff]
        %v2154 = vld [vmem:[#allocation16 + $0x18] sm:$0xff]
        %v2155 = vld [vmem:[#allocation16 + $0x20] sm:$0xff]
        %v2156 = vld [vmem:[#allocation16 + $0x28] sm:$0xff]
        %v2157 = vld [vmem:[#allocation16 + $0x30] sm:$0xff]
        %v2158 = vld [vmem:[#allocation16 + $0x38] sm:$0xff]
        %v2159 = vld [vmem:[#allocation16 + $0x40] sm:$0xff]
        %v2160 = vld [vmem:[#allocation16 + $0x48] sm:$0xff]
        %v2161 = vld [vmem:[#allocation16 + $0x50] sm:$0xff]
        %v2162 = vld [vmem:[#allocation16 + $0x58] sm:$0xff]
        %v2163 = vld [vmem:[#allocation16 + $0x60] sm:$0xff]
        %v2164 = vld [vmem:[#allocation16 + $0x68] sm:$0xff]
        %v2165 = vld [vmem:[#allocation16 + $0x70] sm:$0xff]
        %v2166 = vld [vmem:[#allocation16 + $0x78] sm:$0xff]
        %v2167 = vld [vmem:[#allocation16 + $0x80] sm:$0xff]
        %v2168 = vld [vmem:[#allocation16 + $0x88] sm:$0xff]
        %v2169 = vld [vmem:[#allocation16 + $0x90] sm:$0xff]
        %v2170 = vld [vmem:[#allocation16 + $0x98] sm:$0xff]
        %v2171 = vld [vmem:[#allocation16 + $0xa0] sm:$0xff]
        %v2172 = vld [vmem:[#allocation16 + $0xa8] sm:$0xff]
        %v2173 = vld [vmem:[#allocation16 + $0xb0] sm:$0xff]
        %v2174 = vld [vmem:[#allocation16 + $0xb8] sm:$0xff]
        %v2175 = vld [vmem:[#allocation16 + $0xc0] sm:$0xff]
        %v2176 = vld [vmem:[#allocation16 + $0xc8] sm:$0xff]
        %v2177 = vld [vmem:[#allocation16 + $0xd0] sm:$0xff]
        %v2178 = vld [vmem:[#allocation16 + $0xd8] sm:$0xff]
        %v2179 = vld [vmem:[#allocation16 + $0xe0] sm:$0xff]
        %v2180 = vld [vmem:[#allocation16 + $0xe8] sm:$0xff]
        %v2181 = vld [vmem:[#allocation16 + $0xf0] sm:$0xff]
        %v2182 = vld [vmem:[#allocation16 + $0xf8] sm:$0xff]
        %v2183 = vld [vmem:[#allocation16 + $0x100] sm:$0xff]
        %v2184 = vld [vmem:[#allocation16 + $0x108] sm:$0xff]
        %v2185 = vld [vmem:[#allocation16 + $0x110] sm:$0xff]
        %v2186 = vld [vmem:[#allocation16 + $0x118] sm:$0xff]
        %v2187 = vld [vmem:[#allocation16 + $0x120] sm:$0xff]
        %v2188 = vld [vmem:[#allocation16 + $0x128] sm:$0xff]
        %v2189 = vld [vmem:[#allocation16 + $0x130] sm:$0xff]
        %v2190 = vld [vmem:[#allocation16 + $0x138] sm:$0xff]
        %v2191 = vld [vmem:[#allocation16 + $0x140] sm:$0xff]
        %v2192 = vld [vmem:[#allocation16 + $0x148] sm:$0xff]
        %v2193 = vld [vmem:[#allocation16 + $0x150] sm:$0xff]
        %v2194 = vld [vmem:[#allocation16 + $0x158] sm:$0xff]
        %v2195 = vld [vmem:[#allocation16 + $0x160] sm:$0xff]
        %v2196 = vld [vmem:[#allocation16 + $0x168] sm:$0xff]
        %v2197 = vld [vmem:[#allocation16 + $0x170] sm:$0xff]
        %v2198 = vld [vmem:[#allocation16 + $0x178] sm:$0xff]
        %v2199 = vld [vmem:[%s13] sm:$0x7]
        %v2201 = vlaneseq
        %v2202 = vshrl.u32 %v2201, 7
        %v2203 = vsub.s32 0, %v2202
        %v2204 = vrot.slane %v2199, %v2203
        %v2205 = vlaneseq
        %v2206 = vshrl.u32 %v2205, 7
        %v2207 = vsub.s32 1, %v2206
        %v2208 = vrot.slane %v2199, %v2207
        %v2209 = vlaneseq
        %v2210 = vshrl.u32 %v2209, 7
        %v2211 = vsub.s32 2, %v2210
        %v2212 = vrot.slane %v2199, %v2211
        %2216 = vmatprep.subr.mxu0 %v2197
        %2217 = vmatpush1.msra.mxu0 %v2196
        %2218 = vmatprep.subr.mxu0 %v2194
        %2219 = vmatpush1.msra.mxu0 %v2193
        %2220 = vmatprep.subr.mxu0 %v2191
        %2221 = vmatpush1.msra.mxu0 %v2190
        %2222 = vmatprep.subr.mxu0 %v2188
        %2223 = vmatpush1.msra.mxu0 %v2187
        %2224 = vmatprep.subr.mxu0 %v2185
        %2225 = vmatpush1.msra.mxu0 %v2184
        %2226 = vmatprep.subr.mxu0 %v2182
        %2227 = vmatpush1.msra.mxu0 %v2181
        %2228 = vmatprep.subr.mxu0 %v2179
        %2229 = vmatpush1.msra.mxu0 %v2178
        %2230 = vmatprep.subr.mxu0 %v2176
        %2231 = vmatpush1.msra.mxu0 %v2175
        %2232 = vmatprep.subr.mxu0 %v2173
        %2233 = vmatpush1.msra.mxu0 %v2172
        %2234 = vmatprep.subr.mxu0 %v2170
        %2235 = vmatpush1.msra.mxu0 %v2169
        %2236 = vmatprep.subr.mxu0 %v2167
        %2237 = vmatpush1.msra.mxu0 %v2166
        %2238 = vmatprep.subr.mxu0 %v2164
        %2239 = vmatpush1.msra.mxu0 %v2163
        %2240 = vmatprep.subr.mxu0 %v2161
        %2241 = vmatpush1.msra.mxu0 %v2160
        %2242 = vmatprep.subr.mxu0 %v2158
        %2243 = vmatpush1.msra.mxu0 %v2157
        %2244 = vmatprep.subr.mxu0 %v2155
        %2245 = vmatpush1.msra.mxu0 %v2154
        %2246 = vmatprep.subr.mxu0 %v2152
        %2247 = vmatpush1.msra.mxu0 %v2151
        %2248 = vmatprep.subr.mxu0 0.0
        %2249 = vmatpush2.msra.mxu0 0.0
        %2250 = vmatprep.subr.mxu0 0.0
        %2251 = vmatpush2.msra.mxu0 0.0
        %2252 = vmatprep.subr.mxu0 0.0
        %2253 = vmatpush2.msra.mxu0 0.0
        %2254 = vmatprep.subr.mxu0 0.0
        %2255 = vmatpush2.msra.mxu0 0.0
        %2256 = vmatprep.subr.mxu0 0.0
        %2257 = vmatpush2.msra.mxu0 0.0
        %2258 = vmatprep.subr.mxu0 0.0
        %2259 = vmatpush2.msra.mxu0 0.0
        %2260 = vmatprep.subr.mxu0 0.0
        %2261 = vmatpush2.msra.mxu0 0.0
        %2262 = vmatprep.subr.mxu0 0.0
        %2263 = vmatpush2.msra.mxu0 0.0
        %2264 = vmatprep.subr.mxu0 0.0
        %2265 = vmatpush2.msra.mxu0 0.0
        %2266 = vmatprep.subr.mxu0 0.0
        %2267 = vmatpush2.msra.mxu0 0.0
        %2268 = vmatprep.subr.mxu0 0.0
        %2269 = vmatpush2.msra.mxu0 0.0
        %2270 = vmatprep.subr.mxu0 0.0
        %2271 = vmatpush2.msra.mxu0 0.0
        %2272 = vmatprep.subr.mxu0 0.0
        %2273 = vmatpush2.msra.mxu0 0.0
        %2274 = vmatprep.subr.mxu0 0.0
        %2275 = vmatpush2.msra.mxu0 0.0
        %2276 = vmatprep.subr.mxu0 0.0
        %2277 = vmatpush2.msra.mxu0 0.0
        %2278 = vmatprep.subr.mxu0 0.0
        %2279 = vmatpush2.msra.mxu0 0.0
        %2280 = vmatprep.mubr.f32.mxu0 0.0
        %2281 = vmatmul.mubr.f32.gmra.mxu0 %v2150
        %v2282 = vpop.f32.mrf.mxu0
        %v2283 = vadd.f32 %v2204, %v2282
        %v2284 = vpop.f32.mrf.mxu0
        %v2285 = vadd.f32 %v2208, %v2284
        %2286 = vdwg.mxu0
        %2287 = vmatprep.subr.mxu0 0.0
        %2288 = vmatpush1.msra.mxu0 %v2198
        %2289 = vmatprep.subr.mxu0 0.0
        %2290 = vmatpush1.msra.mxu0 %v2195
        %2291 = vmatprep.subr.mxu0 0.0
        %2292 = vmatpush1.msra.mxu0 %v2192
        %2293 = vmatprep.subr.mxu0 0.0
        %2294 = vmatpush1.msra.mxu0 %v2189
        %2295 = vmatprep.subr.mxu0 0.0
        %2296 = vmatpush1.msra.mxu0 %v2186
        %2297 = vmatprep.subr.mxu0 0.0
        %2298 = vmatpush1.msra.mxu0 %v2183
        %2299 = vmatprep.subr.mxu0 0.0
        %2300 = vmatpush1.msra.mxu0 %v2180
        %2301 = vmatprep.subr.mxu0 0.0
        %2302 = vmatpush1.msra.mxu0 %v2177
        %2303 = vmatprep.subr.mxu0 0.0
        %2304 = vmatpush1.msra.mxu0 %v2174
        %2305 = vmatprep.subr.mxu0 0.0
        %2306 = vmatpush1.msra.mxu0 %v2171
        %2307 = vmatprep.subr.mxu0 0.0
        %2308 = vmatpush1.msra.mxu0 %v2168
        %2309 = vmatprep.subr.mxu0 0.0
        %2310 = vmatpush1.msra.mxu0 %v2165
        %2311 = vmatprep.subr.mxu0 0.0
        %2312 = vmatpush1.msra.mxu0 %v2162
        %2313 = vmatprep.subr.mxu0 0.0
        %2314 = vmatpush1.msra.mxu0 %v2159
        %2315 = vmatprep.subr.mxu0 0.0
        %2316 = vmatpush1.msra.mxu0 %v2156
        %2317 = vmatprep.subr.mxu0 0.0
        %2318 = vmatpush1.msra.mxu0 %v2153
        %2319 = vmatprep.subr.mxu0 0.0
        %2320 = vmatpush2.msra.mxu0 0.0
        %2321 = vmatprep.subr.mxu0 0.0
        %2322 = vmatpush2.msra.mxu0 0.0
        %2323 = vmatprep.subr.mxu0 0.0
        %2324 = vmatpush2.msra.mxu0 0.0
        %2325 = vmatprep.subr.mxu0 0.0
        %2326 = vmatpush2.msra.mxu0 0.0
        %2327 = vmatprep.subr.mxu0 0.0
        %2328 = vmatpush2.msra.mxu0 0.0
        %2329 = vmatprep.subr.mxu0 0.0
        %2330 = vmatpush2.msra.mxu0 0.0
        %2331 = vmatprep.subr.mxu0 0.0
        %2332 = vmatpush2.msra.mxu0 0.0
        %2333 = vmatprep.subr.mxu0 0.0
        %2334 = vmatpush2.msra.mxu0 0.0
        %2335 = vmatprep.subr.mxu0 0.0
        %2336 = vmatpush2.msra.mxu0 0.0
        %2337 = vmatprep.subr.mxu0 0.0
        %2338 = vmatpush2.msra.mxu0 0.0
        %2339 = vmatprep.subr.mxu0 0.0
        %2340 = vmatpush2.msra.mxu0 0.0
        %2341 = vmatprep.subr.mxu0 0.0
        %2342 = vmatpush2.msra.mxu0 0.0
        %2343 = vmatprep.subr.mxu0 0.0
        %2344 = vmatpush2.msra.mxu0 0.0
        %2345 = vmatprep.subr.mxu0 0.0
        %2346 = vmatpush2.msra.mxu0 0.0
        %2347 = vmatprep.subr.mxu0 0.0
        %2348 = vmatpush2.msra.mxu0 0.0
        %2349 = vmatprep.subr.mxu0 0.0
        %2350 = vmatpush2.msra.mxu0 0.0
        %2351 = vmatprep.mubr.f32.mxu0 0.0
        %2352 = vmatmul.mubr.f32.gmra.mxu0 %v2150
        %v2353 = vpop.f32.mrf.mxu0
        %v2354 = vadd.f32 %v2212, %v2353
        %v2355 = vpop.f32.mrf.mxu0
        %2356 = vdwg.mxu0
        %2357 = vst [vmem:[#allocation2] sm:$0xff] %v2283
        %2358 = vst [vmem:[#allocation2 + $0x8] sm:$0xff] %v2285
        %2359 = vst [vmem:[#allocation2 + $0x10] sm:$0xff] %v2354
        %v2360 = vld [vmem:[#allocation2] sm:$0xff]
        %v2361 = vmul.f32 %v2360, 0.35355338
        %v2362 = vld [vmem:[#allocation2 + $0x8] sm:$0xff]
        %v2363 = vld [vmem:[#allocation2 + $0x10] sm:$0xff]
        %v2364 = vlaneseq
        %v2365 = vshrl.u32 %v2364, 7
        %v2366 = vsub.s32 0, %v2365
        %v2367 = vrot.slane %v978, %v2366
        %v2369 = vsel %vm1293, %v2361, 0
        %v2372 = vsel %vm1293, %v2362, 0
        %2374 = vmatprep.subr.mxu0 0.0
        %2375 = vmatpush1.xpose.msra.mxu0 0.0
        %2376 = vmatprep.subr.mxu0 0.0
        %2377 = vmatpush1.xpose.msra.mxu0 0.0
        %2378 = vmatprep.subr.mxu0 0.0
        %2379 = vmatpush1.xpose.msra.mxu0 0.0
        %2380 = vmatprep.subr.mxu0 0.0
        %2381 = vmatpush1.xpose.msra.mxu0 0.0
        %2382 = vmatprep.subr.mxu0 0.0
        %2383 = vmatpush1.xpose.msra.mxu0 0.0
        %2384 = vmatprep.subr.mxu0 0.0
        %2385 = vmatpush1.xpose.msra.mxu0 0.0
        %2386 = vmatprep.subr.mxu0 0.0
        %2387 = vmatpush1.xpose.msra.mxu0 0.0
        %2388 = vmatprep.subr.mxu0 0.0
        %2389 = vmatpush1.xpose.msra.mxu0 0.0
        %2390 = vmatprep.subr.mxu0 0.0
        %2391 = vmatpush1.xpose.msra.mxu0 0.0
        %2392 = vmatprep.subr.mxu0 0.0
        %2393 = vmatpush1.xpose.msra.mxu0 0.0
        %2394 = vmatprep.subr.mxu0 0.0
        %2395 = vmatpush1.xpose.msra.mxu0 0.0
        %2396 = vmatprep.subr.mxu0 0.0
        %2397 = vmatpush1.xpose.msra.mxu0 0.0
        %2398 = vmatprep.subr.mxu0 0.0
        %2399 = vmatpush1.xpose.msra.mxu0 0.0
        %2400 = vmatprep.subr.mxu0 0.0
        %2401 = vmatpush1.xpose.msra.mxu0 0.0
        %2402 = vmatprep.subr.mxu0 0.0
        %2403 = vmatpush1.xpose.msra.mxu0 0.0
        %2404 = vmatprep.subr.mxu0 0.0
        %2405 = vmatpush1.xpose.msra.mxu0 %v2372
        %2406 = vmatprep.subr.mxu0 0.0
        %2407 = vmatpush2.xpose.msra.mxu0 0.0
        %2408 = vmatprep.subr.mxu0 0.0
        %2409 = vmatpush2.xpose.msra.mxu0 0.0
        %2410 = vmatprep.subr.mxu0 0.0
        %2411 = vmatpush2.xpose.msra.mxu0 0.0
        %2412 = vmatprep.subr.mxu0 0.0
        %2413 = vmatpush2.xpose.msra.mxu0 0.0
        %2414 = vmatprep.subr.mxu0 0.0
        %2415 = vmatpush2.xpose.msra.mxu0 0.0
        %2416 = vmatprep.subr.mxu0 0.0
        %2417 = vmatpush2.xpose.msra.mxu0 0.0
        %2418 = vmatprep.subr.mxu0 0.0
        %2419 = vmatpush2.xpose.msra.mxu0 0.0
        %2420 = vmatprep.subr.mxu0 0.0
        %2421 = vmatpush2.xpose.msra.mxu0 0.0
        %2422 = vmatprep.subr.mxu0 0.0
        %2423 = vmatpush2.xpose.msra.mxu0 0.0
        %2424 = vmatprep.subr.mxu0 0.0
        %2425 = vmatpush2.xpose.msra.mxu0 0.0
        %2426 = vmatprep.subr.mxu0 0.0
        %2427 = vmatpush2.xpose.msra.mxu0 0.0
        %2428 = vmatprep.subr.mxu0 0.0
        %2429 = vmatpush2.xpose.msra.mxu0 0.0
        %2430 = vmatprep.subr.mxu0 0.0
        %2431 = vmatpush2.xpose.msra.mxu0 0.0
        %2432 = vmatprep.subr.mxu0 0.0
        %2433 = vmatpush2.xpose.msra.mxu0 0.0
        %2434 = vmatprep.subr.mxu0 0.0
        %2435 = vmatpush2.xpose.msra.mxu0 0.0
        %2436 = vmatprep.subr.mxu0 0.0
        %2437 = vmatpush2.xpose.msra.mxu0 0.0
        %2438 = vmatprep.mubr.f32.mxu0 0.0
        %2439 = vmatmul.mubr.f32.gmra.mxu0 %v2369
        %v2440 = vpop.f32.mrf.mxu0
        %v2441 = vadd.f32 %v2367, %v2440
        %v2442 = vpop.f32.mrf.mxu0
        %2443 = vdwg.mxu0
        %v2444 = vsel %vm1293, %v2441, -inf
        %2445 = vmax.xlane.f32.xlu0 %v2444
        %v2446 = vpop.xlane.xlu0 %2445
        %v2447 = vsub.f32 %v2441, %v2446
        %v2448 = vmul.f32 %v2447, 1.442695
        %v2449 = vpow.pop %v2448
        %v2450 = vsel %vm1293, %v2449, 0.0
        %2451 = vadd.xlane.f32.xlu0 %v2450
        %v2452 = vpop.xlane.xlu0 %2451
        %v2453 = vrcp.pop %v2452
        %v2454 = vmul.f32 %v2449, %v2453
        %v2456 = vsel %vm1293, %v2454, 0
        %2458 = vmatprep.subr.mxu0 0.0
        %2459 = vmatpush1.msra.mxu0 0.0
        %2460 = vmatprep.subr.mxu0 0.0
        %2461 = vmatpush1.msra.mxu0 0.0
        %2462 = vmatprep.subr.mxu0 0.0
        %2463 = vmatpush1.msra.mxu0 0.0
        %2464 = vmatprep.subr.mxu0 0.0
        %2465 = vmatpush1.msra.mxu0 0.0
        %2466 = vmatprep.subr.mxu0 0.0
        %2467 = vmatpush1.msra.mxu0 0.0
        %2468 = vmatprep.subr.mxu0 0.0
        %2469 = vmatpush1.msra.mxu0 0.0
        %2470 = vmatprep.subr.mxu0 0.0
        %2471 = vmatpush1.msra.mxu0 0.0
        %2472 = vmatprep.subr.mxu0 0.0
        %2473 = vmatpush1.msra.mxu0 0.0
        %2474 = vmatprep.subr.mxu0 0.0
        %2475 = vmatpush1.msra.mxu0 0.0
        %2476 = vmatprep.subr.mxu0 0.0
        %2477 = vmatpush1.msra.mxu0 0.0
        %2478 = vmatprep.subr.mxu0 0.0
        %2479 = vmatpush1.msra.mxu0 0.0
        %2480 = vmatprep.subr.mxu0 0.0
        %2481 = vmatpush1.msra.mxu0 0.0
        %2482 = vmatprep.subr.mxu0 0.0
        %2483 = vmatpush1.msra.mxu0 0.0
        %2484 = vmatprep.subr.mxu0 0.0
        %2485 = vmatpush1.msra.mxu0 0.0
        %2486 = vmatprep.subr.mxu0 0.0
        %2487 = vmatpush1.msra.mxu0 0.0
        %2488 = vmatprep.subr.mxu0 0.0
        %2489 = vmatpush1.msra.mxu0 %v2363
        %2490 = vmatprep.subr.mxu0 0.0
        %2491 = vmatpush2.msra.mxu0 0.0
        %2492 = vmatprep.subr.mxu0 0.0
        %2493 = vmatpush2.msra.mxu0 0.0
        %2494 = vmatprep.subr.mxu0 0.0
        %2495 = vmatpush2.msra.mxu0 0.0
        %2496 = vmatprep.subr.mxu0 0.0
        %2497 = vmatpush2.msra.mxu0 0.0
        %2498 = vmatprep.subr.mxu0 0.0
        %2499 = vmatpush2.msra.mxu0 0.0
        %2500 = vmatprep.subr.mxu0 0.0
        %2501 = vmatpush2.msra.mxu0 0.0
        %2502 = vmatprep.subr.mxu0 0.0
        %2503 = vmatpush2.msra.mxu0 0.0
        %2504 = vmatprep.subr.mxu0 0.0
        %2505 = vmatpush2.msra.mxu0 0.0
        %2506 = vmatprep.subr.mxu0 0.0
        %2507 = vmatpush2.msra.mxu0 0.0
        %2508 = vmatprep.subr.mxu0 0.0
        %2509 = vmatpush2.msra.mxu0 0.0
        %2510 = vmatprep.subr.mxu0 0.0
        %2511 = vmatpush2.msra.mxu0 0.0
        %2512 = vmatprep.subr.mxu0 0.0
        %2513 = vmatpush2.msra.mxu0 0.0
        %2514 = vmatprep.subr.mxu0 0.0
        %2515 = vmatpush2.msra.mxu0 0.0
        %2516 = vmatprep.subr.mxu0 0.0
        %2517 = vmatpush2.msra.mxu0 0.0
        %2518 = vmatprep.subr.mxu0 0.0
        %2519 = vmatpush2.msra.mxu0 0.0
        %2520 = vmatprep.subr.mxu0 0.0
        %2521 = vmatpush2.msra.mxu0 0.0
        %2522 = vmatprep.mubr.f32.mxu0 0.0
        %2523 = vmatmul.mubr.f32.gmra.mxu0 %v2456
        %v2524 = vpop.f32.mrf.mxu0
        %v2525 = vadd.f32 0.0, %v2524
        %v2526 = vpop.f32.mrf.mxu0
        %2527 = vdwg.mxu0
        %2528 = vst.msk [vmem:[#allocation3] sm:$0xff] %vm1293, %v2525
        %v2529 = vld [vmem:[#allocation2] sm:$0xff]
        %v2530 = vmul.f32 %v2529, 0.35355338
        %v2531 = vld [vmem:[#allocation2 + $0x8] sm:$0xff]
        %v2532 = vld [vmem:[#allocation2 + $0x10] sm:$0xff]
        %2534 = vrot.lane.b32.xlu0 %v2530, 120
        %v2535 = vpop.permute.xlu0 %2534
        %2537 = vrot.lane.b32.xlu0 %v2531, 120
        %v2538 = vpop.permute.xlu0 %2537
        %v2539 = vsel %vm1293, %v2535, 0
        %v2541 = vsel %vm1293, %v2538, 0
        %2543 = vmatprep.subr.mxu0 0.0
        %2544 = vmatpush1.xpose.msra.mxu0 0.0
        %2545 = vmatprep.subr.mxu0 0.0
        %2546 = vmatpush1.xpose.msra.mxu0 0.0
        %2547 = vmatprep.subr.mxu0 0.0
        %2548 = vmatpush1.xpose.msra.mxu0 0.0
        %2549 = vmatprep.subr.mxu0 0.0
        %2550 = vmatpush1.xpose.msra.mxu0 0.0
        %2551 = vmatprep.subr.mxu0 0.0
        %2552 = vmatpush1.xpose.msra.mxu0 0.0
        %2553 = vmatprep.subr.mxu0 0.0
        %2554 = vmatpush1.xpose.msra.mxu0 0.0
        %2555 = vmatprep.subr.mxu0 0.0
        %2556 = vmatpush1.xpose.msra.mxu0 0.0
        %2557 = vmatprep.subr.mxu0 0.0
        %2558 = vmatpush1.xpose.msra.mxu0 0.0
        %2559 = vmatprep.subr.mxu0 0.0
        %2560 = vmatpush1.xpose.msra.mxu0 0.0
        %2561 = vmatprep.subr.mxu0 0.0
        %2562 = vmatpush1.xpose.msra.mxu0 0.0
        %2563 = vmatprep.subr.mxu0 0.0
        %2564 = vmatpush1.xpose.msra.mxu0 0.0
        %2565 = vmatprep.subr.mxu0 0.0
        %2566 = vmatpush1.xpose.msra.mxu0 0.0
        %2567 = vmatprep.subr.mxu0 0.0
        %2568 = vmatpush1.xpose.msra.mxu0 0.0
        %2569 = vmatprep.subr.mxu0 0.0
        %2570 = vmatpush1.xpose.msra.mxu0 0.0
        %2571 = vmatprep.subr.mxu0 0.0
        %2572 = vmatpush1.xpose.msra.mxu0 0.0
        %2573 = vmatprep.subr.mxu0 0.0
        %2574 = vmatpush1.xpose.msra.mxu0 %v2541
        %2575 = vmatprep.subr.mxu0 0.0
        %2576 = vmatpush2.xpose.msra.mxu0 0.0
        %2577 = vmatprep.subr.mxu0 0.0
        %2578 = vmatpush2.xpose.msra.mxu0 0.0
        %2579 = vmatprep.subr.mxu0 0.0
        %2580 = vmatpush2.xpose.msra.mxu0 0.0
        %2581 = vmatprep.subr.mxu0 0.0
        %2582 = vmatpush2.xpose.msra.mxu0 0.0
        %2583 = vmatprep.subr.mxu0 0.0
        %2584 = vmatpush2.xpose.msra.mxu0 0.0
        %2585 = vmatprep.subr.mxu0 0.0
        %2586 = vmatpush2.xpose.msra.mxu0 0.0
        %2587 = vmatprep.subr.mxu0 0.0
        %2588 = vmatpush2.xpose.msra.mxu0 0.0
        %2589 = vmatprep.subr.mxu0 0.0
        %2590 = vmatpush2.xpose.msra.mxu0 0.0
        %2591 = vmatprep.subr.mxu0 0.0
        %2592 = vmatpush2.xpose.msra.mxu0 0.0
        %2593 = vmatprep.subr.mxu0 0.0
        %2594 = vmatpush2.xpose.msra.mxu0 0.0
        %2595 = vmatprep.subr.mxu0 0.0
        %2596 = vmatpush2.xpose.msra.mxu0 0.0
        %2597 = vmatprep.subr.mxu0 0.0
        %2598 = vmatpush2.xpose.msra.mxu0 0.0
        %2599 = vmatprep.subr.mxu0 0.0
        %2600 = vmatpush2.xpose.msra.mxu0 0.0
        %2601 = vmatprep.subr.mxu0 0.0
        %2602 = vmatpush2.xpose.msra.mxu0 0.0
        %2603 = vmatprep.subr.mxu0 0.0
        %2604 = vmatpush2.xpose.msra.mxu0 0.0
        %2605 = vmatprep.subr.mxu0 0.0
        %2606 = vmatpush2.xpose.msra.mxu0 0.0
        %2607 = vmatprep.mubr.f32.mxu0 0.0
        %2608 = vmatmul.mubr.f32.gmra.mxu0 %v2539
        %v2609 = vpop.f32.mrf.mxu0
        %v2610 = vadd.f32 %v2367, %v2609
        %v2611 = vpop.f32.mrf.mxu0
        %2612 = vdwg.mxu0
        %v2613 = vsel %vm1293, %v2610, -inf
        %2614 = vmax.xlane.f32.xlu0 %v2613
        %v2615 = vpop.xlane.xlu0 %2614
        %v2616 = vsub.f32 %v2610, %v2615
        %v2617 = vmul.f32 %v2616, 1.442695
        %v2618 = vpow.pop %v2617
        %v2619 = vsel %vm1293, %v2618, 0.0
        %2620 = vadd.xlane.f32.xlu0 %v2619
        %v2621 = vpop.xlane.xlu0 %2620
        %v2622 = vrcp.pop %v2621
        %v2623 = vmul.f32 %v2618, %v2622
        %2625 = vrot.lane.b32.xlu0 %v2532, 120
        %v2626 = vpop.permute.xlu0 %2625
        %v2629 = vsel %vm1293, %v2623, 0
        %2631 = vmatprep.subr.mxu0 0.0
        %2632 = vmatpush1.msra.mxu0 0.0
        %2633 = vmatprep.subr.mxu0 0.0
        %2634 = vmatpush1.msra.mxu0 0.0
        %2635 = vmatprep.subr.mxu0 0.0
        %2636 = vmatpush1.msra.mxu0 0.0
        %2637 = vmatprep.subr.mxu0 0.0
        %2638 = vmatpush1.msra.mxu0 0.0
        %2639 = vmatprep.subr.mxu0 0.0
        %2640 = vmatpush1.msra.mxu0 0.0
        %2641 = vmatprep.subr.mxu0 0.0
        %2642 = vmatpush1.msra.mxu0 0.0
        %2643 = vmatprep.subr.mxu0 0.0
        %2644 = vmatpush1.msra.mxu0 0.0
        %2645 = vmatprep.subr.mxu0 0.0
        %2646 = vmatpush1.msra.mxu0 0.0
        %2647 = vmatprep.subr.mxu0 0.0
        %2648 = vmatpush1.msra.mxu0 0.0
        %2649 = vmatprep.subr.mxu0 0.0
        %2650 = vmatpush1.msra.mxu0 0.0
        %2651 = vmatprep.subr.mxu0 0.0
        %2652 = vmatpush1.msra.mxu0 0.0
        %2653 = vmatprep.subr.mxu0 0.0
        %2654 = vmatpush1.msra.mxu0 0.0
        %2655 = vmatprep.subr.mxu0 0.0
        %2656 = vmatpush1.msra.mxu0 0.0
        %2657 = vmatprep.subr.mxu0 0.0
        %2658 = vmatpush1.msra.mxu0 0.0
        %2659 = vmatprep.subr.mxu0 0.0
        %2660 = vmatpush1.msra.mxu0 0.0
        %2661 = vmatprep.subr.mxu0 0.0
        %2662 = vmatpush1.msra.mxu0 %v2626
        %2663 = vmatprep.subr.mxu0 0.0
        %2664 = vmatpush2.msra.mxu0 0.0
        %2665 = vmatprep.subr.mxu0 0.0
        %2666 = vmatpush2.msra.mxu0 0.0
        %2667 = vmatprep.subr.mxu0 0.0
        %2668 = vmatpush2.msra.mxu0 0.0
        %2669 = vmatprep.subr.mxu0 0.0
        %2670 = vmatpush2.msra.mxu0 0.0
        %2671 = vmatprep.subr.mxu0 0.0
        %2672 = vmatpush2.msra.mxu0 0.0
        %2673 = vmatprep.subr.mxu0 0.0
        %2674 = vmatpush2.msra.mxu0 0.0
        %2675 = vmatprep.subr.mxu0 0.0
        %2676 = vmatpush2.msra.mxu0 0.0
        %2677 = vmatprep.subr.mxu0 0.0
        %2678 = vmatpush2.msra.mxu0 0.0
        %2679 = vmatprep.subr.mxu0 0.0
        %2680 = vmatpush2.msra.mxu0 0.0
        %2681 = vmatprep.subr.mxu0 0.0
        %2682 = vmatpush2.msra.mxu0 0.0
        %2683 = vmatprep.subr.mxu0 0.0
        %2684 = vmatpush2.msra.mxu0 0.0
        %2685 = vmatprep.subr.mxu0 0.0
        %2686 = vmatpush2.msra.mxu0 0.0
        %2687 = vmatprep.subr.mxu0 0.0
        %2688 = vmatpush2.msra.mxu0 0.0
        %2689 = vmatprep.subr.mxu0 0.0
        %2690 = vmatpush2.msra.mxu0 0.0
        %2691 = vmatprep.subr.mxu0 0.0
        %2692 = vmatpush2.msra.mxu0 0.0
        %2693 = vmatprep.subr.mxu0 0.0
        %2694 = vmatpush2.msra.mxu0 0.0
        %2695 = vmatprep.mubr.f32.mxu0 0.0
        %2696 = vmatmul.mubr.f32.gmra.mxu0 %v2629
        %v2697 = vpop.f32.mrf.mxu0
        %v2698 = vadd.f32 0.0, %v2697
        %v2699 = vpop.f32.mrf.mxu0
        %2700 = vdwg.mxu0
        %2702 = vrot.lane.b32.xlu0 %v2698, 8
        %v2703 = vpop.permute.xlu0 %2702
        %2705 = vst.msk [vmem:[#allocation3] sm:$0xff] %vm1646, %v2703
        %v2706 = vld [vmem:[#allocation2] sm:$0xff]
        %v2707 = vmul.f32 %v2706, 0.35355338
        %v2708 = vld [vmem:[#allocation2 + $0x8] sm:$0xff]
        %v2709 = vld [vmem:[#allocation2 + $0x10] sm:$0xff]
        %2711 = vrot.lane.b32.xlu0 %v2707, 112
        %v2712 = vpop.permute.xlu0 %2711
        %2714 = vrot.lane.b32.xlu0 %v2708, 112
        %v2715 = vpop.permute.xlu0 %2714
        %v2716 = vsel %vm1293, %v2712, 0
        %v2718 = vsel %vm1293, %v2715, 0
        %2720 = vmatprep.subr.mxu0 0.0
        %2721 = vmatpush1.xpose.msra.mxu0 0.0
        %2722 = vmatprep.subr.mxu0 0.0
        %2723 = vmatpush1.xpose.msra.mxu0 0.0
        %2724 = vmatprep.subr.mxu0 0.0
        %2725 = vmatpush1.xpose.msra.mxu0 0.0
        %2726 = vmatprep.subr.mxu0 0.0
        %2727 = vmatpush1.xpose.msra.mxu0 0.0
        %2728 = vmatprep.subr.mxu0 0.0
        %2729 = vmatpush1.xpose.msra.mxu0 0.0
        %2730 = vmatprep.subr.mxu0 0.0
        %2731 = vmatpush1.xpose.msra.mxu0 0.0
        %2732 = vmatprep.subr.mxu0 0.0
        %2733 = vmatpush1.xpose.msra.mxu0 0.0
        %2734 = vmatprep.subr.mxu0 0.0
        %2735 = vmatpush1.xpose.msra.mxu0 0.0
        %2736 = vmatprep.subr.mxu0 0.0
        %2737 = vmatpush1.xpose.msra.mxu0 0.0
        %2738 = vmatprep.subr.mxu0 0.0
        %2739 = vmatpush1.xpose.msra.mxu0 0.0
        %2740 = vmatprep.subr.mxu0 0.0
        %2741 = vmatpush1.xpose.msra.mxu0 0.0
        %2742 = vmatprep.subr.mxu0 0.0
        %2743 = vmatpush1.xpose.msra.mxu0 0.0
        %2744 = vmatprep.subr.mxu0 0.0
        %2745 = vmatpush1.xpose.msra.mxu0 0.0
        %2746 = vmatprep.subr.mxu0 0.0
        %2747 = vmatpush1.xpose.msra.mxu0 0.0
        %2748 = vmatprep.subr.mxu0 0.0
        %2749 = vmatpush1.xpose.msra.mxu0 0.0
        %2750 = vmatprep.subr.mxu0 0.0
        %2751 = vmatpush1.xpose.msra.mxu0 %v2718
        %2752 = vmatprep.subr.mxu0 0.0
        %2753 = vmatpush2.xpose.msra.mxu0 0.0
        %2754 = vmatprep.subr.mxu0 0.0
        %2755 = vmatpush2.xpose.msra.mxu0 0.0
        %2756 = vmatprep.subr.mxu0 0.0
        %2757 = vmatpush2.xpose.msra.mxu0 0.0
        %2758 = vmatprep.subr.mxu0 0.0
        %2759 = vmatpush2.xpose.msra.mxu0 0.0
        %2760 = vmatprep.subr.mxu0 0.0
        %2761 = vmatpush2.xpose.msra.mxu0 0.0
        %2762 = vmatprep.subr.mxu0 0.0
        %2763 = vmatpush2.xpose.msra.mxu0 0.0
        %2764 = vmatprep.subr.mxu0 0.0
        %2765 = vmatpush2.xpose.msra.mxu0 0.0
        %2766 = vmatprep.subr.mxu0 0.0
        %2767 = vmatpush2.xpose.msra.mxu0 0.0
        %2768 = vmatprep.subr.mxu0 0.0
        %2769 = vmatpush2.xpose.msra.mxu0 0.0
        %2770 = vmatprep.subr.mxu0 0.0
        %2771 = vmatpush2.xpose.msra.mxu0 0.0
        %2772 = vmatprep.subr.mxu0 0.0
        %2773 = vmatpush2.xpose.msra.mxu0 0.0
        %2774 = vmatprep.subr.mxu0 0.0
        %2775 = vmatpush2.xpose.msra.mxu0 0.0
        %2776 = vmatprep.subr.mxu0 0.0
        %2777 = vmatpush2.xpose.msra.mxu0 0.0
        %2778 = vmatprep.subr.mxu0 0.0
        %2779 = vmatpush2.xpose.msra.mxu0 0.0
        %2780 = vmatprep.subr.mxu0 0.0
        %2781 = vmatpush2.xpose.msra.mxu0 0.0
        %2782 = vmatprep.subr.mxu0 0.0
        %2783 = vmatpush2.xpose.msra.mxu0 0.0
        %2784 = vmatprep.mubr.f32.mxu0 0.0
        %2785 = vmatmul.mubr.f32.gmra.mxu0 %v2716
        %v2786 = vpop.f32.mrf.mxu0
        %v2787 = vadd.f32 %v2367, %v2786
        %v2788 = vpop.f32.mrf.mxu0
        %2789 = vdwg.mxu0
        %v2790 = vsel %vm1293, %v2787, -inf
        %2791 = vmax.xlane.f32.xlu0 %v2790
        %v2792 = vpop.xlane.xlu0 %2791
        %v2793 = vsub.f32 %v2787, %v2792
        %v2794 = vmul.f32 %v2793, 1.442695
        %v2795 = vpow.pop %v2794
        %v2796 = vsel %vm1293, %v2795, 0.0
        %2797 = vadd.xlane.f32.xlu0 %v2796
        %v2798 = vpop.xlane.xlu0 %2797
        %v2799 = vrcp.pop %v2798
        %v2800 = vmul.f32 %v2795, %v2799
        %2802 = vrot.lane.b32.xlu0 %v2709, 112
        %v2803 = vpop.permute.xlu0 %2802
        %v2806 = vsel %vm1293, %v2800, 0
        %2808 = vmatprep.subr.mxu0 0.0
        %2809 = vmatpush1.msra.mxu0 0.0
        %2810 = vmatprep.subr.mxu0 0.0
        %2811 = vmatpush1.msra.mxu0 0.0
        %2812 = vmatprep.subr.mxu0 0.0
        %2813 = vmatpush1.msra.mxu0 0.0
        %2814 = vmatprep.subr.mxu0 0.0
        %2815 = vmatpush1.msra.mxu0 0.0
        %2816 = vmatprep.subr.mxu0 0.0
        %2817 = vmatpush1.msra.mxu0 0.0
        %2818 = vmatprep.subr.mxu0 0.0
        %2819 = vmatpush1.msra.mxu0 0.0
        %2820 = vmatprep.subr.mxu0 0.0
        %2821 = vmatpush1.msra.mxu0 0.0
        %2822 = vmatprep.subr.mxu0 0.0
        %2823 = vmatpush1.msra.mxu0 0.0
        %2824 = vmatprep.subr.mxu0 0.0
        %2825 = vmatpush1.msra.mxu0 0.0
        %2826 = vmatprep.subr.mxu0 0.0
        %2827 = vmatpush1.msra.mxu0 0.0
        %2828 = vmatprep.subr.mxu0 0.0
        %2829 = vmatpush1.msra.mxu0 0.0
        %2830 = vmatprep.subr.mxu0 0.0
        %2831 = vmatpush1.msra.mxu0 0.0
        %2832 = vmatprep.subr.mxu0 0.0
        %2833 = vmatpush1.msra.mxu0 0.0
        %2834 = vmatprep.subr.mxu0 0.0
        %2835 = vmatpush1.msra.mxu0 0.0
        %2836 = vmatprep.subr.mxu0 0.0
        %2837 = vmatpush1.msra.mxu0 0.0
        %2838 = vmatprep.subr.mxu0 0.0
        %2839 = vmatpush1.msra.mxu0 %v2803
        %2840 = vmatprep.subr.mxu0 0.0
        %2841 = vmatpush2.msra.mxu0 0.0
        %2842 = vmatprep.subr.mxu0 0.0
        %2843 = vmatpush2.msra.mxu0 0.0
        %2844 = vmatprep.subr.mxu0 0.0
        %2845 = vmatpush2.msra.mxu0 0.0
        %2846 = vmatprep.subr.mxu0 0.0
        %2847 = vmatpush2.msra.mxu0 0.0
        %2848 = vmatprep.subr.mxu0 0.0
        %2849 = vmatpush2.msra.mxu0 0.0
        %2850 = vmatprep.subr.mxu0 0.0
        %2851 = vmatpush2.msra.mxu0 0.0
        %2852 = vmatprep.subr.mxu0 0.0
        %2853 = vmatpush2.msra.mxu0 0.0
        %2854 = vmatprep.subr.mxu0 0.0
        %2855 = vmatpush2.msra.mxu0 0.0
        %2856 = vmatprep.subr.mxu0 0.0
        %2857 = vmatpush2.msra.mxu0 0.0
        %2858 = vmatprep.subr.mxu0 0.0
        %2859 = vmatpush2.msra.mxu0 0.0
        %2860 = vmatprep.subr.mxu0 0.0
        %2861 = vmatpush2.msra.mxu0 0.0
        %2862 = vmatprep.subr.mxu0 0.0
        %2863 = vmatpush2.msra.mxu0 0.0
        %2864 = vmatprep.subr.mxu0 0.0
        %2865 = vmatpush2.msra.mxu0 0.0
        %2866 = vmatprep.subr.mxu0 0.0
        %2867 = vmatpush2.msra.mxu0 0.0
        %2868 = vmatprep.subr.mxu0 0.0
        %2869 = vmatpush2.msra.mxu0 0.0
        %2870 = vmatprep.subr.mxu0 0.0
        %2871 = vmatpush2.msra.mxu0 0.0
        %2872 = vmatprep.mubr.f32.mxu0 0.0
        %2873 = vmatmul.mubr.f32.gmra.mxu0 %v2806
        %v2874 = vpop.f32.mrf.mxu0
        %v2875 = vadd.f32 0.0, %v2874
        %v2876 = vpop.f32.mrf.mxu0
        %2877 = vdwg.mxu0
        %2879 = vrot.lane.b32.xlu0 %v2875, 16
        %v2880 = vpop.permute.xlu0 %2879
        %2882 = vst.msk [vmem:[#allocation3] sm:$0xff] %vm1835, %v2880
        %v2883 = vld [vmem:[#allocation2] sm:$0xff]
        %v2884 = vmul.f32 %v2883, 0.35355338
        %v2885 = vld [vmem:[#allocation2 + $0x8] sm:$0xff]
        %v2886 = vld [vmem:[#allocation2 + $0x10] sm:$0xff]
        %2888 = vrot.lane.b32.xlu0 %v2884, 104
        %v2889 = vpop.permute.xlu0 %2888
        %2891 = vrot.lane.b32.xlu0 %v2885, 104
        %v2892 = vpop.permute.xlu0 %2891
        %v2893 = vsel %vm1293, %v2889, 0
        %v2895 = vsel %vm1293, %v2892, 0
        %2897 = vmatprep.subr.mxu0 0.0
        %2898 = vmatpush1.xpose.msra.mxu0 0.0
        %2899 = vmatprep.subr.mxu0 0.0
        %2900 = vmatpush1.xpose.msra.mxu0 0.0
        %2901 = vmatprep.subr.mxu0 0.0
        %2902 = vmatpush1.xpose.msra.mxu0 0.0
        %2903 = vmatprep.subr.mxu0 0.0
        %2904 = vmatpush1.xpose.msra.mxu0 0.0
        %2905 = vmatprep.subr.mxu0 0.0
        %2906 = vmatpush1.xpose.msra.mxu0 0.0
        %2907 = vmatprep.subr.mxu0 0.0
        %2908 = vmatpush1.xpose.msra.mxu0 0.0
        %2909 = vmatprep.subr.mxu0 0.0
        %2910 = vmatpush1.xpose.msra.mxu0 0.0
        %2911 = vmatprep.subr.mxu0 0.0
        %2912 = vmatpush1.xpose.msra.mxu0 0.0
        %2913 = vmatprep.subr.mxu0 0.0
        %2914 = vmatpush1.xpose.msra.mxu0 0.0
        %2915 = vmatprep.subr.mxu0 0.0
        %2916 = vmatpush1.xpose.msra.mxu0 0.0
        %2917 = vmatprep.subr.mxu0 0.0
        %2918 = vmatpush1.xpose.msra.mxu0 0.0
        %2919 = vmatprep.subr.mxu0 0.0
        %2920 = vmatpush1.xpose.msra.mxu0 0.0
        %2921 = vmatprep.subr.mxu0 0.0
        %2922 = vmatpush1.xpose.msra.mxu0 0.0
        %2923 = vmatprep.subr.mxu0 0.0
        %2924 = vmatpush1.xpose.msra.mxu0 0.0
        %2925 = vmatprep.subr.mxu0 0.0
        %2926 = vmatpush1.xpose.msra.mxu0 0.0
        %2927 = vmatprep.subr.mxu0 0.0
        %2928 = vmatpush1.xpose.msra.mxu0 %v2895
        %2929 = vmatprep.subr.mxu0 0.0
        %2930 = vmatpush2.xpose.msra.mxu0 0.0
        %2931 = vmatprep.subr.mxu0 0.0
        %2932 = vmatpush2.xpose.msra.mxu0 0.0
        %2933 = vmatprep.subr.mxu0 0.0
        %2934 = vmatpush2.xpose.msra.mxu0 0.0
        %2935 = vmatprep.subr.mxu0 0.0
        %2936 = vmatpush2.xpose.msra.mxu0 0.0
        %2937 = vmatprep.subr.mxu0 0.0
        %2938 = vmatpush2.xpose.msra.mxu0 0.0
        %2939 = vmatprep.subr.mxu0 0.0
        %2940 = vmatpush2.xpose.msra.mxu0 0.0
        %2941 = vmatprep.subr.mxu0 0.0
        %2942 = vmatpush2.xpose.msra.mxu0 0.0
        %2943 = vmatprep.subr.mxu0 0.0
        %2944 = vmatpush2.xpose.msra.mxu0 0.0
        %2945 = vmatprep.subr.mxu0 0.0
        %2946 = vmatpush2.xpose.msra.mxu0 0.0
        %2947 = vmatprep.subr.mxu0 0.0
        %2948 = vmatpush2.xpose.msra.mxu0 0.0
        %2949 = vmatprep.subr.mxu0 0.0
        %2950 = vmatpush2.xpose.msra.mxu0 0.0
        %2951 = vmatprep.subr.mxu0 0.0
        %2952 = vmatpush2.xpose.msra.mxu0 0.0
        %2953 = vmatprep.subr.mxu0 0.0
        %2954 = vmatpush2.xpose.msra.mxu0 0.0
        %2955 = vmatprep.subr.mxu0 0.0
        %2956 = vmatpush2.xpose.msra.mxu0 0.0
        %2957 = vmatprep.subr.mxu0 0.0
        %2958 = vmatpush2.xpose.msra.mxu0 0.0
        %2959 = vmatprep.subr.mxu0 0.0
        %2960 = vmatpush2.xpose.msra.mxu0 0.0
        %2961 = vmatprep.mubr.f32.mxu0 0.0
        %2962 = vmatmul.mubr.f32.gmra.mxu0 %v2893
        %v2963 = vpop.f32.mrf.mxu0
        %v2964 = vadd.f32 %v2367, %v2963
        %v2965 = vpop.f32.mrf.mxu0
        %2966 = vdwg.mxu0
        %v2967 = vsel %vm1293, %v2964, -inf
        %2968 = vmax.xlane.f32.xlu0 %v2967
        %v2969 = vpop.xlane.xlu0 %2968
        %v2970 = vsub.f32 %v2964, %v2969
        %v2971 = vmul.f32 %v2970, 1.442695
        %v2972 = vpow.pop %v2971
        %v2973 = vsel %vm1293, %v2972, 0.0
        %2974 = vadd.xlane.f32.xlu0 %v2973
        %v2975 = vpop.xlane.xlu0 %2974
        %v2976 = vrcp.pop %v2975
        %v2977 = vmul.f32 %v2972, %v2976
        %2979 = vrot.lane.b32.xlu0 %v2886, 104
        %v2980 = vpop.permute.xlu0 %2979
        %v2983 = vsel %vm1293, %v2977, 0
        %2985 = vmatprep.subr.mxu0 0.0
        %2986 = vmatpush1.msra.mxu0 0.0
        %2987 = vmatprep.subr.mxu0 0.0
        %2988 = vmatpush1.msra.mxu0 0.0
        %2989 = vmatprep.subr.mxu0 0.0
        %2990 = vmatpush1.msra.mxu0 0.0
        %2991 = vmatprep.subr.mxu0 0.0
        %2992 = vmatpush1.msra.mxu0 0.0
        %2993 = vmatprep.subr.mxu0 0.0
        %2994 = vmatpush1.msra.mxu0 0.0
        %2995 = vmatprep.subr.mxu0 0.0
        %2996 = vmatpush1.msra.mxu0 0.0
        %2997 = vmatprep.subr.mxu0 0.0
        %2998 = vmatpush1.msra.mxu0 0.0
        %2999 = vmatprep.subr.mxu0 0.0
        %3000 = vmatpush1.msra.mxu0 0.0
        %3001 = vmatprep.subr.mxu0 0.0
        %3002 = vmatpush1.msra.mxu0 0.0
        %3003 = vmatprep.subr.mxu0 0.0
        %3004 = vmatpush1.msra.mxu0 0.0
        %3005 = vmatprep.subr.mxu0 0.0
        %3006 = vmatpush1.msra.mxu0 0.0
        %3007 = vmatprep.subr.mxu0 0.0
        %3008 = vmatpush1.msra.mxu0 0.0
        %3009 = vmatprep.subr.mxu0 0.0
        %3010 = vmatpush1.msra.mxu0 0.0
        %3011 = vmatprep.subr.mxu0 0.0
        %3012 = vmatpush1.msra.mxu0 0.0
        %3013 = vmatprep.subr.mxu0 0.0
        %3014 = vmatpush1.msra.mxu0 0.0
        %3015 = vmatprep.subr.mxu0 0.0
        %3016 = vmatpush1.msra.mxu0 %v2980
        %3017 = vmatprep.subr.mxu0 0.0
        %3018 = vmatpush2.msra.mxu0 0.0
        %3019 = vmatprep.subr.mxu0 0.0
        %3020 = vmatpush2.msra.mxu0 0.0
        %3021 = vmatprep.subr.mxu0 0.0
        %3022 = vmatpush2.msra.mxu0 0.0
        %3023 = vmatprep.subr.mxu0 0.0
        %3024 = vmatpush2.msra.mxu0 0.0
        %3025 = vmatprep.subr.mxu0 0.0
        %3026 = vmatpush2.msra.mxu0 0.0
        %3027 = vmatprep.subr.mxu0 0.0
        %3028 = vmatpush2.msra.mxu0 0.0
        %3029 = vmatprep.subr.mxu0 0.0
        %3030 = vmatpush2.msra.mxu0 0.0
        %3031 = vmatprep.subr.mxu0 0.0
        %3032 = vmatpush2.msra.mxu0 0.0
        %3033 = vmatprep.subr.mxu0 0.0
        %3034 = vmatpush2.msra.mxu0 0.0
        %3035 = vmatprep.subr.mxu0 0.0
        %3036 = vmatpush2.msra.mxu0 0.0
        %3037 = vmatprep.subr.mxu0 0.0
        %3038 = vmatpush2.msra.mxu0 0.0
        %3039 = vmatprep.subr.mxu0 0.0
        %3040 = vmatpush2.msra.mxu0 0.0
        %3041 = vmatprep.subr.mxu0 0.0
        %3042 = vmatpush2.msra.mxu0 0.0
        %3043 = vmatprep.subr.mxu0 0.0
        %3044 = vmatpush2.msra.mxu0 0.0
        %3045 = vmatprep.subr.mxu0 0.0
        %3046 = vmatpush2.msra.mxu0 0.0
        %3047 = vmatprep.subr.mxu0 0.0
        %3048 = vmatpush2.msra.mxu0 0.0
        %3049 = vmatprep.mubr.f32.mxu0 0.0
        %3050 = vmatmul.mubr.f32.gmra.mxu0 %v2983
        %v3051 = vpop.f32.mrf.mxu0
        %v3052 = vadd.f32 0.0, %v3051
        %v3053 = vpop.f32.mrf.mxu0
        %3054 = vdwg.mxu0
        %3056 = vrot.lane.b32.xlu0 %v3052, 24
        %v3057 = vpop.permute.xlu0 %3056
        %3059 = vst.msk [vmem:[#allocation3] sm:$0xff] %vm2024, %v3057
        %v3060 = vld [vmem:[#allocation3] sm:$0xff]
        %v3061 = vld [vmem:[#allocation18] sm:$0xff]
        %v3062 = vld [vmem:[#allocation18 + $0x8] sm:$0xff]
        %v3063 = vld [vmem:[#allocation18 + $0x10] sm:$0xff]
        %v3064 = vld [vmem:[#allocation18 + $0x18] sm:$0xff]
        %v3065 = vld [vmem:[#allocation18 + $0x20] sm:$0xff]
        %v3066 = vld [vmem:[#allocation18 + $0x28] sm:$0xff]
        %v3067 = vld [vmem:[#allocation18 + $0x30] sm:$0xff]
        %v3068 = vld [vmem:[#allocation18 + $0x38] sm:$0xff]
        %v3069 = vld [vmem:[#allocation18 + $0x40] sm:$0xff]
        %v3070 = vld [vmem:[#allocation18 + $0x48] sm:$0xff]
        %v3071 = vld [vmem:[#allocation18 + $0x50] sm:$0xff]
        %v3072 = vld [vmem:[#allocation18 + $0x58] sm:$0xff]
        %v3073 = vld [vmem:[#allocation18 + $0x60] sm:$0xff]
        %v3074 = vld [vmem:[#allocation18 + $0x68] sm:$0xff]
        %v3075 = vld [vmem:[#allocation18 + $0x70] sm:$0xff]
        %v3076 = vld [vmem:[#allocation18 + $0x78] sm:$0xff]
        %v3077 = vld [vmem:[%s15] sm:$0x1]
        %v3079 = vlaneseq
        %v3080 = vshrl.u32 %v3079, 7
        %v3081 = vsub.s32 0, %v3080
        %v3082 = vrot.slane %v3077, %v3081
        %3084 = vmatprep.subr.mxu0 0.0
        %3085 = vmatpush1.msra.mxu0 %v3076
        %3086 = vmatprep.subr.mxu0 0.0
        %3087 = vmatpush1.msra.mxu0 %v3075
        %3088 = vmatprep.subr.mxu0 0.0
        %3089 = vmatpush1.msra.mxu0 %v3074
        %3090 = vmatprep.subr.mxu0 0.0
        %3091 = vmatpush1.msra.mxu0 %v3073
        %3092 = vmatprep.subr.mxu0 0.0
        %3093 = vmatpush1.msra.mxu0 %v3072
        %3094 = vmatprep.subr.mxu0 0.0
        %3095 = vmatpush1.msra.mxu0 %v3071
        %3096 = vmatprep.subr.mxu0 0.0
        %3097 = vmatpush1.msra.mxu0 %v3070
        %3098 = vmatprep.subr.mxu0 0.0
        %3099 = vmatpush1.msra.mxu0 %v3069
        %3100 = vmatprep.subr.mxu0 0.0
        %3101 = vmatpush1.msra.mxu0 %v3068
        %3102 = vmatprep.subr.mxu0 0.0
        %3103 = vmatpush1.msra.mxu0 %v3067
        %3104 = vmatprep.subr.mxu0 0.0
        %3105 = vmatpush1.msra.mxu0 %v3066
        %3106 = vmatprep.subr.mxu0 0.0
        %3107 = vmatpush1.msra.mxu0 %v3065
        %3108 = vmatprep.subr.mxu0 0.0
        %3109 = vmatpush1.msra.mxu0 %v3064
        %3110 = vmatprep.subr.mxu0 0.0
        %3111 = vmatpush1.msra.mxu0 %v3063
        %3112 = vmatprep.subr.mxu0 0.0
        %3113 = vmatpush1.msra.mxu0 %v3062
        %3114 = vmatprep.subr.mxu0 0.0
        %3115 = vmatpush1.msra.mxu0 %v3061
        %3116 = vmatprep.subr.mxu0 0.0
        %3117 = vmatpush2.msra.mxu0 0.0
        %3118 = vmatprep.subr.mxu0 0.0
        %3119 = vmatpush2.msra.mxu0 0.0
        %3120 = vmatprep.subr.mxu0 0.0
        %3121 = vmatpush2.msra.mxu0 0.0
        %3122 = vmatprep.subr.mxu0 0.0
        %3123 = vmatpush2.msra.mxu0 0.0
        %3124 = vmatprep.subr.mxu0 0.0
        %3125 = vmatpush2.msra.mxu0 0.0
        %3126 = vmatprep.subr.mxu0 0.0
        %3127 = vmatpush2.msra.mxu0 0.0
        %3128 = vmatprep.subr.mxu0 0.0
        %3129 = vmatpush2.msra.mxu0 0.0
        %3130 = vmatprep.subr.mxu0 0.0
        %3131 = vmatpush2.msra.mxu0 0.0
        %3132 = vmatprep.subr.mxu0 0.0
        %3133 = vmatpush2.msra.mxu0 0.0
        %3134 = vmatprep.subr.mxu0 0.0
        %3135 = vmatpush2.msra.mxu0 0.0
        %3136 = vmatprep.subr.mxu0 0.0
        %3137 = vmatpush2.msra.mxu0 0.0
        %3138 = vmatprep.subr.mxu0 0.0
        %3139 = vmatpush2.msra.mxu0 0.0
        %3140 = vmatprep.subr.mxu0 0.0
        %3141 = vmatpush2.msra.mxu0 0.0
        %3142 = vmatprep.subr.mxu0 0.0
        %3143 = vmatpush2.msra.mxu0 0.0
        %3144 = vmatprep.subr.mxu0 0.0
        %3145 = vmatpush2.msra.mxu0 0.0
        %3146 = vmatprep.subr.mxu0 0.0
        %3147 = vmatpush2.msra.mxu0 0.0
        %3148 = vmatprep.mubr.f32.mxu0 0.0
        %3149 = vmatmul.mubr.f32.gmra.mxu0 %v3060
        %v3150 = vpop.f32.mrf.mxu0
        %v3151 = vadd.f32 %v3082, %v3150
        %v3152 = vpop.f32.mrf.mxu0
        %3153 = vdwg.mxu0
        %v3154 = vadd.f32 %v2149, %v3151
        %v3155 = vmul.f32 %v3154, %v970
        %3156 = vadd.xlane.f32.xlu0 %v3155
        %v3157 = vpop.xlane.xlu0 %3156
        %v3158 = vmul.f32 %v3157, 0.03125
        %v3159 = vsub.f32 %v3154, %v3158
        %v3160 = vmul.f32 %v3159, %v970
        %v3161 = vmul.f32 %v3160, %v3160
        %3162 = vadd.xlane.f32.xlu0 %v3161
        %v3163 = vpop.xlane.xlu0 %3162
        %v3164 = vmul.f32 %v3163, 0.03125
        %v3165 = vadd.f32 %v3164, 1e-05
        %v3166 = vrsqrt.pop %v3165
        %v3167 = vmul.f32 %v3160, %v3166
        %v3168 = vld [vmem:[%s16] sm:$0x1]
        %v3170 = vlaneseq
        %v3171 = vshrl.u32 %v3170, 7
        %v3172 = vsub.s32 0, %v3171
        %v3173 = vrot.slane %v3168, %v3172
        %v3175 = vmul.f32 %v3167, %v3173
        %v3176 = vld [vmem:[%s17] sm:$0x1]
        %v3178 = vlaneseq
        %v3179 = vshrl.u32 %v3178, 7
        %v3180 = vsub.s32 0, %v3179
        %v3181 = vrot.slane %v3176, %v3180
        %v3183 = vadd.f32 %v3175, %v3181
        %v3184 = vld [vmem:[#allocation19] sm:$0xff]
        %v3185 = vld [vmem:[#allocation19 + $0x8] sm:$0xff]
        %v3186 = vld [vmem:[#allocation19 + $0x10] sm:$0xff]
        %v3187 = vld [vmem:[#allocation19 + $0x18] sm:$0xff]
        %v3188 = vld [vmem:[#allocation19 + $0x20] sm:$0xff]
        %v3189 = vld [vmem:[#allocation19 + $0x28] sm:$0xff]
        %v3190 = vld [vmem:[#allocation19 + $0x30] sm:$0xff]
        %v3191 = vld [vmem:[#allocation19 + $0x38] sm:$0xff]
        %v3192 = vld [vmem:[#allocation19 + $0x40] sm:$0xff]
        %v3193 = vld [vmem:[#allocation19 + $0x48] sm:$0xff]
        %v3194 = vld [vmem:[#allocation19 + $0x50] sm:$0xff]
        %v3195 = vld [vmem:[#allocation19 + $0x58] sm:$0xff]
        %v3196 = vld [vmem:[#allocation19 + $0x60] sm:$0xff]
        %v3197 = vld [vmem:[#allocation19 + $0x68] sm:$0xff]
        %v3198 = vld [vmem:[#allocation19 + $0x70] sm:$0xff]
        %v3199 = vld [vmem:[#allocation19 + $0x78] sm:$0xff]
        %v3200 = vld [vmem:[%s19] sm:$0x1]
        %v3202 = vlaneseq
        %v3203 = vshrl.u32 %v3202, 7
        %v3204 = vsub.s32 0, %v3203
        %v3205 = vrot.slane %v3200, %v3204
        %3207 = vmatprep.subr.mxu0 0.0
        %3208 = vmatpush1.msra.mxu0 %v3199
        %3209 = vmatprep.subr.mxu0 0.0
        %3210 = vmatpush1.msra.mxu0 %v3198
        %3211 = vmatprep.subr.mxu0 0.0
        %3212 = vmatpush1.msra.mxu0 %v3197
        %3213 = vmatprep.subr.mxu0 0.0
        %3214 = vmatpush1.msra.mxu0 %v3196
        %3215 = vmatprep.subr.mxu0 0.0
        %3216 = vmatpush1.msra.mxu0 %v3195
        %3217 = vmatprep.subr.mxu0 0.0
        %3218 = vmatpush1.msra.mxu0 %v3194
        %3219 = vmatprep.subr.mxu0 0.0
        %3220 = vmatpush1.msra.mxu0 %v3193
        %3221 = vmatprep.subr.mxu0 0.0
        %3222 = vmatpush1.msra.mxu0 %v3192
        %3223 = vmatprep.subr.mxu0 0.0
        %3224 = vmatpush1.msra.mxu0 %v3191
        %3225 = vmatprep.subr.mxu0 0.0
        %3226 = vmatpush1.msra.mxu0 %v3190
        %3227 = vmatprep.subr.mxu0 0.0
        %3228 = vmatpush1.msra.mxu0 %v3189
        %3229 = vmatprep.subr.mxu0 0.0
        %3230 = vmatpush1.msra.mxu0 %v3188
        %3231 = vmatprep.subr.mxu0 0.0
        %3232 = vmatpush1.msra.mxu0 %v3187
        %3233 = vmatprep.subr.mxu0 0.0
        %3234 = vmatpush1.msra.mxu0 %v3186
        %3235 = vmatprep.subr.mxu0 0.0
        %3236 = vmatpush1.msra.mxu0 %v3185
        %3237 = vmatprep.subr.mxu0 0.0
        %3238 = vmatpush1.msra.mxu0 %v3184
        %3239 = vmatprep.subr.mxu0 0.0
        %3240 = vmatpush2.msra.mxu0 0.0
        %3241 = vmatprep.subr.mxu0 0.0
        %3242 = vmatpush2.msra.mxu0 0.0
        %3243 = vmatprep.subr.mxu0 0.0
        %3244 = vmatpush2.msra.mxu0 0.0
        %3245 = vmatprep.subr.mxu0 0.0
        %3246 = vmatpush2.msra.mxu0 0.0
        %3247 = vmatprep.subr.mxu0 0.0
        %3248 = vmatpush2.msra.mxu0 0.0
        %3249 = vmatprep.subr.mxu0 0.0
        %3250 = vmatpush2.msra.mxu0 0.0
        %3251 = vmatprep.subr.mxu0 0.0
        %3252 = vmatpush2.msra.mxu0 0.0
        %3253 = vmatprep.subr.mxu0 0.0
        %3254 = vmatpush2.msra.mxu0 0.0
        %3255 = vmatprep.subr.mxu0 0.0
        %3256 = vmatpush2.msra.mxu0 0.0
        %3257 = vmatprep.subr.mxu0 0.0
        %3258 = vmatpush2.msra.mxu0 0.0
        %3259 = vmatprep.subr.mxu0 0.0
        %3260 = vmatpush2.msra.mxu0 0.0
        %3261 = vmatprep.subr.mxu0 0.0
        %3262 = vmatpush2.msra.mxu0 0.0
        %3263 = vmatprep.subr.mxu0 0.0
        %3264 = vmatpush2.msra.mxu0 0.0
        %3265 = vmatprep.subr.mxu0 0.0
        %3266 = vmatpush2.msra.mxu0 0.0
        %3267 = vmatprep.subr.mxu0 0.0
        %3268 = vmatpush2.msra.mxu0 0.0
        %3269 = vmatprep.subr.mxu0 0.0
        %3270 = vmatpush2.msra.mxu0 0.0
        %3271 = vmatprep.mubr.f32.mxu0 0.0
        %3272 = vmatmul.mubr.f32.gmra.mxu0 %v3183
        %v3273 = vpop.f32.mrf.mxu0
        %v3274 = vadd.f32 %v3205, %v3273
        %v3275 = vpop.f32.mrf.mxu0
        %3276 = vdwg.mxu0
        %v3277 = vmax.f32 %v3274, 0.0
        %v3278 = vld [vmem:[#allocation21] sm:$0xff]
        %v3279 = vld [vmem:[#allocation21 + $0x8] sm:$0xff]
        %v3280 = vld [vmem:[#allocation21 + $0x10] sm:$0xff]
        %v3281 = vld [vmem:[#allocation21 + $0x18] sm:$0xff]
        %v3282 = vld [vmem:[#allocation21 + $0x20] sm:$0xff]
        %v3283 = vld [vmem:[#allocation21 + $0x28] sm:$0xff]
        %v3284 = vld [vmem:[#allocation21 + $0x30] sm:$0xff]
        %v3285 = vld [vmem:[#allocation21 + $0x38] sm:$0xff]
        %v3286 = vld [vmem:[#allocation21 + $0x40] sm:$0xff]
        %v3287 = vld [vmem:[#allocation21 + $0x48] sm:$0xff]
        %v3288 = vld [vmem:[#allocation21 + $0x50] sm:$0xff]
        %v3289 = vld [vmem:[#allocation21 + $0x58] sm:$0xff]
        %v3290 = vld [vmem:[#allocation21 + $0x60] sm:$0xff]
        %v3291 = vld [vmem:[#allocation21 + $0x68] sm:$0xff]
        %v3292 = vld [vmem:[#allocation21 + $0x70] sm:$0xff]
        %v3293 = vld [vmem:[#allocation21 + $0x78] sm:$0xff]
        %v3294 = vld [vmem:[%s21] sm:$0x1]
        %v3296 = vlaneseq
        %v3297 = vshrl.u32 %v3296, 7
        %v3298 = vsub.s32 0, %v3297
        %v3299 = vrot.slane %v3294, %v3298
        %3301 = vmatprep.subr.mxu0 0.0
        %3302 = vmatpush1.msra.mxu0 %v3293
        %3303 = vmatprep.subr.mxu0 0.0
        %3304 = vmatpush1.msra.mxu0 %v3292
        %3305 = vmatprep.subr.mxu0 0.0
        %3306 = vmatpush1.msra.mxu0 %v3291
        %3307 = vmatprep.subr.mxu0 0.0
        %3308 = vmatpush1.msra.mxu0 %v3290
        %3309 = vmatprep.subr.mxu0 0.0
        %3310 = vmatpush1.msra.mxu0 %v3289
        %3311 = vmatprep.subr.mxu0 0.0
        %3312 = vmatpush1.msra.mxu0 %v3288
        %3313 = vmatprep.subr.mxu0 0.0
        %3314 = vmatpush1.msra.mxu0 %v3287
        %3315 = vmatprep.subr.mxu0 0.0
        %3316 = vmatpush1.msra.mxu0 %v3286
        %3317 = vmatprep.subr.mxu0 0.0
        %3318 = vmatpush1.msra.mxu0 %v3285
        %3319 = vmatprep.subr.mxu0 0.0
        %3320 = vmatpush1.msra.mxu0 %v3284
        %3321 = vmatprep.subr.mxu0 0.0
        %3322 = vmatpush1.msra.mxu0 %v3283
        %3323 = vmatprep.subr.mxu0 0.0
        %3324 = vmatpush1.msra.mxu0 %v3282
        %3325 = vmatprep.subr.mxu0 0.0
        %3326 = vmatpush1.msra.mxu0 %v3281
        %3327 = vmatprep.subr.mxu0 0.0
        %3328 = vmatpush1.msra.mxu0 %v3280
        %3329 = vmatprep.subr.mxu0 0.0
        %3330 = vmatpush1.msra.mxu0 %v3279
        %3331 = vmatprep.subr.mxu0 0.0
        %3332 = vmatpush1.msra.mxu0 %v3278
        %3333 = vmatprep.subr.mxu0 0.0
        %3334 = vmatpush2.msra.mxu0 0.0
        %3335 = vmatprep.subr.mxu0 0.0
        %3336 = vmatpush2.msra.mxu0 0.0
        %3337 = vmatprep.subr.mxu0 0.0
        %3338 = vmatpush2.msra.mxu0 0.0
        %3339 = vmatprep.subr.mxu0 0.0
        %3340 = vmatpush2.msra.mxu0 0.0
        %3341 = vmatprep.subr.mxu0 0.0
        %3342 = vmatpush2.msra.mxu0 0.0
        %3343 = vmatprep.subr.mxu0 0.0
        %3344 = vmatpush2.msra.mxu0 0.0
        %3345 = vmatprep.subr.mxu0 0.0
        %3346 = vmatpush2.msra.mxu0 0.0
        %3347 = vmatprep.subr.mxu0 0.0
        %3348 = vmatpush2.msra.mxu0 0.0
        %3349 = vmatprep.subr.mxu0 0.0
        %3350 = vmatpush2.msra.mxu0 0.0
        %3351 = vmatprep.subr.mxu0 0.0
        %3352 = vmatpush2.msra.mxu0 0.0
        %3353 = vmatprep.subr.mxu0 0.0
        %3354 = vmatpush2.msra.mxu0 0.0
        %3355 = vmatprep.subr.mxu0 0.0
        %3356 = vmatpush2.msra.mxu0 0.0
        %3357 = vmatprep.subr.mxu0 0.0
        %3358 = vmatpush2.msra.mxu0 0.0
        %3359 = vmatprep.subr.mxu0 0.0
        %3360 = vmatpush2.msra.mxu0 0.0
        %3361 = vmatprep.subr.mxu0 0.0
        %3362 = vmatpush2.msra.mxu0 0.0
        %3363 = vmatprep.subr.mxu0 0.0
        %3364 = vmatpush2.msra.mxu0 0.0
        %3365 = vmatprep.mubr.f32.mxu0 0.0
        %3366 = vmatmul.mubr.f32.gmra.mxu0 %v3277
        %v3367 = vpop.f32.mrf.mxu0
        %v3368 = vadd.f32 %v3299, %v3367
        %v3369 = vpop.f32.mrf.mxu0
        %3370 = vdwg.mxu0
        %v3371 = vadd.f32 %v3183, %v3368
        %v3372 = vmul.f32 %v3371, %v970
        %3373 = vadd.xlane.f32.xlu0 %v3372
        %v3374 = vpop.xlane.xlu0 %3373
        %v3375 = vmul.f32 %v3374, 0.03125
        %v3376 = vsub.f32 %v3371, %v3375
        %v3377 = vmul.f32 %v3376, %v970
        %v3378 = vmul.f32 %v3377, %v3377
        %3379 = vadd.xlane.f32.xlu0 %v3378
        %v3380 = vpop.xlane.xlu0 %3379
        %v3381 = vmul.f32 %v3380, 0.03125
        %v3382 = vadd.f32 %v3381, 1e-05
        %v3383 = vrsqrt.pop %v3382
        %v3384 = vmul.f32 %v3377, %v3383
        %v3385 = vld [vmem:[%s22] sm:$0x1]
        %v3387 = vlaneseq
        %v3388 = vshrl.u32 %v3387, 7
        %v3389 = vsub.s32 0, %v3388
        %v3390 = vrot.slane %v3385, %v3389
        %v3392 = vmul.f32 %v3384, %v3390
        %v3393 = vld [vmem:[%s23] sm:$0x1]
        %v3395 = vlaneseq
        %v3396 = vshrl.u32 %v3395, 7
        %v3397 = vsub.s32 0, %v3396
        %v3398 = vrot.slane %v3393, %v3397
        %v3400 = vadd.f32 %v3392, %v3398
        %3401 = vst [vmem:[%s965] sm:$0xff] %v3400
        %s3402 = sand.u32 %s582, 1
        %s3403 = scalar_lea.sflag [#allocation6], %s3402
        %s3404 = sand.u32 %s582, 1
        %s3405 = smul.addr %s3404, 8
        %s3406 = scalar_lea.vmem [#allocation22], %s3405
        // Predicated region
        $region161: #{tpu_custom_call.1} parent=115 // pred_check
          %p3407 = pneg %p592
        $region162: #{tpu_custom_call.1} parent=115 // pred_check_branch
          %3409 = sbr.rel (%p3407) target = $region164
        $region163: #{tpu_custom_call.1} parent=115 // pred_region
          %s3411 = ssub.s32 128, 128
          %3412 = vsyncadd %s3403, %s3411
          %s3413 = smul.addr %s50, 128
          %s3414 = scalar_lea.hbm %s24, %s3413
          %s3416 = sshll.u32 %s3406, 4
          %s3417 = int_to_ptr.vmem [resolvable:$true] %s3416
          %3419 = dma.vmem_to_hbm [thread:$0]  %s3417, 128, %s3414, %s3403
        $region164: #{tpu_custom_call.1} parent=115 // pred_fallthru
          _
      $region116: #{tpu_custom_call.1} parent=5 // pred_fallthru
        _
      %p3420 = scmp.le.s32.totalorder 2, %s45
      // Predicated region
      $region165: #{tpu_custom_call.1} parent=5 // pred_check
        %p3421 = pneg %p3420
      $region166: #{tpu_custom_call.1} parent=5 // pred_check_branch
        %3423 = sbr.rel (%p3421) target = $region168
      $region167: #{tpu_custom_call.1} parent=5 // pred_region
        %s3424 = ssub.s32 %s45, 2
        // Predicated region
        $region169: #{tpu_custom_call.1} parent=167 // pred_check
          %p3425 = pneg %p598
        $region170: #{tpu_custom_call.1} parent=167 // pred_check_branch
          %3427 = sbr.rel (%p3425) target = $region172
        $region171: #{tpu_custom_call.1} parent=167 // pred_region
          %s3428 = sand.u32 %s583, 1
          %s3429 = scalar_lea.sflag [#allocation6], %s3428
          %s3430 = sand.u32 %s583, 1
          %s3431 = smul.addr %s3430, 8
          %s3432 = scalar_lea.vmem [#allocation22], %s3431
          %3433 = dma.done %s3429, 128
        $region172: #{tpu_custom_call.1} parent=167 // pred_fallthru
          _
      $region168: #{tpu_custom_call.1} parent=5 // pred_fallthru
        _
    $region6: #{tpu_custom_call.1} parent=1 // loop_footer
      %s49 = sadd.s32 1, %s45
    $region7: #{tpu_custom_call.1} parent=1 // loop_footer_branch
      %44 = sbr.rel target = $region3
    $region8: #{tpu_custom_call.1} parent=1 // loop_exit
      _
    %3434 = vsyncpa [#allocation5], 1
    %s3435 = scalar_lea.sflag [#allocation5], 1
    %3436 = vsyncpa %s3435, 1
    %3437 = vsyncpa [#allocation8], 1
    %s3438 = scalar_lea.sflag [#allocation8], 1
    %3439 = vsyncpa %s3438, 1
    %3440 = vsyncpa [#allocation11], 1
    %s3441 = scalar_lea.sflag [#allocation11], 1
    %3442 = vsyncpa %s3441, 1
    %3443 = vsyncpa [#allocation14], 1
    %3444 = vsyncpa [#allocation17], 1
    %3445 = vsyncpa [#allocation20], 1
    %3446 = vsyncpa [#allocation6], 1
    %s3447 = scalar_lea.sflag [#allocation6], 1
    %3448 = vsyncpa %s3447, 1

</llo_original>
